<compile_context>
chip_gen: v7x
topology: tpu7x:2x2x1
jax: 0.10.0
libtpu: 0.0.40
codegen_flags: <defaults>
</compile_context>

<pallas_src>
import math
from functools import partial

import jax
import jax.numpy as jnp
from jax.experimental import pallas as pl
from jax.experimental.pallas import tpu as pltpu


def _round_up(x, m):
    return ((x + m - 1) // m) * m


def _vmem_limit_bytes():
    # Generation-dependent VMEM limit: ~3/4 of the physical capacity
    # (96 MiB on v5e/v6e's 128 MiB, 48 MiB on v7x's 64 MiB).
    try:
        cap = int(pltpu.get_tpu_info().vmem_capacity_bytes)
    except Exception:
        cap = 64 * 1024 * 1024
    return max(32 * 1024 * 1024, (cap * 3) // 4)


def _pick_ffn_chunk(s_pad, f_pad, budget_bytes=4 * 1024 * 1024):
    # Row-chunk the FFN so the (chunk, Fp) f32 intermediate stays under budget.
    chunk = s_pad
    while chunk * f_pad * 4 > budget_bytes and chunk % 16 == 0:
        chunk //= 2
    return chunk


# ----------------------------------------------------------------------------
# Fused kernel: whole encoder stack, grid = (batch, num_layers)
# ----------------------------------------------------------------------------
def mult_stack_kernel(*refs, num_heads, cross, embed_scale, d_true, sk_true,
                      ffn_chunk):
    if cross:
        (xq_ref, xk_ref, xv_ref, peq_ref, pek_ref,
         ln0_g_ref, ln0_b_ref, wqkv_ref, bqkv_ref, wo_ref, bo_ref,
         ln1_g_ref, ln1_b_ref, w1_ref, b1_ref, w2_ref, b2_ref,
         o_ref, kscr_ref, vscr_ref) = refs
    else:
        (xq_ref, peq_ref,
         ln0_g_ref, ln0_b_ref, wqkv_ref, bqkv_ref, wo_ref, bo_ref,
         ln1_g_ref, ln1_b_ref, w1_ref, b1_ref, w2_ref, b2_ref,
         o_ref) = refs
        xk_ref = xv_ref = pek_ref = kscr_ref = vscr_ref = None

    l = pl.program_id(1)
    _, Sp, Dr = o_ref.shape            # batch tile is 1
    H = num_heads
    Dp_att = wo_ref.shape[1]           # H * Dhp (per-head padded width)
    Dhp = Dp_att // H
    eps = 1e-5
    bf16 = jnp.bfloat16

    # ---- layer 0: embed-scale + positional embedding (folded into the stack).
    # NOTE: this write must stay before the unconditional read of o_ref below —
    # the resident-output pattern relies on it.
    @pl.when(l == 0)
    def _embed():
        o_ref[...] = embed_scale * xq_ref[...] + peq_ref[...][None, :, :]
        if cross:
            kscr_ref[...] = (embed_scale * xk_ref[...]
                             + pek_ref[...][None, :, :]).astype(bf16)
            vscr_ref[...] = (embed_scale * xv_ref[...]
                             + pek_ref[...][None, :, :]).astype(bf16)

    inv_d = 1.0 / float(d_true)

    def layer_norm(z, g, b):
        # One-pass moments with the *true* feature divisor: zero-padded lanes
        # contribute 0 to both sums, gamma/beta are zero-padded, so padded
        # lanes stay exactly 0.
        mu = jnp.sum(z, axis=-1, keepdims=True) * inv_d
        ex2 = jnp.sum(z * z, axis=-1, keepdims=True) * inv_d
        return (z - mu) * jax.lax.rsqrt(ex2 - mu * mu + eps) * g + b

    # per-layer parameters (leading L-block dim of 1 squeezed off)
    ln0_g = ln0_g_ref[0]
    ln0_b = ln0_b_ref[0]
    Wqkv = wqkv_ref[0]        # (Dr, 3*Dp_att) bf16, q-scaling pre-folded
    Bqkv = bqkv_ref[0]        # (1, 3*Dp_att)  f32
    Wo = wo_ref[0]            # (Dp_att, Dr)   bf16
    Bo = bo_ref[0]            # (1, Dr)        f32
    ln1_g = ln1_g_ref[0]
    ln1_b = ln1_b_ref[0]
    W1 = w1_ref[0]            # (Dr, Fp) bf16
    B1 = b1_ref[0]            # (1, Fp)  f32
    W2 = w2_ref[0]            # (Fp, Dr) bf16
    B2 = b2_ref[0]            # (1, Dr)  f32

    # ---- multi-head attention block (pre-LN) --------------------------------
    x = o_ref[...].reshape(Sp, Dr)          # resident activation (f32)
    q_in = layer_norm(x, ln0_g, ln0_b)

    if cross:
        Skp = kscr_ref.shape[1]
        k_in = layer_norm(kscr_ref[...].astype(jnp.float32).reshape(Skp, Dr),
                          ln0_g, ln0_b)
        v_in = layer_norm(vscr_ref[...].astype(jnp.float32).reshape(Skp, Dr),
                          ln0_g, ln0_b)
        q = jnp.dot(q_in.astype(bf16), Wqkv[:, :Dp_att],
                    preferred_element_type=jnp.float32) + Bqkv[:, :Dp_att]
        k = jnp.dot(k_in.astype(bf16), Wqkv[:, Dp_att:2 * Dp_att],
                    preferred_element_type=jnp.float32) + Bqkv[:, Dp_att:2 * Dp_att]
        v = jnp.dot(v_in.astype(bf16), Wqkv[:, 2 * Dp_att:],
                    preferred_element_type=jnp.float32) + Bqkv[:, 2 * Dp_att:]
    else:
        # self-attention: q == k == v input -> single LN, single fused QKV matmul
        Skp = Sp
        qkv = jnp.dot(q_in.astype(bf16), Wqkv,
                      preferred_element_type=jnp.float32) + Bqkv   # (Sp, 3*Dp_att)
        q = qkv[:, :Dp_att]
        k = qkv[:, Dp_att:2 * Dp_att]
        v = qkv[:, 2 * Dp_att:]

    # mask for zero-padded key positions (hoisted out of the head loop)
    if sk_true < Skp:
        key_keep = jax.lax.broadcasted_iota(jnp.int32, (1, 1, Skp), 2) < sk_true

    # attention output accumulator with residual + output bias folded in;
    # output projection is fused per head: (concat_h O_h) @ Wo == sum_h O_h @ Wo[h]
    acc = x + Bo                                           # (Sp, Dr) f32
    for h in range(H):                                     # 128-aligned head slices
        c0, c1 = h * Dhp, (h + 1) * Dhp
        qh = q[:, c0:c1][None].astype(bf16)                # (1, Sp, Dhp)
        kh = k[:, c0:c1][None].astype(bf16)                # (1, Skp, Dhp)
        vh = v[:, c0:c1][None].astype(bf16)
        s = jnp.einsum('bqd,bkd->bqk', qh, kh,
                       preferred_element_type=jnp.float32)  # (1, Sp, Skp)
        if sk_true < Skp:
            s = jnp.where(key_keep, s, -1e30)
        s_max = jnp.max(s, axis=-1, keepdims=True)
        p = jnp.exp(s - s_max)
        p = p * pl.reciprocal(jnp.sum(p, axis=-1, keepdims=True), approx=True)
        oh = jnp.einsum('bqk,bkd->bqd', p.astype(bf16), vh,
                        preferred_element_type=jnp.float32)[0]   # (Sp, Dhp)
        acc = acc + jnp.dot(oh.astype(bf16), Wo[c0:c1, :],
                            preferred_element_type=jnp.float32)

    o_ref[...] = acc.reshape(1, Sp, Dr)      # post-attention residual stream

    # ---- feed-forward block (pre-LN), row-chunked ----------------------------
    for c in range(Sp // ffn_chunk):
        r0 = c * ffn_chunk
        xb = o_ref[:, r0:r0 + ffn_chunk, :].reshape(ffn_chunk, Dr)
        y = layer_norm(xb, ln1_g, ln1_b)
        h1 = jnp.maximum(
            jnp.dot(y.astype(bf16), W1, preferred_element_type=jnp.float32) + B1,
            0.0)
        out = xb + jnp.dot(h1.astype(bf16), W2,
                           preferred_element_type=jnp.float32) + B2
        o_ref[:, r0:r0 + ffn_chunk, :] = out.reshape(1, ffn_chunk, Dr)


# ----------------------------------------------------------------------------
# Wrapper
# ----------------------------------------------------------------------------
def sub_networks_forward(kparams, x_in, x_in_k=None, x_in_v=None, *, num_heads=4):
    # x_in: (S, B, D) time-first, like the PyTorch module.  Eval mode.
    S, B, D = x_in.shape
    H = num_heads
    assert D % H == 0, "embed_dim must be divisible by num_heads"
    cross = x_in_k is not None and x_in_v is not None

    L = kparams["wqkv"].shape[0]
    Dr = kparams["wqkv"].shape[1]           # padded residual width
    Dp_att = kparams["wo"].shape[1]         # padded attention width (H * Dhp)
    Fp = kparams["w1"].shape[2]             # padded FFN width
    embed_scale = math.sqrt(D)

    if cross:
        Sk = x_in_k.shape[0]
        Sp = _round_up(S, 8)                # query rows: sublane multiple
        Skp = _round_up(Sk, 128)            # key dim: lane-dense softmax
    else:
        Sk = S
        Sp = _round_up(S, 128)              # serves as both query and key length
        Skp = Sp

    def prep_x(x, s_pad):                   # (s, B, D) -> (B, s_pad, Dr), zero-padded
        xb = jnp.transpose(x, (1, 0, 2))
        return jnp.pad(xb, ((0, 0), (0, s_pad - x.shape[0]), (0, Dr - D)))

    xq = prep_x(x_in, Sp)
    peq = jnp.pad(sinusoidal_pos_emb(S, D), ((0, Sp - S), (0, Dr - D)))

    per_layer = lambda r, c: pl.BlockSpec((1, r, c), lambda b, l: (l, 0, 0))
    per_batch = lambda s: pl.BlockSpec((1, s, Dr), lambda b, l: (b, 0, 0))
    const2 = lambda s: pl.BlockSpec((s, Dr), lambda b, l: (0, 0))

    weight_specs = [
        per_layer(1, Dr), per_layer(1, Dr),                    # ln0 gamma/beta
        per_layer(Dr, 3 * Dp_att), per_layer(1, 3 * Dp_att),   # wqkv, bqkv
        per_layer(Dp_att, Dr), per_layer(1, Dr),               # wo, bo
        per_layer(1, Dr), per_layer(1, Dr),                    # ln1 gamma/beta
        per_layer(Dr, Fp), per_layer(1, Fp),                   # w1, b1
        per_layer(Fp, Dr), per_layer(1, Dr),                   # w2, b2
    ]
    weight_args = [kparams[k] for k in
                   ("ln0_g", "ln0_b", "wqkv", "bqkv", "wo", "bo",
                    "ln1_g", "ln1_b", "w1", "b1", "w2", "b2")]

    kern = partial(mult_stack_kernel, num_heads=H, cross=cross,
                   embed_scale=embed_scale, d_true=D, sk_true=Sk,
                   ffn_chunk=_pick_ffn_chunk(Sp, Fp))

    if cross:
        xk = prep_x(x_in_k, Skp)
        xv = prep_x(x_in_v, Skp)
        pek = jnp.pad(sinusoidal_pos_emb(Sk, D), ((0, Skp - Sk), (0, Dr - D)))
        in_specs = ([per_batch(Sp), per_batch(Skp), per_batch(Skp),
                     const2(Sp), const2(Skp)] + weight_specs)
        args = [xq, xk, xv, peq, pek] + weight_args
        scratch = [pltpu.VMEM((1, Skp, Dr), jnp.bfloat16),   # embedded K input
                   pltpu.VMEM((1, Skp, Dr), jnp.bfloat16)]   # embedded V input
    else:
        in_specs = [per_batch(Sp), const2(Sp)] + weight_specs
        args = [xq, peq] + weight_args
        scratch = []

    out = pl.pallas_call(
        kern,
        out_shape=jax.ShapeDtypeStruct((B, Sp, Dr), jnp.float32),
        grid=(B, L),
        in_specs=in_specs,
        out_specs=per_batch(Sp),            # same block across L -> resident accumulator
        scratch_shapes=scratch,
        compiler_params=pltpu.CompilerParams(
            dimension_semantics=("parallel", "arbitrary"),
            vmem_limit_bytes=_vmem_limit_bytes()),
    )(*args)

    # strip padding, back to (S, B, D)
    return jnp.transpose(out[:, :S, :D], (1, 0, 2))


# ----------------------------------------------------------------------------
# Parameters: raw (PyTorch-like, f32) and padded kernel layout
# ----------------------------------------------------------------------------
def sinusoidal_pos_emb(S, D):
    # fairseq SinusoidalPositionalEmbedding; positions = padding_idx(0)+1 .. S
    positions = jnp.arange(1, S + 1, dtype=jnp.float32)
    half = D // 2
    emb = math.log(10000.0) / (half - 1)
    inv = jnp.exp(jnp.arange(half, dtype=jnp.float32) * -emb)
    args = positions[:, None] * inv[None, :]
    pe = jnp.concatenate([jnp.sin(args), jnp.cos(args)], axis=1)
    if D % 2 == 1:
        pe = jnp.concatenate([pe, jnp.zeros((S, 1), jnp.float32)], axis=1)
    return pe  # (S, D)


def init_raw_params(key, num_layers, D, ffn_dim=None):
    if ffn_dim is None:
        ffn_dim = 4 * D
    L = num_layers
    ks = jax.random.split(key, 12)
    w = lambda k, shape: jax.random.normal(k, shape, jnp.float32) * 0.05
    return dict(
        ln0_g=jnp.ones((L, D), jnp.float32), ln0_b=jnp.zeros((L, D), jnp.float32),
        wq=w(ks[0], (L, D, D)), bq=w(ks[1], (L, D)),
        wk=w(ks[2], (L, D, D)), bk=w(ks[3], (L, D)),
        wv=w(ks[4], (L, D, D)), bv=w(ks[5], (L, D)),
        wo=w(ks[6], (L, D, D)), bo=w(ks[7], (L, D)),
        ln1_g=jnp.ones((L, D), jnp.float32), ln1_b=jnp.zeros((L, D), jnp.float32),
        w1=w(ks[8], (L, D, ffn_dim)), b1=w(ks[9], (L, ffn_dim)),
        w2=w(ks[10], (L, ffn_dim, D)), b2=w(ks[11], (L, D)),
    )


def prepare_params(raw, num_heads):
    """One-time host-side transform: pad to lane-friendly sizes, fuse QKV,
    fold the 1/sqrt(Dh) q-scaling into Wq/Bq, cast matmul weights to bf16."""
    L, D, _ = raw["wq"].shape
    F = raw["w1"].shape[2]
    H = num_heads
    assert D % H == 0
    Dh = D // H
    Dhp = _round_up(Dh, 128)
    Dp_att = H * Dhp
    Dr = _round_up(D, 128)
    Fp = _round_up(F, 128)
    scaling = 1.0 / math.sqrt(Dh)

    def pad_axis(a, axis, target):
        pad = target - a.shape[axis]
        if pad == 0:
            return a
        widths = [(0, 0)] * a.ndim
        widths[axis] = (0, pad)
        return jnp.pad(a, widths)

    def head_pad_cols(w):          # (L, D, D) -> (L, Dr, H*Dhp)
        w = w.reshape(L, D, H, Dh)
        w = pad_axis(w, 3, Dhp).reshape(L, D, H * Dhp)
        return pad_axis(w, 1, Dr)

    def head_pad_bias(b):          # (L, D) -> (L, 1, H*Dhp)
        b = b.reshape(L, H, Dh)
        return pad_axis(b, 2, Dhp).reshape(L, 1, H * Dhp)

    wq = head_pad_cols(raw["wq"] * scaling)
    wk = head_pad_cols(raw["wk"])
    wv = head_pad_cols(raw["wv"])
    bq = head_pad_bias(raw["bq"] * scaling)
    bk = head_pad_bias(raw["bk"])
    bv = head_pad_bias(raw["bv"])

    wo = raw["wo"].reshape(L, H, Dh, D)
    wo = pad_axis(wo, 2, Dhp).reshape(L, H * Dhp, D)
    wo = pad_axis(wo, 2, Dr)

    ln_pad = lambda v: pad_axis(v, 1, Dr).reshape(L, 1, Dr)
    vec_pad = lambda v, t: pad_axis(v, 1, t).reshape(L, 1, t)

    return dict(
        ln0_g=ln_pad(raw["ln0_g"]), ln0_b=ln_pad(raw["ln0_b"]),
        wqkv=jnp.concatenate([wq, wk, wv], axis=-1).astype(jnp.bfloat16),
        bqkv=jnp.concatenate([bq, bk, bv], axis=-1),
        wo=wo.astype(jnp.bfloat16), bo=vec_pad(raw["bo"], Dr),
        ln1_g=ln_pad(raw["ln1_g"]), ln1_b=ln_pad(raw["ln1_b"]),
        w1=pad_axis(pad_axis(raw["w1"], 1, Dr), 2, Fp).astype(jnp.bfloat16),
        b1=vec_pad(raw["b1"], Fp),
        w2=pad_axis(pad_axis(raw["w2"], 1, Fp), 2, Dr).astype(jnp.bfloat16),
        b2=vec_pad(raw["b2"], Dr),
    )


# ----------------------------------------------------------------------------
# Pure-JAX reference (original math, bf16 matmuls mirrored) for validation
# ----------------------------------------------------------------------------
def sub_networks_reference(raw, x_in, x_in_k=None, x_in_v=None, *, num_heads):
    S, B, D = x_in.shape
    H = num_heads
    Dh = D // H
    scaling = 1.0 / math.sqrt(Dh)
    L = raw["wq"].shape[0]
    cross = x_in_k is not None and x_in_v is not None
    bf16 = jnp.bfloat16

    def ln(z, g, b, eps=1e-5):
        mu = jnp.mean(z, axis=-1, keepdims=True)
        var = jnp.mean(jnp.square(z - mu), axis=-1, keepdims=True)
        return (z - mu) / jnp.sqrt(var + eps) * g + b

    def mm(a, w):
        return jnp.dot(a.astype(bf16), w.astype(bf16),
                       preferred_element_type=jnp.float32)

    es = math.sqrt(D)
    x = es * jnp.transpose(x_in, (1, 0, 2)) + sinusoidal_pos_emb(S, D)[None]
    if cross:
        Sk = x_in_k.shape[0]
        pek = sinusoidal_pos_emb(Sk, D)[None]
        xk = es * jnp.transpose(x_in_k, (1, 0, 2)) + pek
        xv = es * jnp.transpose(x_in_v, (1, 0, 2)) + pek
        xk = xk.astype(bf16).astype(jnp.float32)   # mirror the kernel's bf16 staging
        xv = xv.astype(bf16).astype(jnp.float32)
    else:
        Sk = S

    for li in range(L):
        res = x
        q_in = ln(x, raw["ln0_g"][li], raw["ln0_b"][li])
        if cross:
            k_in = ln(xk, raw["ln0_g"][li], raw["ln0_b"][li])
            v_in = ln(xv, raw["ln0_g"][li], raw["ln0_b"][li])
        else:
            k_in = v_in = q_in
        q = (mm(q_in, raw["wq"][li]) + raw["bq"][li]) * scaling
        k = mm(k_in, raw["wk"][li]) + raw["bk"][li]
        v = mm(v_in, raw["wv"][li]) + raw["bv"][li]
        qh = q.reshape(B, S, H, Dh)
        kh = k.reshape(B, Sk, H, Dh)
        vh = v.reshape(B, Sk, H, Dh)
        s = jnp.einsum('bqhd,bkhd->bhqk', qh.astype(bf16), kh.astype(bf16),
                       preferred_element_type=jnp.float32)
        p = jax.nn.softmax(s, axis=-1)
        attn = jnp.einsum('bhqk,bkhd->bqhd', p.astype(bf16), vh.astype(bf16),
                          preferred_element_type=jnp.float32).reshape(B, S, D)
        x = res + mm(attn, raw["wo"][li]) + raw["bo"][li]
        res = x
        y = ln(x, raw["ln1_g"][li], raw["ln1_b"][li])
        h1 = jnp.maximum(mm(y, raw["w1"][li]) + raw["b1"][li], 0.0)
        x = res + mm(h1, raw["w2"][li]) + raw["b2"][li]
    return jnp.transpose(x, (1, 0, 2))   # (S, B, D)


if __name__ == "__main__":
    S, B, D = 8, 2, 32          # seq, batch, embed_dim
    NUM_HEADS, NUM_LAYERS = 4, 2

    key = jax.random.PRNGKey(0)
    k_x, k_k, k_v, k_p = jax.random.split(key, 4)
    x_in = jax.random.normal(k_x, (S, B, D), jnp.float32)

    raw = init_raw_params(k_p, NUM_LAYERS, D)
    kparams = prepare_params(raw, NUM_HEADS)

    # --- self-attention stack ---
    out = sub_networks_forward(kparams, x_in, num_heads=NUM_HEADS)
    out = jax.block_until_ready(out)
    assert out.shape == (S, B, D) and out.dtype == jnp.float32
    assert bool(jnp.all(jnp.isfinite(out)))
    ref = sub_networks_reference(raw, x_in, num_heads=NUM_HEADS)
    assert bool(jnp.allclose(out, ref, atol=3e-2, rtol=3e-2))

    # --- cross-modal stack (different key/value sequence length) ---
    Sk = 12
    x_k = jax.random.normal(k_k, (Sk, B, D), jnp.float32)
    x_v = jax.random.normal(k_v, (Sk, B, D), jnp.float32)
    out_c = sub_networks_forward(kparams, x_in, x_k, x_v, num_heads=NUM_HEADS)
    out_c = jax.block_until_ready(out_c)
    assert out_c.shape == (S, B, D)
    assert bool(jnp.all(jnp.isfinite(out_c)))
    ref_c = sub_networks_reference(raw, x_in, x_k, x_v, num_heads=NUM_HEADS)
    assert bool(jnp.allclose(out_c, ref_c, atol=3e-2, rtol=3e-2))

    print("KERNEL_OK")
</pallas_src>

<mosaic_0001>
module attributes {stable_mosaic.version = 11 : i64} {
  func.func @mult_stack_kernel(%arg0: i32, %arg1: i32, %arg2: memref<1x128x128xf32, #tpu.memory_space<vmem>>, %arg3: memref<128x128xf32, #tpu.memory_space<vmem>>, %arg4: memref<1x1x128xf32, #tpu.memory_space<vmem>>, %arg5: memref<1x1x128xf32, #tpu.memory_space<vmem>>, %arg6: memref<1x128x1536xbf16, #tpu.memory_space<vmem>>, %arg7: memref<1x1x1536xf32, #tpu.memory_space<vmem>>, %arg8: memref<1x512x128xbf16, #tpu.memory_space<vmem>>, %arg9: memref<1x1x128xf32, #tpu.memory_space<vmem>>, %arg10: memref<1x1x128xf32, #tpu.memory_space<vmem>>, %arg11: memref<1x1x128xf32, #tpu.memory_space<vmem>>, %arg12: memref<1x128x128xbf16, #tpu.memory_space<vmem>>, %arg13: memref<1x1x128xf32, #tpu.memory_space<vmem>>, %arg14: memref<1x128x128xbf16, #tpu.memory_space<vmem>>, %arg15: memref<1x1x128xf32, #tpu.memory_space<vmem>>, %arg16: memref<1x128x128xf32, #tpu.memory_space<vmem>>) attributes {dimension_semantics = [#tpu.dimension_semantics<parallel>, #tpu.dimension_semantics<arbitrary>], iteration_bounds = array<i64: 2, 2>, scalar_prefetch = 0 : i64, scratch_operands = 0 : i64, tpu.core_type = #tpu.core_type<tc>, window_params = [{transform_indices = @transform_0, window_bounds = array<i64: 1, 128, 128>}, {pipeline_mode = #tpu.pipeline_mode<synchronous>, transform_indices = @transform_1, window_bounds = array<i64: 128, 128>}, {transform_indices = @transform_2, window_bounds = array<i64: 1, 1, 128>}, {transform_indices = @transform_3, window_bounds = array<i64: 1, 1, 128>}, {transform_indices = @transform_4, window_bounds = array<i64: 1, 128, 1536>}, {transform_indices = @transform_5, window_bounds = array<i64: 1, 1, 1536>}, {transform_indices = @transform_6, window_bounds = array<i64: 1, 512, 128>}, {transform_indices = @transform_7, window_bounds = array<i64: 1, 1, 128>}, {transform_indices = @transform_8, window_bounds = array<i64: 1, 1, 128>}, {transform_indices = @transform_9, window_bounds = array<i64: 1, 1, 128>}, {transform_indices = @transform_10, window_bounds = array<i64: 1, 128, 128>}, {transform_indices = @transform_11, window_bounds = array<i64: 1, 1, 128>}, {transform_indices = @transform_12, window_bounds = array<i64: 1, 128, 128>}, {transform_indices = @transform_13, window_bounds = array<i64: 1, 1, 128>}, {transform_indices = @transform_14, window_bounds = array<i64: 1, 128, 128>}]} {
    %c0_i32 = arith.constant 0 : i32
    %0 = arith.cmpi eq, %arg1, %c0_i32 : i32
    %1 = arith.extui %0 : i1 to i32
    %c0_i32_0 = arith.constant 0 : i32
    %2 = arith.cmpi ne, %1, %c0_i32_0 : i32
    scf.if %2 {
      %c0_85 = arith.constant 0 : index
      %c0_86 = arith.constant 0 : index
      %c0_87 = arith.constant 0 : index
      %226 = vector.load %arg2[%c0_85, %c0_86, %c0_87] : memref<1x128x128xf32, #tpu.memory_space<vmem>>, vector<1x128x128xf32>
      %cst_88 = arith.constant 5.65685415 : f32
      %227 = vector.broadcast %cst_88 : f32 to vector<1x128x128xf32>
      %228 = arith.mulf %227, %226 : vector<1x128x128xf32>
      %c0_89 = arith.constant 0 : index
      %c0_90 = arith.constant 0 : index
      %229 = vector.load %arg3[%c0_89, %c0_90] : memref<128x128xf32, #tpu.memory_space<vmem>>, vector<128x128xf32>
      %230 = vector.shape_cast %229 : vector<128x128xf32> to vector<1x128x128xf32>
      %231 = arith.addf %228, %230 : vector<1x128x128xf32>
      %c0_91 = arith.constant 0 : index
      %c0_92 = arith.constant 0 : index
      %c0_93 = arith.constant 0 : index
      %232 = vector.load %arg16[%c0_91, %c0_92, %c0_93] : memref<1x128x128xf32, #tpu.memory_space<vmem>>, vector<1x128x128xf32>
      tpu.vector_store %arg16[%c0_91, %c0_92, %c0_93], %231 {strides = array<i32>} : memref<1x128x128xf32, #tpu.memory_space<vmem>>, vector<1x128x128xf32>,
    } else {
    }
    %c0 = arith.constant 0 : index
    %c0_1 = arith.constant 0 : index
    %c0_2 = arith.constant 0 : index
    %3 = vector.load %arg4[%c0, %c0_1, %c0_2] : memref<1x1x128xf32, #tpu.memory_space<vmem>>, vector<1x1x128xf32>
    %4 = vector.shape_cast %3 : vector<1x1x128xf32> to vector<1x128xf32>
    %c0_3 = arith.constant 0 : index
    %c0_4 = arith.constant 0 : index
    %c0_5 = arith.constant 0 : index
    %5 = vector.load %arg5[%c0_3, %c0_4, %c0_5] : memref<1x1x128xf32, #tpu.memory_space<vmem>>, vector<1x1x128xf32>
    %6 = vector.shape_cast %5 : vector<1x1x128xf32> to vector<1x128xf32>
    %c0_6 = arith.constant 0 : index
    %c0_7 = arith.constant 0 : index
    %c0_8 = arith.constant 0 : index
    %7 = vector.load %arg6[%c0_6, %c0_7, %c0_8] : memref<1x128x1536xbf16, #tpu.memory_space<vmem>>, vector<1x128x1536xbf16>
    %8 = vector.shape_cast %7 : vector<1x128x1536xbf16> to vector<128x1536xbf16>
    %c0_9 = arith.constant 0 : index
    %c0_10 = arith.constant 0 : index
    %c0_11 = arith.constant 0 : index
    %9 = vector.load %arg7[%c0_9, %c0_10, %c0_11] : memref<1x1x1536xf32, #tpu.memory_space<vmem>>, vector<1x1x1536xf32>
    %10 = vector.shape_cast %9 : vector<1x1x1536xf32> to vector<1x1536xf32>
    %c0_12 = arith.constant 0 : index
    %c0_13 = arith.constant 0 : index
    %c0_14 = arith.constant 0 : index
    %11 = vector.load %arg8[%c0_12, %c0_13, %c0_14] : memref<1x512x128xbf16, #tpu.memory_space<vmem>>, vector<1x512x128xbf16>
    %12 = vector.shape_cast %11 : vector<1x512x128xbf16> to vector<512x128xbf16>
    %c0_15 = arith.constant 0 : index
    %c0_16 = arith.constant 0 : index
    %c0_17 = arith.constant 0 : index
    %13 = vector.load %arg9[%c0_15, %c0_16, %c0_17] : memref<1x1x128xf32, #tpu.memory_space<vmem>>, vector<1x1x128xf32>
    %14 = vector.shape_cast %13 : vector<1x1x128xf32> to vector<1x128xf32>
    %c0_18 = arith.constant 0 : index
    %c0_19 = arith.constant 0 : index
    %c0_20 = arith.constant 0 : index
    %15 = vector.load %arg10[%c0_18, %c0_19, %c0_20] : memref<1x1x128xf32, #tpu.memory_space<vmem>>, vector<1x1x128xf32>
    %16 = vector.shape_cast %15 : vector<1x1x128xf32> to vector<1x128xf32>
    %c0_21 = arith.constant 0 : index
    %c0_22 = arith.constant 0 : index
    %c0_23 = arith.constant 0 : index
    %17 = vector.load %arg11[%c0_21, %c0_22, %c0_23] : memref<1x1x128xf32, #tpu.memory_space<vmem>>, vector<1x1x128xf32>
    %18 = vector.shape_cast %17 : vector<1x1x128xf32> to vector<1x128xf32>
    %c0_24 = arith.constant 0 : index
    %c0_25 = arith.constant 0 : index
    %c0_26 = arith.constant 0 : index
    %19 = vector.load %arg12[%c0_24, %c0_25, %c0_26] : memref<1x128x128xbf16, #tpu.memory_space<vmem>>, vector<1x128x128xbf16>
    %20 = vector.shape_cast %19 : vector<1x128x128xbf16> to vector<128x128xbf16>
    %c0_27 = arith.constant 0 : index
    %c0_28 = arith.constant 0 : index
    %c0_29 = arith.constant 0 : index
    %21 = vector.load %arg13[%c0_27, %c0_28, %c0_29] : memref<1x1x128xf32, #tpu.memory_space<vmem>>, vector<1x1x128xf32>
    %22 = vector.shape_cast %21 : vector<1x1x128xf32> to vector<1x128xf32>
    %c0_30 = arith.constant 0 : index
    %c0_31 = arith.constant 0 : index
    %c0_32 = arith.constant 0 : index
    %23 = vector.load %arg14[%c0_30, %c0_31, %c0_32] : memref<1x128x128xbf16, #tpu.memory_space<vmem>>, vector<1x128x128xbf16>
    %24 = vector.shape_cast %23 : vector<1x128x128xbf16> to vector<128x128xbf16>
    %c0_33 = arith.constant 0 : index
    %c0_34 = arith.constant 0 : index
    %c0_35 = arith.constant 0 : index
    %25 = vector.load %arg15[%c0_33, %c0_34, %c0_35] : memref<1x1x128xf32, #tpu.memory_space<vmem>>, vector<1x1x128xf32>
    %26 = vector.shape_cast %25 : vector<1x1x128xf32> to vector<1x128xf32>
    %c0_36 = arith.constant 0 : index
    %c0_37 = arith.constant 0 : index
    %c0_38 = arith.constant 0 : index
    %27 = vector.load %arg16[%c0_36, %c0_37, %c0_38] : memref<1x128x128xf32, #tpu.memory_space<vmem>>, vector<1x128x128xf32>
    %28 = vector.shape_cast %27 : vector<1x128x128xf32> to vector<128x128xf32>
    %cst = arith.constant dense<0.000000e+00> : vector<128xf32>
    %29 = vector.multi_reduction <add>, %28, %cst [1] : vector<128x128xf32> to vector<128xf32>
    %30 = vector.shape_cast %29 : vector<128xf32> to vector<128x1xf32>
    %cst_39 = arith.constant 3.125000e-02 : f32
    %31 = vector.broadcast %cst_39 : f32 to vector<128x1xf32>
    %32 = arith.mulf %30, %31 : vector<128x1xf32>
    %33 = arith.mulf %28, %28 : vector<128x128xf32>
    %cst_40 = arith.constant dense<0.000000e+00> : vector<128xf32>
    %34 = vector.multi_reduction <add>, %33, %cst_40 [1] : vector<128x128xf32> to vector<128xf32>
    %35 = vector.shape_cast %34 : vector<128xf32> to vector<128x1xf32>
    %cst_41 = arith.constant 3.125000e-02 : f32
    %36 = vector.broadcast %cst_41 : f32 to vector<128x1xf32>
    %37 = arith.mulf %35, %36 : vector<128x1xf32>
    %38 = vector.broadcast %32 : vector<128x1xf32> to vector<128x128xf32>
    %39 = arith.subf %28, %38 : vector<128x128xf32>
    %40 = arith.mulf %32, %32 : vector<128x1xf32>
    %41 = arith.subf %37, %40 : vector<128x1xf32>
    %cst_42 = arith.constant 9.99999974E-6 : f32
    %42 = vector.broadcast %cst_42 : f32 to vector<128x1xf32>
    %43 = arith.addf %41, %42 : vector<128x1xf32>
    %44 = math.rsqrt %43 : vector<128x1xf32>
    %45 = vector.broadcast %44 : vector<128x1xf32> to vector<128x128xf32>
    %46 = arith.mulf %39, %45 : vector<128x128xf32>
    %47 = vector.broadcast %4 : vector<1x128xf32> to vector<128x128xf32>
    %48 = arith.mulf %46, %47 : vector<128x128xf32>
    %49 = vector.broadcast %6 : vector<1x128xf32> to vector<128x128xf32>
    %50 = arith.addf %48, %49 : vector<128x128xf32>
    %51 = arith.truncf %50 : vector<128x128xf32> to vector<128x128xbf16>
    %cst_43 = arith.constant dense<0.000000e+00> : vector<128x1536xf32>
    %52 = tpu.matmul %51, %8, %cst_43 {dimension_numbers = #tpu.dot_dimension_numbers<[1], [0], [0], [1], [0, 0, 1, 1], [], []>} : vector<128x128xbf16>, vector<128x1536xbf16>, vector<128x1536xf32> -> vector<128x1536xf32>
    %53 = vector.broadcast %10 : vector<1x1536xf32> to vector<128x1536xf32>
    %54 = arith.addf %52, %53 : vector<128x1536xf32>
    %55 = vector.extract_strided_slice %54 {offsets = [0, 0], sizes = [128, 512], strides = [1, 1]} : vector<128x1536xf32> to vector<128x512xf32>
    %56 = vector.extract_strided_slice %54 {offsets = [0, 512], sizes = [128, 512], strides = [1, 1]} : vector<128x1536xf32> to vector<128x512xf32>
    %57 = vector.extract_strided_slice %54 {offsets = [0, 1024], sizes = [128, 512], strides = [1, 1]} : vector<128x1536xf32> to vector<128x512xf32>
    %58 = tpu.iota {dimensions = array<i32: 2>} : vector<1x1x128xi32>
    %c8_i32 = arith.constant 8 : i32
    %59 = vector.broadcast %c8_i32 : i32 to vector<1x1x128xi32>
    %60 = arith.cmpi slt, %58, %59 : vector<1x1x128xi32>
    %61 = vector.broadcast %14 : vector<1x128xf32> to vector<128x128xf32>
    %62 = arith.addf %28, %61 : vector<128x128xf32>
    %63 = vector.extract_strided_slice %55 {offsets = [0, 0], sizes = [128, 128], strides = [1, 1]} : vector<128x512xf32> to vector<128x128xf32>
    %64 = vector.shape_cast %63 : vector<128x128xf32> to vector<1x128x128xf32>
    %65 = arith.truncf %64 : vector<1x128x128xf32> to vector<1x128x128xbf16>
    %66 = vector.extract_strided_slice %56 {offsets = [0, 0], sizes = [128, 128], strides = [1, 1]} : vector<128x512xf32> to vector<128x128xf32>
    %67 = vector.shape_cast %66 : vector<128x128xf32> to vector<1x128x128xf32>
    %68 = arith.truncf %67 : vector<1x128x128xf32> to vector<1x128x128xbf16>
    %69 = vector.extract_strided_slice %57 {offsets = [0, 0], sizes = [128, 128], strides = [1, 1]} : vector<128x512xf32> to vector<128x128xf32>
    %70 = vector.shape_cast %69 : vector<128x128xf32> to vector<1x128x128xf32>
    %71 = arith.truncf %70 : vector<1x128x128xf32> to vector<1x128x128xbf16>
    "tpu.trace_start"() <{level = 10 : i32, message = "bqd,bkd->bqk"}> : () -> ()
    %cst_44 = arith.constant dense<0.000000e+00> : vector<1x128x128xf32>
    %72 = tpu.matmul %65, %68, %cst_44 {dimension_numbers = #tpu.dot_dimension_numbers<[2], [2], [1], [1], [0, 0, 0, 1, 1, 1], [0], [0]>} : vector<1x128x128xbf16>, vector<1x128x128xbf16>, vector<1x128x128xf32> -> vector<1x128x128xf32>
    %cst_45 = arith.constant -1.000000e+30 : f32
    "tpu.trace_stop"() : () -> ()
    %73 = vector.shape_cast %60 : vector<1x1x128xi1> to vector<1x1x128xi1>
    %74 = vector.broadcast %73 : vector<1x1x128xi1> to vector<1x128x128xi1>
    %75 = vector.broadcast %cst_45 : f32 to vector<1x128x128xf32>
    %76 = arith.select %74, %72, %75 : vector<1x128x128xi1>, vector<1x128x128xf32>
    %cst_46 = arith.constant dense<0xFF800000> : vector<1x128xf32>
    %77 = vector.multi_reduction <maximumf>, %76, %cst_46 [2] : vector<1x128x128xf32> to vector<1x128xf32>
    %78 = vector.shape_cast %77 : vector<1x128xf32> to vector<1x128x1xf32>
    %79 = vector.broadcast %78 : vector<1x128x1xf32> to vector<1x128x128xf32>
    %80 = arith.subf %76, %79 : vector<1x128x128xf32>
    %81 = math.exp %80 : vector<1x128x128xf32>
    %cst_47 = arith.constant dense<0.000000e+00> : vector<1x128xf32>
    %82 = vector.multi_reduction <add>, %81, %cst_47 [2] : vector<1x128x128xf32> to vector<1x128xf32>
    %83 = vector.shape_cast %82 : vector<1x128xf32> to vector<1x128x1xf32>
    %84 = tpu.reciprocal %83 {approx = true} : vector<1x128x1xf32> -> vector<1x128x1xf32>
    %85 = vector.broadcast %84 : vector<1x128x1xf32> to vector<1x128x128xf32>
    %86 = arith.mulf %81, %85 : vector<1x128x128xf32>
    %87 = arith.truncf %86 : vector<1x128x128xf32> to vector<1x128x128xbf16>
    "tpu.trace_start"() <{level = 10 : i32, message = "bqk,bkd->bqd"}> : () -> ()
    %cst_48 = arith.constant dense<0.000000e+00> : vector<1x128x128xf32>
    %88 = tpu.matmul %87, %71, %cst_48 {dimension_numbers = #tpu.dot_dimension_numbers<[2], [1], [1], [2], [0, 0, 0, 1, 1, 2], [0], [0]>} : vector<1x128x128xbf16>, vector<1x128x128xbf16>, vector<1x128x128xf32> -> vector<1x128x128xf32>
    "tpu.trace_stop"() : () -> ()
    %89 = vector.shape_cast %88 : vector<1x128x128xf32> to vector<128x128xf32>
    %90 = arith.truncf %89 : vector<128x128xf32> to vector<128x128xbf16>
    %91 = vector.extract_strided_slice %12 {offsets = [0, 0], sizes = [128, 128], strides = [1, 1]} : vector<512x128xbf16> to vector<128x128xbf16>
    %cst_49 = arith.constant dense<0.000000e+00> : vector<128x128xf32>
    %92 = tpu.matmul %90, %91, %cst_49 {dimension_numbers = #tpu.dot_dimension_numbers<[1], [0], [0], [1], [0, 0, 1, 1], [], []>} : vector<128x128xbf16>, vector<128x128xbf16>, vector<128x128xf32> -> vector<128x128xf32>
    %93 = arith.addf %62, %92 : vector<128x128xf32>
    %94 = vector.extract_strided_slice %55 {offsets = [0, 128], sizes = [128, 128], strides = [1, 1]} : vector<128x512xf32> to vector<128x128xf32>
    %95 = vector.shape_cast %94 : vector<128x128xf32> to vector<1x128x128xf32>
    %96 = arith.truncf %95 : vector<1x128x128xf32> to vector<1x128x128xbf16>
    %97 = vector.extract_strided_slice %56 {offsets = [0, 128], sizes = [128, 128], strides = [1, 1]} : vector<128x512xf32> to vector<128x128xf32>
    %98 = vector.shape_cast %97 : vector<128x128xf32> to vector<1x128x128xf32>
    %99 = arith.truncf %98 : vector<1x128x128xf32> to vector<1x128x128xbf16>
    %100 = vector.extract_strided_slice %57 {offsets = [0, 128], sizes = [128, 128], strides = [1, 1]} : vector<128x512xf32> to vector<128x128xf32>
    %101 = vector.shape_cast %100 : vector<128x128xf32> to vector<1x128x128xf32>
    %102 = arith.truncf %101 : vector<1x128x128xf32> to vector<1x128x128xbf16>
    "tpu.trace_start"() <{level = 10 : i32, message = "bqd,bkd->bqk"}> : () -> ()
    %cst_50 = arith.constant dense<0.000000e+00> : vector<1x128x128xf32>
    %103 = tpu.matmul %96, %99, %cst_50 {dimension_numbers = #tpu.dot_dimension_numbers<[2], [2], [1], [1], [0, 0, 0, 1, 1, 1], [0], [0]>} : vector<1x128x128xbf16>, vector<1x128x128xbf16>, vector<1x128x128xf32> -> vector<1x128x128xf32>
    %cst_51 = arith.constant -1.000000e+30 : f32
    "tpu.trace_stop"() : () -> ()
    %104 = vector.shape_cast %60 : vector<1x1x128xi1> to vector<1x1x128xi1>
    %105 = vector.broadcast %104 : vector<1x1x128xi1> to vector<1x128x128xi1>
    %106 = vector.broadcast %cst_51 : f32 to vector<1x128x128xf32>
    %107 = arith.select %105, %103, %106 : vector<1x128x128xi1>, vector<1x128x128xf32>
    %cst_52 = arith.constant dense<0xFF800000> : vector<1x128xf32>
    %108 = vector.multi_reduction <maximumf>, %107, %cst_52 [2] : vector<1x128x128xf32> to vector<1x128xf32>
    %109 = vector.shape_cast %108 : vector<1x128xf32> to vector<1x128x1xf32>
    %110 = vector.broadcast %109 : vector<1x128x1xf32> to vector<1x128x128xf32>
    %111 = arith.subf %107, %110 : vector<1x128x128xf32>
    %112 = math.exp %111 : vector<1x128x128xf32>
    %cst_53 = arith.constant dense<0.000000e+00> : vector<1x128xf32>
    %113 = vector.multi_reduction <add>, %112, %cst_53 [2] : vector<1x128x128xf32> to vector<1x128xf32>
    %114 = vector.shape_cast %113 : vector<1x128xf32> to vector<1x128x1xf32>
    %115 = tpu.reciprocal %114 {approx = true} : vector<1x128x1xf32> -> vector<1x128x1xf32>
    %116 = vector.broadcast %115 : vector<1x128x1xf32> to vector<1x128x128xf32>
    %117 = arith.mulf %112, %116 : vector<1x128x128xf32>
    %118 = arith.truncf %117 : vector<1x128x128xf32> to vector<1x128x128xbf16>
    "tpu.trace_start"() <{level = 10 : i32, message = "bqk,bkd->bqd"}> : () -> ()
    %cst_54 = arith.constant dense<0.000000e+00> : vector<1x128x128xf32>
    %119 = tpu.matmul %118, %102, %cst_54 {dimension_numbers = #tpu.dot_dimension_numbers<[2], [1], [1], [2], [0, 0, 0, 1, 1, 2], [0], [0]>} : vector<1x128x128xbf16>, vector<1x128x128xbf16>, vector<1x128x128xf32> -> vector<1x128x128xf32>
    "tpu.trace_stop"() : () -> ()
    %120 = vector.shape_cast %119 : vector<1x128x128xf32> to vector<128x128xf32>
    %121 = arith.truncf %120 : vector<128x128xf32> to vector<128x128xbf16>
    %122 = vector.extract_strided_slice %12 {offsets = [128, 0], sizes = [128, 128], strides = [1, 1]} : vector<512x128xbf16> to vector<128x128xbf16>
    %cst_55 = arith.constant dense<0.000000e+00> : vector<128x128xf32>
    %123 = tpu.matmul %121, %122, %cst_55 {dimension_numbers = #tpu.dot_dimension_numbers<[1], [0], [0], [1], [0, 0, 1, 1], [], []>} : vector<128x128xbf16>, vector<128x128xbf16>, vector<128x128xf32> -> vector<128x128xf32>
    %124 = arith.addf %93, %123 : vector<128x128xf32>
    %125 = vector.extract_strided_slice %55 {offsets = [0, 256], sizes = [128, 128], strides = [1, 1]} : vector<128x512xf32> to vector<128x128xf32>
    %126 = vector.shape_cast %125 : vector<128x128xf32> to vector<1x128x128xf32>
    %127 = arith.truncf %126 : vector<1x128x128xf32> to vector<1x128x128xbf16>
    %128 = vector.extract_strided_slice %56 {offsets = [0, 256], sizes = [128, 128], strides = [1, 1]} : vector<128x512xf32> to vector<128x128xf32>
    %129 = vector.shape_cast %128 : vector<128x128xf32> to vector<1x128x128xf32>
    %130 = arith.truncf %129 : vector<1x128x128xf32> to vector<1x128x128xbf16>
    %131 = vector.extract_strided_slice %57 {offsets = [0, 256], sizes = [128, 128], strides = [1, 1]} : vector<128x512xf32> to vector<128x128xf32>
    %132 = vector.shape_cast %131 : vector<128x128xf32> to vector<1x128x128xf32>
    %133 = arith.truncf %132 : vector<1x128x128xf32> to vector<1x128x128xbf16>
    "tpu.trace_start"() <{level = 10 : i32, message = "bqd,bkd->bqk"}> : () -> ()
    %cst_56 = arith.constant dense<0.000000e+00> : vector<1x128x128xf32>
    %134 = tpu.matmul %127, %130, %cst_56 {dimension_numbers = #tpu.dot_dimension_numbers<[2], [2], [1], [1], [0, 0, 0, 1, 1, 1], [0], [0]>} : vector<1x128x128xbf16>, vector<1x128x128xbf16>, vector<1x128x128xf32> -> vector<1x128x128xf32>
    %cst_57 = arith.constant -1.000000e+30 : f32
    "tpu.trace_stop"() : () -> ()
    %135 = vector.shape_cast %60 : vector<1x1x128xi1> to vector<1x1x128xi1>
    %136 = vector.broadcast %135 : vector<1x1x128xi1> to vector<1x128x128xi1>
    %137 = vector.broadcast %cst_57 : f32 to vector<1x128x128xf32>
    %138 = arith.select %136, %134, %137 : vector<1x128x128xi1>, vector<1x128x128xf32>
    %cst_58 = arith.constant dense<0xFF800000> : vector<1x128xf32>
    %139 = vector.multi_reduction <maximumf>, %138, %cst_58 [2] : vector<1x128x128xf32> to vector<1x128xf32>
    %140 = vector.shape_cast %139 : vector<1x128xf32> to vector<1x128x1xf32>
    %141 = vector.broadcast %140 : vector<1x128x1xf32> to vector<1x128x128xf32>
    %142 = arith.subf %138, %141 : vector<1x128x128xf32>
    %143 = math.exp %142 : vector<1x128x128xf32>
    %cst_59 = arith.constant dense<0.000000e+00> : vector<1x128xf32>
    %144 = vector.multi_reduction <add>, %143, %cst_59 [2] : vector<1x128x128xf32> to vector<1x128xf32>
    %145 = vector.shape_cast %144 : vector<1x128xf32> to vector<1x128x1xf32>
    %146 = tpu.reciprocal %145 {approx = true} : vector<1x128x1xf32> -> vector<1x128x1xf32>
    %147 = vector.broadcast %146 : vector<1x128x1xf32> to vector<1x128x128xf32>
    %148 = arith.mulf %143, %147 : vector<1x128x128xf32>
    %149 = arith.truncf %148 : vector<1x128x128xf32> to vector<1x128x128xbf16>
    "tpu.trace_start"() <{level = 10 : i32, message = "bqk,bkd->bqd"}> : () -> ()
    %cst_60 = arith.constant dense<0.000000e+00> : vector<1x128x128xf32>
    %150 = tpu.matmul %149, %133, %cst_60 {dimension_numbers = #tpu.dot_dimension_numbers<[2], [1], [1], [2], [0, 0, 0, 1, 1, 2], [0], [0]>} : vector<1x128x128xbf16>, vector<1x128x128xbf16>, vector<1x128x128xf32> -> vector<1x128x128xf32>
    "tpu.trace_stop"() : () -> ()
    %151 = vector.shape_cast %150 : vector<1x128x128xf32> to vector<128x128xf32>
    %152 = arith.truncf %151 : vector<128x128xf32> to vector<128x128xbf16>
    %153 = vector.extract_strided_slice %12 {offsets = [256, 0], sizes = [128, 128], strides = [1, 1]} : vector<512x128xbf16> to vector<128x128xbf16>
    %cst_61 = arith.constant dense<0.000000e+00> : vector<128x128xf32>
    %154 = tpu.matmul %152, %153, %cst_61 {dimension_numbers = #tpu.dot_dimension_numbers<[1], [0], [0], [1], [0, 0, 1, 1], [], []>} : vector<128x128xbf16>, vector<128x128xbf16>, vector<128x128xf32> -> vector<128x128xf32>
    %155 = arith.addf %124, %154 : vector<128x128xf32>
    %156 = vector.extract_strided_slice %55 {offsets = [0, 384], sizes = [128, 128], strides = [1, 1]} : vector<128x512xf32> to vector<128x128xf32>
    %157 = vector.shape_cast %156 : vector<128x128xf32> to vector<1x128x128xf32>
    %158 = arith.truncf %157 : vector<1x128x128xf32> to vector<1x128x128xbf16>
    %159 = vector.extract_strided_slice %56 {offsets = [0, 384], sizes = [128, 128], strides = [1, 1]} : vector<128x512xf32> to vector<128x128xf32>
    %160 = vector.shape_cast %159 : vector<128x128xf32> to vector<1x128x128xf32>
    %161 = arith.truncf %160 : vector<1x128x128xf32> to vector<1x128x128xbf16>
    %162 = vector.extract_strided_slice %57 {offsets = [0, 384], sizes = [128, 128], strides = [1, 1]} : vector<128x512xf32> to vector<128x128xf32>
    %163 = vector.shape_cast %162 : vector<128x128xf32> to vector<1x128x128xf32>
    %164 = arith.truncf %163 : vector<1x128x128xf32> to vector<1x128x128xbf16>
    "tpu.trace_start"() <{level = 10 : i32, message = "bqd,bkd->bqk"}> : () -> ()
    %cst_62 = arith.constant dense<0.000000e+00> : vector<1x128x128xf32>
    %165 = tpu.matmul %158, %161, %cst_62 {dimension_numbers = #tpu.dot_dimension_numbers<[2], [2], [1], [1], [0, 0, 0, 1, 1, 1], [0], [0]>} : vector<1x128x128xbf16>, vector<1x128x128xbf16>, vector<1x128x128xf32> -> vector<1x128x128xf32>
    %cst_63 = arith.constant -1.000000e+30 : f32
    "tpu.trace_stop"() : () -> ()
    %166 = vector.shape_cast %60 : vector<1x1x128xi1> to vector<1x1x128xi1>
    %167 = vector.broadcast %166 : vector<1x1x128xi1> to vector<1x128x128xi1>
    %168 = vector.broadcast %cst_63 : f32 to vector<1x128x128xf32>
    %169 = arith.select %167, %165, %168 : vector<1x128x128xi1>, vector<1x128x128xf32>
    %cst_64 = arith.constant dense<0xFF800000> : vector<1x128xf32>
    %170 = vector.multi_reduction <maximumf>, %169, %cst_64 [2] : vector<1x128x128xf32> to vector<1x128xf32>
    %171 = vector.shape_cast %170 : vector<1x128xf32> to vector<1x128x1xf32>
    %172 = vector.broadcast %171 : vector<1x128x1xf32> to vector<1x128x128xf32>
    %173 = arith.subf %169, %172 : vector<1x128x128xf32>
    %174 = math.exp %173 : vector<1x128x128xf32>
    %cst_65 = arith.constant dense<0.000000e+00> : vector<1x128xf32>
    %175 = vector.multi_reduction <add>, %174, %cst_65 [2] : vector<1x128x128xf32> to vector<1x128xf32>
    %176 = vector.shape_cast %175 : vector<1x128xf32> to vector<1x128x1xf32>
    %177 = tpu.reciprocal %176 {approx = true} : vector<1x128x1xf32> -> vector<1x128x1xf32>
    %178 = vector.broadcast %177 : vector<1x128x1xf32> to vector<1x128x128xf32>
    %179 = arith.mulf %174, %178 : vector<1x128x128xf32>
    %180 = arith.truncf %179 : vector<1x128x128xf32> to vector<1x128x128xbf16>
    "tpu.trace_start"() <{level = 10 : i32, message = "bqk,bkd->bqd"}> : () -> ()
    %cst_66 = arith.constant dense<0.000000e+00> : vector<1x128x128xf32>
    %181 = tpu.matmul %180, %164, %cst_66 {dimension_numbers = #tpu.dot_dimension_numbers<[2], [1], [1], [2], [0, 0, 0, 1, 1, 2], [0], [0]>} : vector<1x128x128xbf16>, vector<1x128x128xbf16>, vector<1x128x128xf32> -> vector<1x128x128xf32>
    "tpu.trace_stop"() : () -> ()
    %182 = vector.shape_cast %181 : vector<1x128x128xf32> to vector<128x128xf32>
    %183 = arith.truncf %182 : vector<128x128xf32> to vector<128x128xbf16>
    %184 = vector.extract_strided_slice %12 {offsets = [384, 0], sizes = [128, 128], strides = [1, 1]} : vector<512x128xbf16> to vector<128x128xbf16>
    %cst_67 = arith.constant dense<0.000000e+00> : vector<128x128xf32>
    %185 = tpu.matmul %183, %184, %cst_67 {dimension_numbers = #tpu.dot_dimension_numbers<[1], [0], [0], [1], [0, 0, 1, 1], [], []>} : vector<128x128xbf16>, vector<128x128xbf16>, vector<128x128xf32> -> vector<128x128xf32>
    %186 = arith.addf %155, %185 : vector<128x128xf32>
    %187 = vector.shape_cast %186 : vector<128x128xf32> to vector<1x128x128xf32>
    %c0_68 = arith.constant 0 : index
    %c0_69 = arith.constant 0 : index
    %c0_70 = arith.constant 0 : index
    %188 = vector.load %arg16[%c0_68, %c0_69, %c0_70] : memref<1x128x128xf32, #tpu.memory_space<vmem>>, vector<1x128x128xf32>
    tpu.vector_store %arg16[%c0_68, %c0_69, %c0_70], %187 {strides = array<i32>} : memref<1x128x128xf32, #tpu.memory_space<vmem>>, vector<1x128x128xf32>,
    %c0_71 = arith.constant 0 : index
    %c0_72 = arith.constant 0 : index
    %c0_73 = arith.constant 0 : index
    %189 = vector.load %arg16[%c0_71, %c0_72, %c0_73] : memref<1x128x128xf32, #tpu.memory_space<vmem>>, vector<1x128x128xf32>
    %190 = vector.shape_cast %189 : vector<1x128x128xf32> to vector<128x128xf32>
    %cst_74 = arith.constant dense<0.000000e+00> : vector<128xf32>
    %191 = vector.multi_reduction <add>, %190, %cst_74 [1] : vector<128x128xf32> to vector<128xf32>
    %192 = vector.shape_cast %191 : vector<128xf32> to vector<128x1xf32>
    %cst_75 = arith.constant 3.125000e-02 : f32
    %193 = vector.broadcast %cst_75 : f32 to vector<128x1xf32>
    %194 = arith.mulf %192, %193 : vector<128x1xf32>
    %195 = arith.mulf %190, %190 : vector<128x128xf32>
    %cst_76 = arith.constant dense<0.000000e+00> : vector<128xf32>
    %196 = vector.multi_reduction <add>, %195, %cst_76 [1] : vector<128x128xf32> to vector<128xf32>
    %197 = vector.shape_cast %196 : vector<128xf32> to vector<128x1xf32>
    %cst_77 = arith.constant 3.125000e-02 : f32
    %198 = vector.broadcast %cst_77 : f32 to vector<128x1xf32>
    %199 = arith.mulf %197, %198 : vector<128x1xf32>
    %200 = vector.broadcast %194 : vector<128x1xf32> to vector<128x128xf32>
    %201 = arith.subf %190, %200 : vector<128x128xf32>
    %202 = arith.mulf %194, %194 : vector<128x1xf32>
    %203 = arith.subf %199, %202 : vector<128x1xf32>
    %cst_78 = arith.constant 9.99999974E-6 : f32
    %204 = vector.broadcast %cst_78 : f32 to vector<128x1xf32>
    %205 = arith.addf %203, %204 : vector<128x1xf32>
    %206 = math.rsqrt %205 : vector<128x1xf32>
    %207 = vector.broadcast %206 : vector<128x1xf32> to vector<128x128xf32>
    %208 = arith.mulf %201, %207 : vector<128x128xf32>
    %209 = vector.broadcast %16 : vector<1x128xf32> to vector<128x128xf32>
    %210 = arith.mulf %208, %209 : vector<128x128xf32>
    %211 = vector.broadcast %18 : vector<1x128xf32> to vector<128x128xf32>
    %212 = arith.addf %210, %211 : vector<128x128xf32>
    %213 = arith.truncf %212 : vector<128x128xf32> to vector<128x128xbf16>
    %cst_79 = arith.constant dense<0.000000e+00> : vector<128x128xf32>
    %214 = tpu.matmul %213, %20, %cst_79 {dimension_numbers = #tpu.dot_dimension_numbers<[1], [0], [0], [1], [0, 0, 1, 1], [], []>} : vector<128x128xbf16>, vector<128x128xbf16>, vector<128x128xf32> -> vector<128x128xf32>
    %215 = vector.broadcast %22 : vector<1x128xf32> to vector<128x128xf32>
    %216 = arith.addf %214, %215 : vector<128x128xf32>
    %cst_80 = arith.constant 0.000000e+00 : f32
    %217 = vector.broadcast %cst_80 : f32 to vector<128x128xf32>
    %218 = arith.maximumf %216, %217 : vector<128x128xf32>
    %219 = arith.truncf %218 : vector<128x128xf32> to vector<128x128xbf16>
    %cst_81 = arith.constant dense<0.000000e+00> : vector<128x128xf32>
    %220 = tpu.matmul %219, %24, %cst_81 {dimension_numbers = #tpu.dot_dimension_numbers<[1], [0], [0], [1], [0, 0, 1, 1], [], []>} : vector<128x128xbf16>, vector<128x128xbf16>, vector<128x128xf32> -> vector<128x128xf32>
    %221 = arith.addf %190, %220 : vector<128x128xf32>
    %222 = vector.broadcast %26 : vector<1x128xf32> to vector<128x128xf32>
    %223 = arith.addf %221, %222 : vector<128x128xf32>
    %224 = vector.shape_cast %223 : vector<128x128xf32> to vector<1x128x128xf32>
    %c0_82 = arith.constant 0 : index
    %c0_83 = arith.constant 0 : index
    %c0_84 = arith.constant 0 : index
    %225 = vector.load %arg16[%c0_82, %c0_83, %c0_84] : memref<1x128x128xf32, #tpu.memory_space<vmem>>, vector<1x128x128xf32>
    tpu.vector_store %arg16[%c0_82, %c0_83, %c0_84], %224 {strides = array<i32>} : memref<1x128x128xf32, #tpu.memory_space<vmem>>, vector<1x128x128xf32>,
    return
  }
  func.func @transform_0(%arg0: i32, %arg1: i32) -> (i32, i32, i32) {
    %c0_i32 = arith.constant 0 : i32
    %c0_i32_0 = arith.constant 0 : i32
    %c0_i32_1 = arith.constant 0 : i32
    return %arg0, %c0_i32, %c0_i32_0 : i32, i32, i32
  }
  func.func @transform_1(%arg0: i32, %arg1: i32) -> (i32, i32) {
    %c0_i32 = arith.constant 0 : i32
    %c0_i32_0 = arith.constant 0 : i32
    %c0_i32_1 = arith.constant 0 : i32
    return %c0_i32, %c0_i32_0 : i32, i32
  }
  func.func @transform_2(%arg0: i32, %arg1: i32) -> (i32, i32, i32) {
    %c0_i32 = arith.constant 0 : i32
    %c0_i32_0 = arith.constant 0 : i32
    %c0_i32_1 = arith.constant 0 : i32
    return %arg1, %c0_i32, %c0_i32_0 : i32, i32, i32
  }
  func.func @transform_3(%arg0: i32, %arg1: i32) -> (i32, i32, i32) {
    %c0_i32 = arith.constant 0 : i32
    %c0_i32_0 = arith.constant 0 : i32
    %c0_i32_1 = arith.constant 0 : i32
    return %arg1, %c0_i32, %c0_i32_0 : i32, i32, i32
  }
  func.func @transform_4(%arg0: i32, %arg1: i32) -> (i32, i32, i32) {
    %c0_i32 = arith.constant 0 : i32
    %c0_i32_0 = arith.constant 0 : i32
    %c0_i32_1 = arith.constant 0 : i32
    return %arg1, %c0_i32, %c0_i32_0 : i32, i32, i32
  }
  func.func @transform_5(%arg0: i32, %arg1: i32) -> (i32, i32, i32) {
    %c0_i32 = arith.constant 0 : i32
    %c0_i32_0 = arith.constant 0 : i32
    %c0_i32_1 = arith.constant 0 : i32
    return %arg1, %c0_i32, %c0_i32_0 : i32, i32, i32
  }
  func.func @transform_6(%arg0: i32, %arg1: i32) -> (i32, i32, i32) {
    %c0_i32 = arith.constant 0 : i32
    %c0_i32_0 = arith.constant 0 : i32
    %c0_i32_1 = arith.constant 0 : i32
    return %arg1, %c0_i32, %c0_i32_0 : i32, i32, i32
  }
  func.func @transform_7(%arg0: i32, %arg1: i32) -> (i32, i32, i32) {
    %c0_i32 = arith.constant 0 : i32
    %c0_i32_0 = arith.constant 0 : i32
    %c0_i32_1 = arith.constant 0 : i32
    return %arg1, %c0_i32, %c0_i32_0 : i32, i32, i32
  }
  func.func @transform_8(%arg0: i32, %arg1: i32) -> (i32, i32, i32) {
    %c0_i32 = arith.constant 0 : i32
    %c0_i32_0 = arith.constant 0 : i32
    %c0_i32_1 = arith.constant 0 : i32
    return %arg1, %c0_i32, %c0_i32_0 : i32, i32, i32
  }
  func.func @transform_9(%arg0: i32, %arg1: i32) -> (i32, i32, i32) {
    %c0_i32 = arith.constant 0 : i32
    %c0_i32_0 = arith.constant 0 : i32
    %c0_i32_1 = arith.constant 0 : i32
    return %arg1, %c0_i32, %c0_i32_0 : i32, i32, i32
  }
  func.func @transform_10(%arg0: i32, %arg1: i32) -> (i32, i32, i32) {
    %c0_i32 = arith.constant 0 : i32
    %c0_i32_0 = arith.constant 0 : i32
    %c0_i32_1 = arith.constant 0 : i32
    return %arg1, %c0_i32, %c0_i32_0 : i32, i32, i32
  }
  func.func @transform_11(%arg0: i32, %arg1: i32) -> (i32, i32, i32) {
    %c0_i32 = arith.constant 0 : i32
    %c0_i32_0 = arith.constant 0 : i32
    %c0_i32_1 = arith.constant 0 : i32
    return %arg1, %c0_i32, %c0_i32_0 : i32, i32, i32
  }
  func.func @transform_12(%arg0: i32, %arg1: i32) -> (i32, i32, i32) {
    %c0_i32 = arith.constant 0 : i32
    %c0_i32_0 = arith.constant 0 : i32
    %c0_i32_1 = arith.constant 0 : i32
    return %arg1, %c0_i32, %c0_i32_0 : i32, i32, i32
  }
  func.func @transform_13(%arg0: i32, %arg1: i32) -> (i32, i32, i32) {
    %c0_i32 = arith.constant 0 : i32
    %c0_i32_0 = arith.constant 0 : i32
    %c0_i32_1 = arith.constant 0 : i32
    return %arg1, %c0_i32, %c0_i32_0 : i32, i32, i32
  }
  func.func @transform_14(%arg0: i32, %arg1: i32) -> (i32, i32, i32) {
    %c0_i32 = arith.constant 0 : i32
    %c0_i32_0 = arith.constant 0 : i32
    %c0_i32_1 = arith.constant 0 : i32
    return %arg0, %c0_i32, %c0_i32_0 : i32, i32, i32
  }
}

</mosaic_0001>

<llo_original>
// kernel: tpu_custom_call.1
$region0: #{tpu_custom_call.1}
  #allocation0 [shape = 'u32[]', space=smem, size = 0x4, offset = 0x4, fixed_abs, tag = 'smem constant byte address 0x4 - core index']
  #allocation1 [shape = 'u32[144,128]{1,0:T(1,128)}', space=vmem, size = 0x12000, scoped, tag = 'internal scratch']
  %s0 = inlined_call_operand.hbm [shape: f32[2,128,128], index: 0, kind: input, shape index: {}]
  %s1 = inlined_call_operand.hbm [shape: f32[128,128], index: 1, kind: input, shape index: {}]
  %s2 = inlined_call_operand.vmem [shape: f32[2,1,128], index: 2, kind: input, shape index: {}]
  %s3 = inlined_call_operand.vmem [shape: f32[2,1,128], index: 3, kind: input, shape index: {}]
  %s4 = inlined_call_operand.hbm [shape: bf16[2,128,1536], index: 4, kind: input, shape index: {}]
  %s5 = inlined_call_operand.hbm [shape: f32[2,1,1536], index: 5, kind: input, shape index: {}]
  %s6 = inlined_call_operand.hbm [shape: bf16[2,512,128], index: 6, kind: input, shape index: {}]
  %s7 = inlined_call_operand.vmem [shape: f32[2,1,128], index: 7, kind: input, shape index: {}]
  %s8 = inlined_call_operand.vmem [shape: f32[2,1,128], index: 8, kind: input, shape index: {}]
  %s9 = inlined_call_operand.vmem [shape: f32[2,1,128], index: 9, kind: input, shape index: {}]
  %s10 = inlined_call_operand.hbm [shape: bf16[2,128,128], index: 10, kind: input, shape index: {}]
  %s11 = inlined_call_operand.vmem [shape: f32[2,1,128], index: 11, kind: input, shape index: {}]
  %s12 = inlined_call_operand.hbm [shape: bf16[2,128,128], index: 12, kind: input, shape index: {}]
  %s13 = inlined_call_operand.vmem [shape: f32[2,1,128], index: 13, kind: input, shape index: {}]
  %s14 = inlined_call_operand.hbm [shape: f32[2,128,128], index: 14, kind: output, shape index: {}]
  %s15 = sld [smem:[#allocation0]]
  $region121: #{tpu_custom_call.1} parent=0
    _
  %s17 = ssub.s32 1, %s15
  %s18 = scalar_select 0, %s17, %s15
  $region1: #{tpu_custom_call.1} parent=0
    #allocation2 [shape = 'u8[131072]{0}', space=vmem, size = 0x20000, scoped, tag = 'input window, operand 0']
    #allocation3 [shape = 's32[2]{0}', space=sflag, size = 0x8, scoped, tag = 'scoped memory for tpu_custom_call.1']
    #allocation4 [shape = 's32[2]{0}', space=sflag, size = 0x8, scoped, tag = 'scoped memory for tpu_custom_call.1']
    #allocation5 [shape = 'u8[65536]{0}', space=vmem, size = 0x10000, scoped, tag = 'input window, operand 1, single buffered']
    #allocation6 [shape = 's32[1]{0}', space=sflag, size = 0x4, scoped, tag = 'scoped memory for tpu_custom_call.1']
    #allocation7 [shape = 'u8[786432]{0}', space=vmem, size = 0xc0000, scoped, tag = 'input window, operand 4']
    #allocation8 [shape = 'u8[12288]{0}', space=vmem, size = 0x3000, scoped, tag = 'input window, operand 5']
    #allocation9 [shape = 'u8[262144]{0}', space=vmem, size = 0x40000, scoped, tag = 'input window, operand 6']
    #allocation10 [shape = 'u8[65536]{0}', space=vmem, size = 0x10000, scoped, tag = 'input window, operand 10']
    #allocation11 [shape = 'u8[65536]{0}', space=vmem, size = 0x10000, scoped, tag = 'input window, operand 12']
    #allocation12 [shape = 'u8[131072]{0}', space=vmem, size = 0x20000, scoped, tag = 'output window, operand 0']
    %19 = vsyncpa [#allocation3], 0
    %s20 = scalar_lea.sflag [#allocation3], 1
    %21 = vsyncpa %s20, 0
    %22 = vsyncpa [#allocation6], 0
    %23 = vsyncpa [#allocation4], 0
    %s24 = scalar_lea.sflag [#allocation4], 1
    %25 = vsyncpa %s24, 0
    loop: start=0, step=1, limit=6
    $region2: #{tpu_custom_call.1} parent=1 // loop_pre_header
      _
    $region3: #{tpu_custom_call.1} parent=1 // loop_header
      %s27 = sphi 0, %s31
      %p28 = scmp.ge.s32.totalorder %s27, 6
      %s34 = sphi 0, %s46
      %s35 = sphi 0, %s42
      %s36 = sphi 0, %s34
      %s37 = sphi 0, %s35
      %s38 = sphi 0, %s36
      %s39 = sphi 0, %s37
      %s49 = sphi 0, %s51
      %s52 = sphi 0, %s49
      %s53 = sphi 0, %s52
      %s69 = sphi 0, %s53
      %s73 = sphi 0, %s73
      %s75 = sphi 0, %s73
      %s76 = sphi 0, %s75
      %s90 = sphi 0, %s76
      %s96 = sphi 0, %s98
      %s99 = sphi 0, %s96
      %s100 = sphi 0, %s99
      %s116 = sphi 0, %s100
      %s122 = sphi 0, %s124
      %s125 = sphi 0, %s122
      %s126 = sphi 0, %s125
      %s142 = sphi 0, %s126
      %s148 = sphi 0, %s150
      %s151 = sphi 0, %s148
      %s152 = sphi 0, %s151
      %s168 = sphi 0, %s152
      %s174 = sphi 0, %s176
      %s177 = sphi 0, %s174
      %s178 = sphi 0, %s177
      %s194 = sphi 0, %s178
      %s200 = sphi 0, %s202
      %s203 = sphi 0, %s200
      %s204 = sphi 0, %s203
      %s220 = sphi 0, %s204
      %s226 = sphi 0, %s228
      %s229 = sphi 0, %s226
      %s230 = sphi 0, %s229
      %s246 = sphi 0, %s230
      %s252 = sphi 0, %s254
      %s255 = sphi 0, %s252
      %s256 = sphi 0, %s255
      %s272 = sphi 0, %s256
      %s278 = sphi 0, %s280
      %s281 = sphi 0, %s278
      %s282 = sphi 0, %s281
      %s298 = sphi 0, %s282
      %s304 = sphi 0, %s306
      %s307 = sphi 0, %s304
      %s308 = sphi 0, %s307
      %s324 = sphi 0, %s308
      %s330 = sphi 0, %s332
      %s333 = sphi 0, %s330
      %s334 = sphi 0, %s333
      %s350 = sphi 0, %s334
      %s356 = sphi 0, %s358
      %s359 = sphi 0, %s356
      %s360 = sphi 0, %s359
      %s376 = sphi 0, %s360
      %s382 = sphi 0, %s384
      %s385 = sphi 0, %s382
      %s386 = sphi 0, %s385
      %s402 = sphi 0, %s386
      %s408 = sphi 0, %s410
      %s411 = sphi 0, %s408
      %s412 = sphi 0, %s411
      %s428 = sphi 0, %s412
    $region4: #{tpu_custom_call.1} parent=1 // loop_header_branch
      %30 = sbr.rel (%p28) target = $region8
    $region5: #{tpu_custom_call.1} parent=1 // loop_body
      %s32 = ssub.s32 %s27, 1
      %s33 = ssub.s32 %s27, 2
      %s40 = sadd.s32 1, %s35
      %p41 = scmp.ge.s32.totalorder %s40, 2
      %s42 = scalar_select %p41, 0, %s40
      %s43 = sadd.s32 1, %s34
      %s44 = scalar_select %p41, %s43, %s34
      %p45 = scmp.ge.s32.totalorder %s44, 2
      %s46 = scalar_select %p45, 0, %s44
      %s47 = ssub.s32 %s34, %s46
      %p48 = scmp.eq.s32.totalorder %s47, 0
      %s50 = sadd.s32 %s49, 1
      %s51 = scalar_select %p48, %s49, %s50
      %p54 = pneg %p48
      %p55 = scmp.eq.s32.totalorder %s27, 3
      %p56 = por %p54, %p55
      %p57 = scmp.ne.s32.totalorder %s49, %s52
      %p58 = scmp.eq.s32.totalorder %s27, 0
      %p59 = por %p57, %p58
      %p60 = scmp.ne.s32.totalorder %s49, %s52
      %p61 = scmp.eq.s32.totalorder %s32, 3
      %p62 = por %p60, %p61
      %p63 = scmp.ne.s32.totalorder %s52, %s53
      %p64 = scmp.eq.s32.totalorder %s32, 0
      %p65 = por %p63, %p64
      %p66 = scmp.ne.s32.totalorder %s52, %s53
      %p67 = scmp.eq.s32.totalorder %s33, 3
      %p68 = por %p66, %p67
      %p70 = scmp.ne.s32.totalorder %s53, %s69
      %p71 = scmp.eq.s32.totalorder %s33, 0
      %p72 = por %p70, %p71
      %s74 = sadd.s32 %s73, 1
      %p77 = scmp.eq.s32.totalorder %s27, 3
      %p78 = scmp.ne.s32.totalorder %s73, %s75
      %p79 = scmp.eq.s32.totalorder %s27, 0
      %p80 = por %p78, %p79
      %p81 = scmp.ne.s32.totalorder %s73, %s75
      %p82 = scmp.eq.s32.totalorder %s32, 3
      %p83 = por %p81, %p82
      %p84 = scmp.ne.s32.totalorder %s75, %s76
      %p85 = scmp.eq.s32.totalorder %s32, 0
      %p86 = por %p84, %p85
      %p87 = scmp.ne.s32.totalorder %s75, %s76
      %p88 = scmp.eq.s32.totalorder %s33, 3
      %p89 = por %p87, %p88
      %p91 = scmp.ne.s32.totalorder %s76, %s90
      %p92 = scmp.eq.s32.totalorder %s33, 0
      %p93 = por %p91, %p92
      %s94 = ssub.s32 %s35, %s42
      %p95 = scmp.eq.s32.totalorder %s94, 0
      %s97 = sadd.s32 %s96, 1
      %s98 = scalar_select %p95, %s96, %s97
      %p101 = pneg %p95
      %p102 = scmp.eq.s32.totalorder %s27, 3
      %p103 = por %p101, %p102
      %p104 = scmp.ne.s32.totalorder %s96, %s99
      %p105 = scmp.eq.s32.totalorder %s27, 0
      %p106 = por %p104, %p105
      %p107 = scmp.ne.s32.totalorder %s96, %s99
      %p108 = scmp.eq.s32.totalorder %s32, 3
      %p109 = por %p107, %p108
      %p110 = scmp.ne.s32.totalorder %s99, %s100
      %p111 = scmp.eq.s32.totalorder %s32, 0
      %p112 = por %p110, %p111
      %p113 = scmp.ne.s32.totalorder %s99, %s100
      %p114 = scmp.eq.s32.totalorder %s33, 3
      %p115 = por %p113, %p114
      %p117 = scmp.ne.s32.totalorder %s100, %s116
      %p118 = scmp.eq.s32.totalorder %s33, 0
      %p119 = por %p117, %p118
      %s120 = ssub.s32 %s35, %s42
      %p121 = scmp.eq.s32.totalorder %s120, 0
      %s123 = sadd.s32 %s122, 1
      %s124 = scalar_select %p121, %s122, %s123
      %p127 = pneg %p121
      %p128 = scmp.eq.s32.totalorder %s27, 3
      %p129 = por %p127, %p128
      %p130 = scmp.ne.s32.totalorder %s122, %s125
      %p131 = scmp.eq.s32.totalorder %s27, 0
      %p132 = por %p130, %p131
      %p133 = scmp.ne.s32.totalorder %s122, %s125
      %p134 = scmp.eq.s32.totalorder %s32, 3
      %p135 = por %p133, %p134
      %p136 = scmp.ne.s32.totalorder %s125, %s126
      %p137 = scmp.eq.s32.totalorder %s32, 0
      %p138 = por %p136, %p137
      %p139 = scmp.ne.s32.totalorder %s125, %s126
      %p140 = scmp.eq.s32.totalorder %s33, 3
      %p141 = por %p139, %p140
      %p143 = scmp.ne.s32.totalorder %s126, %s142
      %p144 = scmp.eq.s32.totalorder %s33, 0
      %p145 = por %p143, %p144
      %s146 = ssub.s32 %s35, %s42
      %p147 = scmp.eq.s32.totalorder %s146, 0
      %s149 = sadd.s32 %s148, 1
      %s150 = scalar_select %p147, %s148, %s149
      %p153 = pneg %p147
      %p154 = scmp.eq.s32.totalorder %s27, 3
      %p155 = por %p153, %p154
      %p156 = scmp.ne.s32.totalorder %s148, %s151
      %p157 = scmp.eq.s32.totalorder %s27, 0
      %p158 = por %p156, %p157
      %p159 = scmp.ne.s32.totalorder %s148, %s151
      %p160 = scmp.eq.s32.totalorder %s32, 3
      %p161 = por %p159, %p160
      %p162 = scmp.ne.s32.totalorder %s151, %s152
      %p163 = scmp.eq.s32.totalorder %s32, 0
      %p164 = por %p162, %p163
      %p165 = scmp.ne.s32.totalorder %s151, %s152
      %p166 = scmp.eq.s32.totalorder %s33, 3
      %p167 = por %p165, %p166
      %p169 = scmp.ne.s32.totalorder %s152, %s168
      %p170 = scmp.eq.s32.totalorder %s33, 0
      %p171 = por %p169, %p170
      %s172 = ssub.s32 %s35, %s42
      %p173 = scmp.eq.s32.totalorder %s172, 0
      %s175 = sadd.s32 %s174, 1
      %s176 = scalar_select %p173, %s174, %s175
      %p179 = pneg %p173
      %p180 = scmp.eq.s32.totalorder %s27, 3
      %p181 = por %p179, %p180
      %p182 = scmp.ne.s32.totalorder %s174, %s177
      %p183 = scmp.eq.s32.totalorder %s27, 0
      %p184 = por %p182, %p183
      %p185 = scmp.ne.s32.totalorder %s174, %s177
      %p186 = scmp.eq.s32.totalorder %s32, 3
      %p187 = por %p185, %p186
      %p188 = scmp.ne.s32.totalorder %s177, %s178
      %p189 = scmp.eq.s32.totalorder %s32, 0
      %p190 = por %p188, %p189
      %p191 = scmp.ne.s32.totalorder %s177, %s178
      %p192 = scmp.eq.s32.totalorder %s33, 3
      %p193 = por %p191, %p192
      %p195 = scmp.ne.s32.totalorder %s178, %s194
      %p196 = scmp.eq.s32.totalorder %s33, 0
      %p197 = por %p195, %p196
      %s198 = ssub.s32 %s35, %s42
      %p199 = scmp.eq.s32.totalorder %s198, 0
      %s201 = sadd.s32 %s200, 1
      %s202 = scalar_select %p199, %s200, %s201
      %p205 = pneg %p199
      %p206 = scmp.eq.s32.totalorder %s27, 3
      %p207 = por %p205, %p206
      %p208 = scmp.ne.s32.totalorder %s200, %s203
      %p209 = scmp.eq.s32.totalorder %s27, 0
      %p210 = por %p208, %p209
      %p211 = scmp.ne.s32.totalorder %s200, %s203
      %p212 = scmp.eq.s32.totalorder %s32, 3
      %p213 = por %p211, %p212
      %p214 = scmp.ne.s32.totalorder %s203, %s204
      %p215 = scmp.eq.s32.totalorder %s32, 0
      %p216 = por %p214, %p215
      %p217 = scmp.ne.s32.totalorder %s203, %s204
      %p218 = scmp.eq.s32.totalorder %s33, 3
      %p219 = por %p217, %p218
      %p221 = scmp.ne.s32.totalorder %s204, %s220
      %p222 = scmp.eq.s32.totalorder %s33, 0
      %p223 = por %p221, %p222
      %s224 = ssub.s32 %s35, %s42
      %p225 = scmp.eq.s32.totalorder %s224, 0
      %s227 = sadd.s32 %s226, 1
      %s228 = scalar_select %p225, %s226, %s227
      %p231 = pneg %p225
      %p232 = scmp.eq.s32.totalorder %s27, 3
      %p233 = por %p231, %p232
      %p234 = scmp.ne.s32.totalorder %s226, %s229
      %p235 = scmp.eq.s32.totalorder %s27, 0
      %p236 = por %p234, %p235
      %p237 = scmp.ne.s32.totalorder %s226, %s229
      %p238 = scmp.eq.s32.totalorder %s32, 3
      %p239 = por %p237, %p238
      %p240 = scmp.ne.s32.totalorder %s229, %s230
      %p241 = scmp.eq.s32.totalorder %s32, 0
      %p242 = por %p240, %p241
      %p243 = scmp.ne.s32.totalorder %s229, %s230
      %p244 = scmp.eq.s32.totalorder %s33, 3
      %p245 = por %p243, %p244
      %p247 = scmp.ne.s32.totalorder %s230, %s246
      %p248 = scmp.eq.s32.totalorder %s33, 0
      %p249 = por %p247, %p248
      %s250 = ssub.s32 %s35, %s42
      %p251 = scmp.eq.s32.totalorder %s250, 0
      %s253 = sadd.s32 %s252, 1
      %s254 = scalar_select %p251, %s252, %s253
      %p257 = pneg %p251
      %p258 = scmp.eq.s32.totalorder %s27, 3
      %p259 = por %p257, %p258
      %p260 = scmp.ne.s32.totalorder %s252, %s255
      %p261 = scmp.eq.s32.totalorder %s27, 0
      %p262 = por %p260, %p261
      %p263 = scmp.ne.s32.totalorder %s252, %s255
      %p264 = scmp.eq.s32.totalorder %s32, 3
      %p265 = por %p263, %p264
      %p266 = scmp.ne.s32.totalorder %s255, %s256
      %p267 = scmp.eq.s32.totalorder %s32, 0
      %p268 = por %p266, %p267
      %p269 = scmp.ne.s32.totalorder %s255, %s256
      %p270 = scmp.eq.s32.totalorder %s33, 3
      %p271 = por %p269, %p270
      %p273 = scmp.ne.s32.totalorder %s256, %s272
      %p274 = scmp.eq.s32.totalorder %s33, 0
      %p275 = por %p273, %p274
      %s276 = ssub.s32 %s35, %s42
      %p277 = scmp.eq.s32.totalorder %s276, 0
      %s279 = sadd.s32 %s278, 1
      %s280 = scalar_select %p277, %s278, %s279
      %p283 = pneg %p277
      %p284 = scmp.eq.s32.totalorder %s27, 3
      %p285 = por %p283, %p284
      %p286 = scmp.ne.s32.totalorder %s278, %s281
      %p287 = scmp.eq.s32.totalorder %s27, 0
      %p288 = por %p286, %p287
      %p289 = scmp.ne.s32.totalorder %s278, %s281
      %p290 = scmp.eq.s32.totalorder %s32, 3
      %p291 = por %p289, %p290
      %p292 = scmp.ne.s32.totalorder %s281, %s282
      %p293 = scmp.eq.s32.totalorder %s32, 0
      %p294 = por %p292, %p293
      %p295 = scmp.ne.s32.totalorder %s281, %s282
      %p296 = scmp.eq.s32.totalorder %s33, 3
      %p297 = por %p295, %p296
      %p299 = scmp.ne.s32.totalorder %s282, %s298
      %p300 = scmp.eq.s32.totalorder %s33, 0
      %p301 = por %p299, %p300
      %s302 = ssub.s32 %s35, %s42
      %p303 = scmp.eq.s32.totalorder %s302, 0
      %s305 = sadd.s32 %s304, 1
      %s306 = scalar_select %p303, %s304, %s305
      %p309 = pneg %p303
      %p310 = scmp.eq.s32.totalorder %s27, 3
      %p311 = por %p309, %p310
      %p312 = scmp.ne.s32.totalorder %s304, %s307
      %p313 = scmp.eq.s32.totalorder %s27, 0
      %p314 = por %p312, %p313
      %p315 = scmp.ne.s32.totalorder %s304, %s307
      %p316 = scmp.eq.s32.totalorder %s32, 3
      %p317 = por %p315, %p316
      %p318 = scmp.ne.s32.totalorder %s307, %s308
      %p319 = scmp.eq.s32.totalorder %s32, 0
      %p320 = por %p318, %p319
      %p321 = scmp.ne.s32.totalorder %s307, %s308
      %p322 = scmp.eq.s32.totalorder %s33, 3
      %p323 = por %p321, %p322
      %p325 = scmp.ne.s32.totalorder %s308, %s324
      %p326 = scmp.eq.s32.totalorder %s33, 0
      %p327 = por %p325, %p326
      %s328 = ssub.s32 %s35, %s42
      %p329 = scmp.eq.s32.totalorder %s328, 0
      %s331 = sadd.s32 %s330, 1
      %s332 = scalar_select %p329, %s330, %s331
      %p335 = pneg %p329
      %p336 = scmp.eq.s32.totalorder %s27, 3
      %p337 = por %p335, %p336
      %p338 = scmp.ne.s32.totalorder %s330, %s333
      %p339 = scmp.eq.s32.totalorder %s27, 0
      %p340 = por %p338, %p339
      %p341 = scmp.ne.s32.totalorder %s330, %s333
      %p342 = scmp.eq.s32.totalorder %s32, 3
      %p343 = por %p341, %p342
      %p344 = scmp.ne.s32.totalorder %s333, %s334
      %p345 = scmp.eq.s32.totalorder %s32, 0
      %p346 = por %p344, %p345
      %p347 = scmp.ne.s32.totalorder %s333, %s334
      %p348 = scmp.eq.s32.totalorder %s33, 3
      %p349 = por %p347, %p348
      %p351 = scmp.ne.s32.totalorder %s334, %s350
      %p352 = scmp.eq.s32.totalorder %s33, 0
      %p353 = por %p351, %p352
      %s354 = ssub.s32 %s35, %s42
      %p355 = scmp.eq.s32.totalorder %s354, 0
      %s357 = sadd.s32 %s356, 1
      %s358 = scalar_select %p355, %s356, %s357
      %p361 = pneg %p355
      %p362 = scmp.eq.s32.totalorder %s27, 3
      %p363 = por %p361, %p362
      %p364 = scmp.ne.s32.totalorder %s356, %s359
      %p365 = scmp.eq.s32.totalorder %s27, 0
      %p366 = por %p364, %p365
      %p367 = scmp.ne.s32.totalorder %s356, %s359
      %p368 = scmp.eq.s32.totalorder %s32, 3
      %p369 = por %p367, %p368
      %p370 = scmp.ne.s32.totalorder %s359, %s360
      %p371 = scmp.eq.s32.totalorder %s32, 0
      %p372 = por %p370, %p371
      %p373 = scmp.ne.s32.totalorder %s359, %s360
      %p374 = scmp.eq.s32.totalorder %s33, 3
      %p375 = por %p373, %p374
      %p377 = scmp.ne.s32.totalorder %s360, %s376
      %p378 = scmp.eq.s32.totalorder %s33, 0
      %p379 = por %p377, %p378
      %s380 = ssub.s32 %s35, %s42
      %p381 = scmp.eq.s32.totalorder %s380, 0
      %s383 = sadd.s32 %s382, 1
      %s384 = scalar_select %p381, %s382, %s383
      %p387 = pneg %p381
      %p388 = scmp.eq.s32.totalorder %s27, 3
      %p389 = por %p387, %p388
      %p390 = scmp.ne.s32.totalorder %s382, %s385
      %p391 = scmp.eq.s32.totalorder %s27, 0
      %p392 = por %p390, %p391
      %p393 = scmp.ne.s32.totalorder %s382, %s385
      %p394 = scmp.eq.s32.totalorder %s32, 3
      %p395 = por %p393, %p394
      %p396 = scmp.ne.s32.totalorder %s385, %s386
      %p397 = scmp.eq.s32.totalorder %s32, 0
      %p398 = por %p396, %p397
      %p399 = scmp.ne.s32.totalorder %s385, %s386
      %p400 = scmp.eq.s32.totalorder %s33, 3
      %p401 = por %p399, %p400
      %p403 = scmp.ne.s32.totalorder %s386, %s402
      %p404 = scmp.eq.s32.totalorder %s33, 0
      %p405 = por %p403, %p404
      %s406 = ssub.s32 %s34, %s46
      %p407 = scmp.eq.s32.totalorder %s406, 0
      %s409 = sadd.s32 %s408, 1
      %s410 = scalar_select %p407, %s408, %s409
      %p413 = pneg %p407
      %p414 = scmp.eq.s32.totalorder %s27, 3
      %p415 = por %p413, %p414
      %p416 = scmp.ne.s32.totalorder %s408, %s411
      %p417 = scmp.eq.s32.totalorder %s27, 0
      %p418 = por %p416, %p417
      %p419 = scmp.ne.s32.totalorder %s408, %s411
      %p420 = scmp.eq.s32.totalorder %s32, 3
      %p421 = por %p419, %p420
      %p422 = scmp.ne.s32.totalorder %s411, %s412
      %p423 = scmp.eq.s32.totalorder %s32, 0
      %p424 = por %p422, %p423
      %p425 = scmp.ne.s32.totalorder %s411, %s412
      %p426 = scmp.eq.s32.totalorder %s33, 3
      %p427 = por %p425, %p426
      %p429 = scmp.ne.s32.totalorder %s412, %s428
      %p430 = scmp.eq.s32.totalorder %s33, 0
      %p431 = por %p429, %p430
      %p432 = scmp.le.s32.totalorder 1, %s27
      %p433 = scmp.lt.s32.totalorder %s27, 5
      %p434 = pnand %p432, %p433
      %p435 = pneg %p434
      // Predicated region
      $region9: #{tpu_custom_call.1} parent=5 // pred_check
        _
      $region10: #{tpu_custom_call.1} parent=5 // pred_check_branch
        %437 = sbr.rel (%p434) target = $region12
      $region11: #{tpu_custom_call.1} parent=5 // pred_region
        %s438 = ssub.s32 %s27, 1
        // Predicated region
        $region13: #{tpu_custom_call.1} parent=11 // pred_check
          %p439 = pneg %p86
        $region14: #{tpu_custom_call.1} parent=11 // pred_check_branch
          %441 = sbr.rel (%p439) target = $region16
        $region15: #{tpu_custom_call.1} parent=11 // pred_region
          %s443 = ssub.s32 2048, 2048
          %444 = vsyncadd [#allocation6], %s443
          %s445 = sshll.u32 [#allocation5], 4
          %s446 = int_to_ptr.vmem [resolvable:$true] %s445
          %451 = dma.hbm_to_vmem [thread:$0]  %s1, 2048, %s446, [#allocation6], 128, 128, 8
        $region16: #{tpu_custom_call.1} parent=11 // pred_fallthru
          _
      $region12: #{tpu_custom_call.1} parent=5 // pred_fallthru
        _
      %p452 = scmp.lt.s32.totalorder %s27, 4
      // Predicated region
      $region17: #{tpu_custom_call.1} parent=5 // pred_check
        %p453 = pneg %p452
      $region18: #{tpu_custom_call.1} parent=5 // pred_check_branch
        %455 = sbr.rel (%p453) target = $region20
      $region19: #{tpu_custom_call.1} parent=5 // pred_region
        // Predicated region
        $region21: #{tpu_custom_call.1} parent=19 // pred_check
          %p456 = pneg %p59
        $region22: #{tpu_custom_call.1} parent=19 // pred_check_branch
          %458 = sbr.rel (%p456) target = $region24
        $region23: #{tpu_custom_call.1} parent=19 // pred_region
          %s459 = sand.u32 %s27, 1
          %s460 = scalar_lea.sflag [#allocation3], %s459
          %s461 = sand.u32 %s49, 1
          %s462 = smul.addr %s461, 128
          %s463 = scalar_lea.vmem [#allocation2], %s462
          %s465 = ssub.s32 2048, 2048
          %466 = vsyncadd %s460, %s465
          %s467 = smul.addr %s34, 16
          %s468 = smul.addr %s467, 128
          %s469 = scalar_lea.hbm %s0, %s468
          %s470 = sshll.u32 %s463, 4
          %s471 = int_to_ptr.vmem [resolvable:$true] %s470
          %476 = dma.hbm_to_vmem [thread:$0]  %s469, 2048, %s471, %s460, 128, 128, 8
        $region24: #{tpu_custom_call.1} parent=19 // pred_fallthru
          _
        // Predicated region
        $region25: #{tpu_custom_call.1} parent=19 // pred_check
          %p477 = pneg %p106
        $region26: #{tpu_custom_call.1} parent=19 // pred_check_branch
          %479 = sbr.rel (%p477) target = $region28
        $region27: #{tpu_custom_call.1} parent=19 // pred_region
          %p480 = scmp.lt.s32.totalorder %s35, 1
          %s481 = scalar_select %p480, %s35, 1
          %s482 = scalar_lea.vmem %s2, %s481
        $region28: #{tpu_custom_call.1} parent=19 // pred_fallthru
          _
        // Predicated region
        $region29: #{tpu_custom_call.1} parent=19 // pred_check
          %p483 = pneg %p132
        $region30: #{tpu_custom_call.1} parent=19 // pred_check_branch
          %485 = sbr.rel (%p483) target = $region32
        $region31: #{tpu_custom_call.1} parent=19 // pred_region
          %p486 = scmp.lt.s32.totalorder %s35, 1
          %s487 = scalar_select %p486, %s35, 1
          %s488 = scalar_lea.vmem %s3, %s487
        $region32: #{tpu_custom_call.1} parent=19 // pred_fallthru
          _
        // Predicated region
        $region33: #{tpu_custom_call.1} parent=19 // pred_check
          %p489 = pneg %p158
        $region34: #{tpu_custom_call.1} parent=19 // pred_check_branch
          %491 = sbr.rel (%p489) target = $region36
        $region35: #{tpu_custom_call.1} parent=19 // pred_region
          %s492 = sand.u32 %s27, 1
          %s493 = scalar_lea.sflag [#allocation3], %s492
          %s494 = sand.u32 %s148, 1
          %s495 = smul.addr %s494, 768
          %s496 = scalar_lea.vmem [#allocation7], %s495
          %s498 = ssub.s32 12288, 12288
          %499 = vsyncadd %s493, %s498
          %s500 = smul.addr %s35, 192
          %s501 = smul.addr %s500, 64
          %s502 = scalar_lea.hbm %s4, %s501
          %s503 = sshll.u32 %s496, 4
          %s504 = int_to_ptr.vmem [resolvable:$true] %s503
          %509 = dma.hbm_to_vmem [thread:$0]  %s502, 12288, %s504, %s493, 768, 768, 48
        $region36: #{tpu_custom_call.1} parent=19 // pred_fallthru
          _
        // Predicated region
        $region37: #{tpu_custom_call.1} parent=19 // pred_check
          %p510 = pneg %p184
        $region38: #{tpu_custom_call.1} parent=19 // pred_check_branch
          %512 = sbr.rel (%p510) target = $region40
        $region39: #{tpu_custom_call.1} parent=19 // pred_region
          %s513 = sand.u32 %s27, 1
          %s514 = scalar_lea.sflag [#allocation3], %s513
          %s515 = sand.u32 %s174, 1
          %s516 = smul.addr %s515, 12
          %s517 = scalar_lea.vmem [#allocation8], %s516
          %s519 = ssub.s32 192, 192
          %520 = vsyncadd %s514, %s519
          %s521 = smul.addr %s35, 12
          %s522 = smul.addr %s521, 16
          %s523 = scalar_lea.hbm %s5, %s522
          %s525 = sshll.u32 %s517, 4
          %s526 = int_to_ptr.vmem [resolvable:$true] %s525
          %528 = dma.hbm_to_vmem [thread:$0]  %s523, 192, %s526, %s514
        $region40: #{tpu_custom_call.1} parent=19 // pred_fallthru
          _
        // Predicated region
        $region41: #{tpu_custom_call.1} parent=19 // pred_check
          %p529 = pneg %p210
        $region42: #{tpu_custom_call.1} parent=19 // pred_check_branch
          %531 = sbr.rel (%p529) target = $region44
        $region43: #{tpu_custom_call.1} parent=19 // pred_region
          %s532 = sand.u32 %s27, 1
          %s533 = scalar_lea.sflag [#allocation3], %s532
          %s534 = sand.u32 %s200, 1
          %s535 = smul.addr %s534, 256
          %s536 = scalar_lea.vmem [#allocation9], %s535
          %s538 = ssub.s32 4096, 4096
          %539 = vsyncadd %s533, %s538
          %s540 = smul.addr %s35, 64
          %s541 = smul.addr %s540, 64
          %s542 = scalar_lea.hbm %s6, %s541
          %s543 = sshll.u32 %s536, 4
          %s544 = int_to_ptr.vmem [resolvable:$true] %s543
          %549 = dma.hbm_to_vmem [thread:$0]  %s542, 4096, %s544, %s533, 64, 64, 4
        $region44: #{tpu_custom_call.1} parent=19 // pred_fallthru
          _
        // Predicated region
        $region45: #{tpu_custom_call.1} parent=19 // pred_check
          %p550 = pneg %p236
        $region46: #{tpu_custom_call.1} parent=19 // pred_check_branch
          %552 = sbr.rel (%p550) target = $region48
        $region47: #{tpu_custom_call.1} parent=19 // pred_region
          %p553 = scmp.lt.s32.totalorder %s35, 1
          %s554 = scalar_select %p553, %s35, 1
          %s555 = scalar_lea.vmem %s7, %s554
        $region48: #{tpu_custom_call.1} parent=19 // pred_fallthru
          _
        // Predicated region
        $region49: #{tpu_custom_call.1} parent=19 // pred_check
          %p556 = pneg %p262
        $region50: #{tpu_custom_call.1} parent=19 // pred_check_branch
          %558 = sbr.rel (%p556) target = $region52
        $region51: #{tpu_custom_call.1} parent=19 // pred_region
          %p559 = scmp.lt.s32.totalorder %s35, 1
          %s560 = scalar_select %p559, %s35, 1
          %s561 = scalar_lea.vmem %s8, %s560
        $region52: #{tpu_custom_call.1} parent=19 // pred_fallthru
          _
        // Predicated region
        $region53: #{tpu_custom_call.1} parent=19 // pred_check
          %p562 = pneg %p288
        $region54: #{tpu_custom_call.1} parent=19 // pred_check_branch
          %564 = sbr.rel (%p562) target = $region56
        $region55: #{tpu_custom_call.1} parent=19 // pred_region
          %p565 = scmp.lt.s32.totalorder %s35, 1
          %s566 = scalar_select %p565, %s35, 1
          %s567 = scalar_lea.vmem %s9, %s566
        $region56: #{tpu_custom_call.1} parent=19 // pred_fallthru
          _
        // Predicated region
        $region57: #{tpu_custom_call.1} parent=19 // pred_check
          %p568 = pneg %p314
        $region58: #{tpu_custom_call.1} parent=19 // pred_check_branch
          %570 = sbr.rel (%p568) target = $region60
        $region59: #{tpu_custom_call.1} parent=19 // pred_region
          %s571 = sand.u32 %s27, 1
          %s572 = scalar_lea.sflag [#allocation3], %s571
          %s573 = sand.u32 %s304, 1
          %s574 = smul.addr %s573, 64
          %s575 = scalar_lea.vmem [#allocation10], %s574
          %s577 = ssub.s32 1024, 1024
          %578 = vsyncadd %s572, %s577
          %s579 = smul.addr %s35, 16
          %s580 = smul.addr %s579, 64
          %s581 = scalar_lea.hbm %s10, %s580
          %s582 = sshll.u32 %s575, 4
          %s583 = int_to_ptr.vmem [resolvable:$true] %s582
          %588 = dma.hbm_to_vmem [thread:$0]  %s581, 1024, %s583, %s572, 64, 64, 4
        $region60: #{tpu_custom_call.1} parent=19 // pred_fallthru
          _
        // Predicated region
        $region61: #{tpu_custom_call.1} parent=19 // pred_check
          %p589 = pneg %p340
        $region62: #{tpu_custom_call.1} parent=19 // pred_check_branch
          %591 = sbr.rel (%p589) target = $region64
        $region63: #{tpu_custom_call.1} parent=19 // pred_region
          %p592 = scmp.lt.s32.totalorder %s35, 1
          %s593 = scalar_select %p592, %s35, 1
          %s594 = scalar_lea.vmem %s11, %s593
        $region64: #{tpu_custom_call.1} parent=19 // pred_fallthru
          _
        // Predicated region
        $region65: #{tpu_custom_call.1} parent=19 // pred_check
          %p595 = pneg %p366
        $region66: #{tpu_custom_call.1} parent=19 // pred_check_branch
          %597 = sbr.rel (%p595) target = $region68
        $region67: #{tpu_custom_call.1} parent=19 // pred_region
          %s598 = sand.u32 %s27, 1
          %s599 = scalar_lea.sflag [#allocation3], %s598
          %s600 = sand.u32 %s356, 1
          %s601 = smul.addr %s600, 64
          %s602 = scalar_lea.vmem [#allocation11], %s601
          %s604 = ssub.s32 1024, 1024
          %605 = vsyncadd %s599, %s604
          %s606 = smul.addr %s35, 16
          %s607 = smul.addr %s606, 64
          %s608 = scalar_lea.hbm %s12, %s607
          %s609 = sshll.u32 %s602, 4
          %s610 = int_to_ptr.vmem [resolvable:$true] %s609
          %615 = dma.hbm_to_vmem [thread:$0]  %s608, 1024, %s610, %s599, 64, 64, 4
        $region68: #{tpu_custom_call.1} parent=19 // pred_fallthru
          _
        // Predicated region
        $region69: #{tpu_custom_call.1} parent=19 // pred_check
          %p616 = pneg %p392
        $region70: #{tpu_custom_call.1} parent=19 // pred_check_branch
          %618 = sbr.rel (%p616) target = $region72
        $region71: #{tpu_custom_call.1} parent=19 // pred_region
          %p619 = scmp.lt.s32.totalorder %s35, 1
          %s620 = scalar_select %p619, %s35, 1
          %s621 = scalar_lea.vmem %s13, %s620
        $region72: #{tpu_custom_call.1} parent=19 // pred_fallthru
          _
      $region20: #{tpu_custom_call.1} parent=5 // pred_fallthru
        _
      %p622 = scmp.le.s32.totalorder 1, %s27
      %p623 = scmp.lt.s32.totalorder %s27, 5
      %p624 = pnand %p622, %p623
      %p625 = pneg %p624
      // Predicated region
      $region73: #{tpu_custom_call.1} parent=5 // pred_check
        _
      $region74: #{tpu_custom_call.1} parent=5 // pred_check_branch
        %627 = sbr.rel (%p624) target = $region76
      $region75: #{tpu_custom_call.1} parent=5 // pred_region
        %s628 = ssub.s32 %s27, 1
        %s629 = sand.u32 %s32, 1
        %s630 = scalar_lea.sflag [#allocation3], %s629
        %s631 = sand.u32 %s52, 1
        %s632 = smul.addr %s631, 128
        %s633 = scalar_lea.vmem [#allocation2], %s632
        // Predicated region
        $region77: #{tpu_custom_call.1} parent=75 // pred_check
          %p634 = pneg %p65
        $region78: #{tpu_custom_call.1} parent=75 // pred_check_branch
          %636 = sbr.rel (%p634) target = $region80
        $region79: #{tpu_custom_call.1} parent=75 // pred_region
          %637 = dma.done %s630, 2048
        $region80: #{tpu_custom_call.1} parent=75 // pred_fallthru
          _
        // Predicated region
        $region81: #{tpu_custom_call.1} parent=75 // pred_check
          %p638 = pneg %p86
        $region82: #{tpu_custom_call.1} parent=75 // pred_check_branch
          %640 = sbr.rel (%p638) target = $region84
        $region83: #{tpu_custom_call.1} parent=75 // pred_region
          %641 = dma.done [#allocation6], 2048
        $region84: #{tpu_custom_call.1} parent=75 // pred_fallthru
          _
        %s642 = sand.u32 %s32, 1
        %s643 = scalar_lea.sflag [#allocation3], %s642
        %s644 = sand.u32 %s151, 1
        %s645 = smul.addr %s644, 768
        %s646 = scalar_lea.vmem [#allocation7], %s645
        // Predicated region
        $region85: #{tpu_custom_call.1} parent=75 // pred_check
          %p647 = pneg %p164
        $region86: #{tpu_custom_call.1} parent=75 // pred_check_branch
          %649 = sbr.rel (%p647) target = $region88
        $region87: #{tpu_custom_call.1} parent=75 // pred_region
          %650 = dma.done %s643, 12288
        $region88: #{tpu_custom_call.1} parent=75 // pred_fallthru
          _
        %s651 = sand.u32 %s32, 1
        %s652 = scalar_lea.sflag [#allocation3], %s651
        %s653 = sand.u32 %s177, 1
        %s654 = smul.addr %s653, 12
        %s655 = scalar_lea.vmem [#allocation8], %s654
        // Predicated region
        $region89: #{tpu_custom_call.1} parent=75 // pred_check
          %p656 = pneg %p190
        $region90: #{tpu_custom_call.1} parent=75 // pred_check_branch
          %658 = sbr.rel (%p656) target = $region92
        $region91: #{tpu_custom_call.1} parent=75 // pred_region
          %659 = dma.done %s652, 192
        $region92: #{tpu_custom_call.1} parent=75 // pred_fallthru
          _
        %s660 = sand.u32 %s32, 1
        %s661 = scalar_lea.sflag [#allocation3], %s660
        %s662 = sand.u32 %s203, 1
        %s663 = smul.addr %s662, 256
        %s664 = scalar_lea.vmem [#allocation9], %s663
        // Predicated region
        $region93: #{tpu_custom_call.1} parent=75 // pred_check
          %p665 = pneg %p216
        $region94: #{tpu_custom_call.1} parent=75 // pred_check_branch
          %667 = sbr.rel (%p665) target = $region96
        $region95: #{tpu_custom_call.1} parent=75 // pred_region
          %668 = dma.done %s661, 4096
        $region96: #{tpu_custom_call.1} parent=75 // pred_fallthru
          _
        %s669 = sand.u32 %s32, 1
        %s670 = scalar_lea.sflag [#allocation3], %s669
        %s671 = sand.u32 %s307, 1
        %s672 = smul.addr %s671, 64
        %s673 = scalar_lea.vmem [#allocation10], %s672
        // Predicated region
        $region97: #{tpu_custom_call.1} parent=75 // pred_check
          %p674 = pneg %p320
        $region98: #{tpu_custom_call.1} parent=75 // pred_check_branch
          %676 = sbr.rel (%p674) target = $region100
        $region99: #{tpu_custom_call.1} parent=75 // pred_region
          %677 = dma.done %s670, 1024
        $region100: #{tpu_custom_call.1} parent=75 // pred_fallthru
          _
        %s678 = sand.u32 %s32, 1
        %s679 = scalar_lea.sflag [#allocation3], %s678
        %s680 = sand.u32 %s359, 1
        %s681 = smul.addr %s680, 64
        %s682 = scalar_lea.vmem [#allocation11], %s681
        // Predicated region
        $region101: #{tpu_custom_call.1} parent=75 // pred_check
          %p683 = pneg %p372
        $region102: #{tpu_custom_call.1} parent=75 // pred_check_branch
          %685 = sbr.rel (%p683) target = $region104
        $region103: #{tpu_custom_call.1} parent=75 // pred_region
          %686 = dma.done %s679, 1024
        $region104: #{tpu_custom_call.1} parent=75 // pred_fallthru
          _
        %s687 = sand.u32 %s32, 1
        %s688 = scalar_lea.sflag [#allocation3], %s687
        %s689 = sand.u32 %s52, 1
        %s690 = smul.addr %s689, 128
        %s691 = scalar_lea.vmem [#allocation2], %s690
        %p692 = pneg %p65
        %p693 = pneg %p62
        %p694 = pneg %p86
        %p695 = pneg %p83
        %p696 = scmp.lt.s32.totalorder %s37, 1
        %s697 = scalar_select %p696, %s37, 1
        %s698 = scalar_lea.vmem %s2, %s697
        %p699 = pneg %p112
        %p700 = pneg %p109
        %p701 = scmp.lt.s32.totalorder %s37, 1
        %s702 = scalar_select %p701, %s37, 1
        %s703 = scalar_lea.vmem %s3, %s702
        %p704 = pneg %p138
        %p705 = pneg %p135
        %s706 = sand.u32 %s32, 1
        %s707 = scalar_lea.sflag [#allocation3], %s706
        %s708 = sand.u32 %s151, 1
        %s709 = smul.addr %s708, 768
        %s710 = scalar_lea.vmem [#allocation7], %s709
        %p711 = pneg %p164
        %p712 = pneg %p161
        %s713 = sand.u32 %s32, 1
        %s714 = scalar_lea.sflag [#allocation3], %s713
        %s715 = sand.u32 %s177, 1
        %s716 = smul.addr %s715, 12
        %s717 = scalar_lea.vmem [#allocation8], %s716
        %p718 = pneg %p190
        %p719 = pneg %p187
        %s720 = sand.u32 %s32, 1
        %s721 = scalar_lea.sflag [#allocation3], %s720
        %s722 = sand.u32 %s203, 1
        %s723 = smul.addr %s722, 256
        %s724 = scalar_lea.vmem [#allocation9], %s723
        %p725 = pneg %p216
        %p726 = pneg %p213
        %p727 = scmp.lt.s32.totalorder %s37, 1
        %s728 = scalar_select %p727, %s37, 1
        %s729 = scalar_lea.vmem %s7, %s728
        %p730 = pneg %p242
        %p731 = pneg %p239
        %p732 = scmp.lt.s32.totalorder %s37, 1
        %s733 = scalar_select %p732, %s37, 1
        %s734 = scalar_lea.vmem %s8, %s733
        %p735 = pneg %p268
        %p736 = pneg %p265
        %p737 = scmp.lt.s32.totalorder %s37, 1
        %s738 = scalar_select %p737, %s37, 1
        %s739 = scalar_lea.vmem %s9, %s738
        %p740 = pneg %p294
        %p741 = pneg %p291
        %s742 = sand.u32 %s32, 1
        %s743 = scalar_lea.sflag [#allocation3], %s742
        %s744 = sand.u32 %s307, 1
        %s745 = smul.addr %s744, 64
        %s746 = scalar_lea.vmem [#allocation10], %s745
        %p747 = pneg %p320
        %p748 = pneg %p317
        %p749 = scmp.lt.s32.totalorder %s37, 1
        %s750 = scalar_select %p749, %s37, 1
        %s751 = scalar_lea.vmem %s11, %s750
        %p752 = pneg %p346
        %p753 = pneg %p343
        %s754 = sand.u32 %s32, 1
        %s755 = scalar_lea.sflag [#allocation3], %s754
        %s756 = sand.u32 %s359, 1
        %s757 = smul.addr %s756, 64
        %s758 = scalar_lea.vmem [#allocation11], %s757
        %p759 = pneg %p372
        %p760 = pneg %p369
        %p761 = scmp.lt.s32.totalorder %s37, 1
        %s762 = scalar_select %p761, %s37, 1
        %s763 = scalar_lea.vmem %s13, %s762
        %p764 = pneg %p398
        %p765 = pneg %p395
        %p766 = pneg %p424
        %p767 = pneg %p421
        %s768 = sand.u32 %s411, 1
        %s769 = scalar_lea.sflag [#allocation4], %s768
        %s770 = sand.u32 %s411, 1
        %s771 = smul.addr %s770, 128
        %s772 = scalar_lea.vmem [#allocation12], %s771
        %p773 = scmp.lt.s32.totalorder %s37, 1
        %s774 = scalar_select %p773, %s37, 1
        %s775 = scalar_lea.vmem %s2, %s774
        %p776 = scmp.lt.s32.totalorder %s37, 1
        %s777 = scalar_select %p776, %s37, 1
        %s778 = scalar_lea.vmem %s3, %s777
        %p779 = scmp.lt.s32.totalorder %s37, 1
        %s780 = scalar_select %p779, %s37, 1
        %s781 = scalar_lea.vmem %s7, %s780
        %p782 = scmp.lt.s32.totalorder %s37, 1
        %s783 = scalar_select %p782, %s37, 1
        %s784 = scalar_lea.vmem %s8, %s783
        %p785 = scmp.lt.s32.totalorder %s37, 1
        %s786 = scalar_select %p785, %s37, 1
        %s787 = scalar_lea.vmem %s9, %s786
        %p788 = scmp.lt.s32.totalorder %s37, 1
        %s789 = scalar_select %p788, %s37, 1
        %s790 = scalar_lea.vmem %s11, %s789
        %p791 = scmp.lt.s32.totalorder %s37, 1
        %s792 = scalar_select %p791, %s37, 1
        %s793 = scalar_lea.vmem %s13, %s792
        %p795 = scmp.eq.s32.totalorder %s37, 0
        // Predicated region
        $region105: #{tpu_custom_call.1} parent=75 // pred_check
          %p796 = pneg %p795
        $region106: #{tpu_custom_call.1} parent=75 // pred_check_branch
          %798 = sbr.rel (%p796) target = $region108
        $region107: #{tpu_custom_call.1} parent=75 // pred_region
          %v799 = vld [vmem:[%s633] sm:$0xff]
          %v800 = vld [vmem:[%s633 + $0x8] sm:$0xff]
          %v801 = vld [vmem:[%s633 + $0x10] sm:$0xff]
          %v802 = vld [vmem:[%s633 + $0x18] sm:$0xff]
          %v803 = vld [vmem:[%s633 + $0x20] sm:$0xff]
          %v804 = vld [vmem:[%s633 + $0x28] sm:$0xff]
          %v805 = vld [vmem:[%s633 + $0x30] sm:$0xff]
          %v806 = vld [vmem:[%s633 + $0x38] sm:$0xff]
          %v807 = vld [vmem:[%s633 + $0x40] sm:$0xff]
          %v808 = vld [vmem:[%s633 + $0x48] sm:$0xff]
          %v809 = vld [vmem:[%s633 + $0x50] sm:$0xff]
          %v810 = vld [vmem:[%s633 + $0x58] sm:$0xff]
          %v811 = vld [vmem:[%s633 + $0x60] sm:$0xff]
          %v812 = vld [vmem:[%s633 + $0x68] sm:$0xff]
          %v813 = vld [vmem:[%s633 + $0x70] sm:$0xff]
          %v814 = vld [vmem:[%s633 + $0x78] sm:$0xff]
          %v815 = vmul.f32 %v799, 5.656854
          %v816 = vmul.f32 %v800, 5.656854
          %v817 = vmul.f32 %v801, 5.656854
          %v818 = vmul.f32 %v802, 5.656854
          %v819 = vmul.f32 %v803, 5.656854
          %v820 = vmul.f32 %v804, 5.656854
          %v821 = vmul.f32 %v805, 5.656854
          %v822 = vmul.f32 %v806, 5.656854
          %v823 = vmul.f32 %v807, 5.656854
          %v824 = vmul.f32 %v808, 5.656854
          %v825 = vmul.f32 %v809, 5.656854
          %v826 = vmul.f32 %v810, 5.656854
          %v827 = vmul.f32 %v811, 5.656854
          %v828 = vmul.f32 %v812, 5.656854
          %v829 = vmul.f32 %v813, 5.656854
          %v830 = vmul.f32 %v814, 5.656854
          %v831 = vld [vmem:[#allocation5] sm:$0xff]
          %v832 = vld [vmem:[#allocation5 + $0x8] sm:$0xff]
          %v833 = vld [vmem:[#allocation5 + $0x10] sm:$0xff]
          %v834 = vld [vmem:[#allocation5 + $0x18] sm:$0xff]
          %v835 = vld [vmem:[#allocation5 + $0x20] sm:$0xff]
          %v836 = vld [vmem:[#allocation5 + $0x28] sm:$0xff]
          %v837 = vld [vmem:[#allocation5 + $0x30] sm:$0xff]
          %v838 = vld [vmem:[#allocation5 + $0x38] sm:$0xff]
          %v839 = vld [vmem:[#allocation5 + $0x40] sm:$0xff]
          %v840 = vld [vmem:[#allocation5 + $0x48] sm:$0xff]
          %v841 = vld [vmem:[#allocation5 + $0x50] sm:$0xff]
          %v842 = vld [vmem:[#allocation5 + $0x58] sm:$0xff]
          %v843 = vld [vmem:[#allocation5 + $0x60] sm:$0xff]
          %v844 = vld [vmem:[#allocation5 + $0x68] sm:$0xff]
          %v845 = vld [vmem:[#allocation5 + $0x70] sm:$0xff]
          %v846 = vld [vmem:[#allocation5 + $0x78] sm:$0xff]
          %v847 = vadd.f32 %v815, %v831
          %v848 = vadd.f32 %v816, %v832
          %v849 = vadd.f32 %v817, %v833
          %v850 = vadd.f32 %v818, %v834
          %v851 = vadd.f32 %v819, %v835
          %v852 = vadd.f32 %v820, %v836
          %v853 = vadd.f32 %v821, %v837
          %v854 = vadd.f32 %v822, %v838
          %v855 = vadd.f32 %v823, %v839
          %v856 = vadd.f32 %v824, %v840
          %v857 = vadd.f32 %v825, %v841
          %v858 = vadd.f32 %v826, %v842
          %v859 = vadd.f32 %v827, %v843
          %v860 = vadd.f32 %v828, %v844
          %v861 = vadd.f32 %v829, %v845
          %v862 = vadd.f32 %v830, %v846
          %863 = vst [vmem:[%s772] sm:$0xff] %v847
          %864 = vst [vmem:[%s772 + $0x8] sm:$0xff] %v848
          %865 = vst [vmem:[%s772 + $0x10] sm:$0xff] %v849
          %866 = vst [vmem:[%s772 + $0x18] sm:$0xff] %v850
          %867 = vst [vmem:[%s772 + $0x20] sm:$0xff] %v851
          %868 = vst [vmem:[%s772 + $0x28] sm:$0xff] %v852
          %869 = vst [vmem:[%s772 + $0x30] sm:$0xff] %v853
          %870 = vst [vmem:[%s772 + $0x38] sm:$0xff] %v854
          %871 = vst [vmem:[%s772 + $0x40] sm:$0xff] %v855
          %872 = vst [vmem:[%s772 + $0x48] sm:$0xff] %v856
          %873 = vst [vmem:[%s772 + $0x50] sm:$0xff] %v857
          %874 = vst [vmem:[%s772 + $0x58] sm:$0xff] %v858
          %875 = vst [vmem:[%s772 + $0x60] sm:$0xff] %v859
          %876 = vst [vmem:[%s772 + $0x68] sm:$0xff] %v860
          %877 = vst [vmem:[%s772 + $0x70] sm:$0xff] %v861
          %878 = vst [vmem:[%s772 + $0x78] sm:$0xff] %v862
        $region108: #{tpu_custom_call.1} parent=75 // pred_fallthru
          _
        %v879 = vld [vmem:[%s775] sm:$0x1]
        %v880 = vld [vmem:[%s778] sm:$0x1]
        %v881 = vld [vmem:[%s646] sm:$0xff]
        %v882 = vld [vmem:[%s646 + $0x8] sm:$0xff]
        %v883 = vld [vmem:[%s646 + $0x10] sm:$0xff]
        %v884 = vld [vmem:[%s646 + $0x18] sm:$0xff]
        %v885 = vld [vmem:[%s646 + $0x20] sm:$0xff]
        %v886 = vld [vmem:[%s646 + $0x28] sm:$0xff]
        %v887 = vld [vmem:[%s646 + $0x30] sm:$0xff]
        %v888 = vld [vmem:[%s646 + $0x38] sm:$0xff]
        %v889 = vld [vmem:[%s646 + $0x40] sm:$0xff]
        %v890 = vld [vmem:[%s646 + $0x48] sm:$0xff]
        %v891 = vld [vmem:[%s646 + $0x50] sm:$0xff]
        %v892 = vld [vmem:[%s646 + $0x58] sm:$0xff]
        %v893 = vld [vmem:[%s646 + $0x60] sm:$0xff]
        %v894 = vld [vmem:[%s646 + $0x68] sm:$0xff]
        %v895 = vld [vmem:[%s646 + $0x70] sm:$0xff]
        %v896 = vld [vmem:[%s646 + $0x78] sm:$0xff]
        %v897 = vld [vmem:[%s646 + $0x80] sm:$0xff]
        %v898 = vld [vmem:[%s646 + $0x88] sm:$0xff]
        %v899 = vld [vmem:[%s646 + $0x90] sm:$0xff]
        %v900 = vld [vmem:[%s646 + $0x98] sm:$0xff]
        %v901 = vld [vmem:[%s646 + $0xa0] sm:$0xff]
        %v902 = vld [vmem:[%s646 + $0xa8] sm:$0xff]
        %v903 = vld [vmem:[%s646 + $0xb0] sm:$0xff]
        %v904 = vld [vmem:[%s646 + $0xb8] sm:$0xff]
        %v905 = vld [vmem:[%s646 + $0xc0] sm:$0xff]
        %v906 = vld [vmem:[%s646 + $0xc8] sm:$0xff]
        %v907 = vld [vmem:[%s646 + $0xd0] sm:$0xff]
        %v908 = vld [vmem:[%s646 + $0xd8] sm:$0xff]
        %v909 = vld [vmem:[%s646 + $0xe0] sm:$0xff]
        %v910 = vld [vmem:[%s646 + $0xe8] sm:$0xff]
        %v911 = vld [vmem:[%s646 + $0xf0] sm:$0xff]
        %v912 = vld [vmem:[%s646 + $0xf8] sm:$0xff]
        %v913 = vld [vmem:[%s646 + $0x100] sm:$0xff]
        %v914 = vld [vmem:[%s646 + $0x108] sm:$0xff]
        %v915 = vld [vmem:[%s646 + $0x110] sm:$0xff]
        %v916 = vld [vmem:[%s646 + $0x118] sm:$0xff]
        %v917 = vld [vmem:[%s646 + $0x120] sm:$0xff]
        %v918 = vld [vmem:[%s646 + $0x128] sm:$0xff]
        %v919 = vld [vmem:[%s646 + $0x130] sm:$0xff]
        %v920 = vld [vmem:[%s646 + $0x138] sm:$0xff]
        %v921 = vld [vmem:[%s646 + $0x140] sm:$0xff]
        %v922 = vld [vmem:[%s646 + $0x148] sm:$0xff]
        %v923 = vld [vmem:[%s646 + $0x150] sm:$0xff]
        %v924 = vld [vmem:[%s646 + $0x158] sm:$0xff]
        %v925 = vld [vmem:[%s646 + $0x160] sm:$0xff]
        %v926 = vld [vmem:[%s646 + $0x168] sm:$0xff]
        %v927 = vld [vmem:[%s646 + $0x170] sm:$0xff]
        %v928 = vld [vmem:[%s646 + $0x178] sm:$0xff]
        %v929 = vld [vmem:[%s646 + $0x180] sm:$0xff]
        %v930 = vld [vmem:[%s646 + $0x188] sm:$0xff]
        %v931 = vld [vmem:[%s646 + $0x190] sm:$0xff]
        %v932 = vld [vmem:[%s646 + $0x198] sm:$0xff]
        %v933 = vld [vmem:[%s646 + $0x1a0] sm:$0xff]
        %v934 = vld [vmem:[%s646 + $0x1a8] sm:$0xff]
        %v935 = vld [vmem:[%s646 + $0x1b0] sm:$0xff]
        %v936 = vld [vmem:[%s646 + $0x1b8] sm:$0xff]
        %v937 = vld [vmem:[%s646 + $0x1c0] sm:$0xff]
        %v938 = vld [vmem:[%s646 + $0x1c8] sm:$0xff]
        %v939 = vld [vmem:[%s646 + $0x1d0] sm:$0xff]
        %v940 = vld [vmem:[%s646 + $0x1d8] sm:$0xff]
        %v941 = vld [vmem:[%s646 + $0x1e0] sm:$0xff]
        %v942 = vld [vmem:[%s646 + $0x1e8] sm:$0xff]
        %v943 = vld [vmem:[%s646 + $0x1f0] sm:$0xff]
        %v944 = vld [vmem:[%s646 + $0x1f8] sm:$0xff]
        %v945 = vld [vmem:[%s646 + $0x200] sm:$0xff]
        %v946 = vld [vmem:[%s646 + $0x208] sm:$0xff]
        %v947 = vld [vmem:[%s646 + $0x210] sm:$0xff]
        %v948 = vld [vmem:[%s646 + $0x218] sm:$0xff]
        %v949 = vld [vmem:[%s646 + $0x220] sm:$0xff]
        %v950 = vld [vmem:[%s646 + $0x228] sm:$0xff]
        %v951 = vld [vmem:[%s646 + $0x230] sm:$0xff]
        %v952 = vld [vmem:[%s646 + $0x238] sm:$0xff]
        %v953 = vld [vmem:[%s646 + $0x240] sm:$0xff]
        %v954 = vld [vmem:[%s646 + $0x248] sm:$0xff]
        %v955 = vld [vmem:[%s646 + $0x250] sm:$0xff]
        %v956 = vld [vmem:[%s646 + $0x258] sm:$0xff]
        %v957 = vld [vmem:[%s646 + $0x260] sm:$0xff]
        %v958 = vld [vmem:[%s646 + $0x268] sm:$0xff]
        %v959 = vld [vmem:[%s646 + $0x270] sm:$0xff]
        %v960 = vld [vmem:[%s646 + $0x278] sm:$0xff]
        %v961 = vld [vmem:[%s646 + $0x280] sm:$0xff]
        %v962 = vld [vmem:[%s646 + $0x288] sm:$0xff]
        %v963 = vld [vmem:[%s646 + $0x290] sm:$0xff]
        %v964 = vld [vmem:[%s646 + $0x298] sm:$0xff]
        %v965 = vld [vmem:[%s646 + $0x2a0] sm:$0xff]
        %v966 = vld [vmem:[%s646 + $0x2a8] sm:$0xff]
        %v967 = vld [vmem:[%s646 + $0x2b0] sm:$0xff]
        %v968 = vld [vmem:[%s646 + $0x2b8] sm:$0xff]
        %v969 = vld [vmem:[%s646 + $0x2c0] sm:$0xff]
        %v970 = vld [vmem:[%s646 + $0x2c8] sm:$0xff]
        %v971 = vld [vmem:[%s646 + $0x2d0] sm:$0xff]
        %v972 = vld [vmem:[%s646 + $0x2d8] sm:$0xff]
        %v973 = vld [vmem:[%s646 + $0x2e0] sm:$0xff]
        %v974 = vld [vmem:[%s646 + $0x2e8] sm:$0xff]
        %v975 = vld [vmem:[%s646 + $0x2f0] sm:$0xff]
        %v976 = vld [vmem:[%s646 + $0x2f8] sm:$0xff]
        %v977 = vld [vmem:[%s655] sm:$0xff]
        %v978 = vld [vmem:[%s655 + $0x8] sm:$0xf]
        %v979 = vld [vmem:[%s664] sm:$0xf]
        %v980 = vld [vmem:[%s664 + $0x4] sm:$0xf]
        %v981 = vld [vmem:[%s664 + $0x8] sm:$0xf]
        %v982 = vld [vmem:[%s664 + $0xc] sm:$0xf]
        %v983 = vld [vmem:[%s664 + $0x10] sm:$0xf]
        %v984 = vld [vmem:[%s664 + $0x14] sm:$0xf]
        %v985 = vld [vmem:[%s664 + $0x18] sm:$0xf]
        %v986 = vld [vmem:[%s664 + $0x1c] sm:$0xf]
        %v987 = vld [vmem:[%s664 + $0x20] sm:$0xf]
        %v988 = vld [vmem:[%s664 + $0x24] sm:$0xf]
        %v989 = vld [vmem:[%s664 + $0x28] sm:$0xf]
        %v990 = vld [vmem:[%s664 + $0x2c] sm:$0xf]
        %v991 = vld [vmem:[%s664 + $0x30] sm:$0xf]
        %v992 = vld [vmem:[%s664 + $0x34] sm:$0xf]
        %v993 = vld [vmem:[%s664 + $0x38] sm:$0xf]
        %v994 = vld [vmem:[%s664 + $0x3c] sm:$0xf]
        %v995 = vld [vmem:[%s664 + $0x40] sm:$0xf]
        %v996 = vld [vmem:[%s664 + $0x44] sm:$0xf]
        %v997 = vld [vmem:[%s664 + $0x48] sm:$0xf]
        %v998 = vld [vmem:[%s664 + $0x4c] sm:$0xf]
        %v999 = vld [vmem:[%s664 + $0x50] sm:$0xf]
        %v1000 = vld [vmem:[%s664 + $0x54] sm:$0xf]
        %v1001 = vld [vmem:[%s664 + $0x58] sm:$0xf]
        %v1002 = vld [vmem:[%s664 + $0x5c] sm:$0xf]
        %v1003 = vld [vmem:[%s664 + $0x60] sm:$0xf]
        %v1004 = vld [vmem:[%s664 + $0x64] sm:$0xf]
        %v1005 = vld [vmem:[%s664 + $0x68] sm:$0xf]
        %v1006 = vld [vmem:[%s664 + $0x6c] sm:$0xf]
        %v1007 = vld [vmem:[%s664 + $0x70] sm:$0xf]
        %v1008 = vld [vmem:[%s664 + $0x74] sm:$0xf]
        %v1009 = vld [vmem:[%s664 + $0x78] sm:$0xf]
        %v1010 = vld [vmem:[%s664 + $0x7c] sm:$0xf]
        %v1011 = vld [vmem:[%s664 + $0x80] sm:$0xf]
        %v1012 = vld [vmem:[%s664 + $0x84] sm:$0xf]
        %v1013 = vld [vmem:[%s664 + $0x88] sm:$0xf]
        %v1014 = vld [vmem:[%s664 + $0x8c] sm:$0xf]
        %v1015 = vld [vmem:[%s664 + $0x90] sm:$0xf]
        %v1016 = vld [vmem:[%s664 + $0x94] sm:$0xf]
        %v1017 = vld [vmem:[%s664 + $0x98] sm:$0xf]
        %v1018 = vld [vmem:[%s664 + $0x9c] sm:$0xf]
        %v1019 = vld [vmem:[%s664 + $0xa0] sm:$0xf]
        %v1020 = vld [vmem:[%s664 + $0xa4] sm:$0xf]
        %v1021 = vld [vmem:[%s664 + $0xa8] sm:$0xf]
        %v1022 = vld [vmem:[%s664 + $0xac] sm:$0xf]
        %v1023 = vld [vmem:[%s664 + $0xb0] sm:$0xf]
        %v1024 = vld [vmem:[%s664 + $0xb4] sm:$0xf]
        %v1025 = vld [vmem:[%s664 + $0xb8] sm:$0xf]
        %v1026 = vld [vmem:[%s664 + $0xbc] sm:$0xf]
        %v1027 = vld [vmem:[%s664 + $0xc0] sm:$0xf]
        %v1028 = vld [vmem:[%s664 + $0xc4] sm:$0xf]
        %v1029 = vld [vmem:[%s664 + $0xc8] sm:$0xf]
        %v1030 = vld [vmem:[%s664 + $0xcc] sm:$0xf]
        %v1031 = vld [vmem:[%s664 + $0xd0] sm:$0xf]
        %v1032 = vld [vmem:[%s664 + $0xd4] sm:$0xf]
        %v1033 = vld [vmem:[%s664 + $0xd8] sm:$0xf]
        %v1034 = vld [vmem:[%s664 + $0xdc] sm:$0xf]
        %v1035 = vld [vmem:[%s664 + $0xe0] sm:$0xf]
        %v1036 = vld [vmem:[%s664 + $0xe4] sm:$0xf]
        %v1037 = vld [vmem:[%s664 + $0xe8] sm:$0xf]
        %v1038 = vld [vmem:[%s664 + $0xec] sm:$0xf]
        %v1039 = vld [vmem:[%s664 + $0xf0] sm:$0xf]
        %v1040 = vld [vmem:[%s664 + $0xf4] sm:$0xf]
        %v1041 = vld [vmem:[%s664 + $0xf8] sm:$0xf]
        %v1042 = vld [vmem:[%s664 + $0xfc] sm:$0xf]
        %v1043 = vld [vmem:[%s781] sm:$0x1]
        %v1044 = vld [vmem:[%s784] sm:$0x1]
        %v1045 = vld [vmem:[%s787] sm:$0x1]
        %v1046 = vld [vmem:[%s673] sm:$0xf]
        %v1047 = vld [vmem:[%s673 + $0x4] sm:$0xf]
        %v1048 = vld [vmem:[%s673 + $0x8] sm:$0xf]
        %v1049 = vld [vmem:[%s673 + $0xc] sm:$0xf]
        %v1050 = vld [vmem:[%s673 + $0x10] sm:$0xf]
        %v1051 = vld [vmem:[%s673 + $0x14] sm:$0xf]
        %v1052 = vld [vmem:[%s673 + $0x18] sm:$0xf]
        %v1053 = vld [vmem:[%s673 + $0x1c] sm:$0xf]
        %v1054 = vld [vmem:[%s673 + $0x20] sm:$0xf]
        %v1055 = vld [vmem:[%s673 + $0x24] sm:$0xf]
        %v1056 = vld [vmem:[%s673 + $0x28] sm:$0xf]
        %v1057 = vld [vmem:[%s673 + $0x2c] sm:$0xf]
        %v1058 = vld [vmem:[%s673 + $0x30] sm:$0xf]
        %v1059 = vld [vmem:[%s673 + $0x34] sm:$0xf]
        %v1060 = vld [vmem:[%s673 + $0x38] sm:$0xf]
        %v1061 = vld [vmem:[%s673 + $0x3c] sm:$0xf]
        %v1062 = vld [vmem:[%s790] sm:$0x1]
        %v1063 = vld [vmem:[%s682] sm:$0xf]
        %v1064 = vld [vmem:[%s682 + $0x4] sm:$0xf]
        %v1065 = vld [vmem:[%s682 + $0x8] sm:$0xf]
        %v1066 = vld [vmem:[%s682 + $0xc] sm:$0xf]
        %v1067 = vld [vmem:[%s682 + $0x10] sm:$0xf]
        %v1068 = vld [vmem:[%s682 + $0x14] sm:$0xf]
        %v1069 = vld [vmem:[%s682 + $0x18] sm:$0xf]
        %v1070 = vld [vmem:[%s682 + $0x1c] sm:$0xf]
        %v1071 = vld [vmem:[%s682 + $0x20] sm:$0xf]
        %v1072 = vld [vmem:[%s682 + $0x24] sm:$0xf]
        %v1073 = vld [vmem:[%s682 + $0x28] sm:$0xf]
        %v1074 = vld [vmem:[%s682 + $0x2c] sm:$0xf]
        %v1075 = vld [vmem:[%s682 + $0x30] sm:$0xf]
        %v1076 = vld [vmem:[%s682 + $0x34] sm:$0xf]
        %v1077 = vld [vmem:[%s682 + $0x38] sm:$0xf]
        %v1078 = vld [vmem:[%s682 + $0x3c] sm:$0xf]
        %v1079 = vld [vmem:[%s793] sm:$0x1]
        %v1080 = vld [vmem:[%s772] sm:$0xff]
        %v1081 = vld [vmem:[%s772 + $0x8] sm:$0xff]
        %v1082 = vld [vmem:[%s772 + $0x10] sm:$0xff]
        %v1083 = vld [vmem:[%s772 + $0x18] sm:$0xff]
        %v1084 = vld [vmem:[%s772 + $0x20] sm:$0xff]
        %v1085 = vld [vmem:[%s772 + $0x28] sm:$0xff]
        %v1086 = vld [vmem:[%s772 + $0x30] sm:$0xff]
        %v1087 = vld [vmem:[%s772 + $0x38] sm:$0xff]
        %v1088 = vld [vmem:[%s772 + $0x40] sm:$0xff]
        %v1089 = vld [vmem:[%s772 + $0x48] sm:$0xff]
        %v1090 = vld [vmem:[%s772 + $0x50] sm:$0xff]
        %v1091 = vld [vmem:[%s772 + $0x58] sm:$0xff]
        %v1092 = vld [vmem:[%s772 + $0x60] sm:$0xff]
        %v1093 = vld [vmem:[%s772 + $0x68] sm:$0xff]
        %v1094 = vld [vmem:[%s772 + $0x70] sm:$0xff]
        %v1095 = vld [vmem:[%s772 + $0x78] sm:$0xff]
        %1096 = vadd.xlane.f32.xlu0 %v1080
        %v1097 = vpop.xlane.xlu0 %1096
        %1098 = vadd.xlane.f32.xlu0 %v1081
        %v1099 = vpop.xlane.xlu0 %1098
        %1100 = vadd.xlane.f32.xlu0 %v1082
        %v1101 = vpop.xlane.xlu0 %1100
        %1102 = vadd.xlane.f32.xlu0 %v1083
        %v1103 = vpop.xlane.xlu0 %1102
        %1104 = vadd.xlane.f32.xlu0 %v1084
        %v1105 = vpop.xlane.xlu0 %1104
        %1106 = vadd.xlane.f32.xlu0 %v1085
        %v1107 = vpop.xlane.xlu0 %1106
        %1108 = vadd.xlane.f32.xlu0 %v1086
        %v1109 = vpop.xlane.xlu0 %1108
        %1110 = vadd.xlane.f32.xlu0 %v1087
        %v1111 = vpop.xlane.xlu0 %1110
        %1112 = vadd.xlane.f32.xlu0 %v1088
        %v1113 = vpop.xlane.xlu0 %1112
        %1114 = vadd.xlane.f32.xlu0 %v1089
        %v1115 = vpop.xlane.xlu0 %1114
        %1116 = vadd.xlane.f32.xlu0 %v1090
        %v1117 = vpop.xlane.xlu0 %1116
        %1118 = vadd.xlane.f32.xlu0 %v1091
        %v1119 = vpop.xlane.xlu0 %1118
        %1120 = vadd.xlane.f32.xlu0 %v1092
        %v1121 = vpop.xlane.xlu0 %1120
        %1122 = vadd.xlane.f32.xlu0 %v1093
        %v1123 = vpop.xlane.xlu0 %1122
        %1124 = vadd.xlane.f32.xlu0 %v1094
        %v1125 = vpop.xlane.xlu0 %1124
        %1126 = vadd.xlane.f32.xlu0 %v1095
        %v1127 = vpop.xlane.xlu0 %1126
        %v1128 = vmul.f32 %v1097, 0.03125
        %v1129 = vmul.f32 %v1099, 0.03125
        %v1130 = vmul.f32 %v1101, 0.03125
        %v1131 = vmul.f32 %v1103, 0.03125
        %v1132 = vmul.f32 %v1105, 0.03125
        %v1133 = vmul.f32 %v1107, 0.03125
        %v1134 = vmul.f32 %v1109, 0.03125
        %v1135 = vmul.f32 %v1111, 0.03125
        %v1136 = vmul.f32 %v1113, 0.03125
        %v1137 = vmul.f32 %v1115, 0.03125
        %v1138 = vmul.f32 %v1117, 0.03125
        %v1139 = vmul.f32 %v1119, 0.03125
        %v1140 = vmul.f32 %v1121, 0.03125
        %v1141 = vmul.f32 %v1123, 0.03125
        %v1142 = vmul.f32 %v1125, 0.03125
        %v1143 = vmul.f32 %v1127, 0.03125
        %v1144 = vmul.f32 %v1080, %v1080
        %v1145 = vmul.f32 %v1081, %v1081
        %v1146 = vmul.f32 %v1082, %v1082
        %v1147 = vmul.f32 %v1083, %v1083
        %v1148 = vmul.f32 %v1084, %v1084
        %v1149 = vmul.f32 %v1085, %v1085
        %v1150 = vmul.f32 %v1086, %v1086
        %v1151 = vmul.f32 %v1087, %v1087
        %v1152 = vmul.f32 %v1088, %v1088
        %v1153 = vmul.f32 %v1089, %v1089
        %v1154 = vmul.f32 %v1090, %v1090
        %v1155 = vmul.f32 %v1091, %v1091
        %v1156 = vmul.f32 %v1092, %v1092
        %v1157 = vmul.f32 %v1093, %v1093
        %v1158 = vmul.f32 %v1094, %v1094
        %v1159 = vmul.f32 %v1095, %v1095
        %1160 = vadd.xlane.f32.xlu0 %v1144
        %v1161 = vpop.xlane.xlu0 %1160
        %1162 = vadd.xlane.f32.xlu0 %v1145
        %v1163 = vpop.xlane.xlu0 %1162
        %1164 = vadd.xlane.f32.xlu0 %v1146
        %v1165 = vpop.xlane.xlu0 %1164
        %1166 = vadd.xlane.f32.xlu0 %v1147
        %v1167 = vpop.xlane.xlu0 %1166
        %1168 = vadd.xlane.f32.xlu0 %v1148
        %v1169 = vpop.xlane.xlu0 %1168
        %1170 = vadd.xlane.f32.xlu0 %v1149
        %v1171 = vpop.xlane.xlu0 %1170
        %1172 = vadd.xlane.f32.xlu0 %v1150
        %v1173 = vpop.xlane.xlu0 %1172
        %1174 = vadd.xlane.f32.xlu0 %v1151
        %v1175 = vpop.xlane.xlu0 %1174
        %1176 = vadd.xlane.f32.xlu0 %v1152
        %v1177 = vpop.xlane.xlu0 %1176
        %1178 = vadd.xlane.f32.xlu0 %v1153
        %v1179 = vpop.xlane.xlu0 %1178
        %1180 = vadd.xlane.f32.xlu0 %v1154
        %v1181 = vpop.xlane.xlu0 %1180
        %1182 = vadd.xlane.f32.xlu0 %v1155
        %v1183 = vpop.xlane.xlu0 %1182
        %1184 = vadd.xlane.f32.xlu0 %v1156
        %v1185 = vpop.xlane.xlu0 %1184
        %1186 = vadd.xlane.f32.xlu0 %v1157
        %v1187 = vpop.xlane.xlu0 %1186
        %1188 = vadd.xlane.f32.xlu0 %v1158
        %v1189 = vpop.xlane.xlu0 %1188
        %1190 = vadd.xlane.f32.xlu0 %v1159
        %v1191 = vpop.xlane.xlu0 %1190
        %v1192 = vmul.f32 %v1161, 0.03125
        %v1193 = vmul.f32 %v1163, 0.03125
        %v1194 = vmul.f32 %v1165, 0.03125
        %v1195 = vmul.f32 %v1167, 0.03125
        %v1196 = vmul.f32 %v1169, 0.03125
        %v1197 = vmul.f32 %v1171, 0.03125
        %v1198 = vmul.f32 %v1173, 0.03125
        %v1199 = vmul.f32 %v1175, 0.03125
        %v1200 = vmul.f32 %v1177, 0.03125
        %v1201 = vmul.f32 %v1179, 0.03125
        %v1202 = vmul.f32 %v1181, 0.03125
        %v1203 = vmul.f32 %v1183, 0.03125
        %v1204 = vmul.f32 %v1185, 0.03125
        %v1205 = vmul.f32 %v1187, 0.03125
        %v1206 = vmul.f32 %v1189, 0.03125
        %v1207 = vmul.f32 %v1191, 0.03125
        %v1208 = vsub.f32 %v1080, %v1128
        %v1209 = vsub.f32 %v1081, %v1129
        %v1210 = vsub.f32 %v1082, %v1130
        %v1211 = vsub.f32 %v1083, %v1131
        %v1212 = vsub.f32 %v1084, %v1132
        %v1213 = vsub.f32 %v1085, %v1133
        %v1214 = vsub.f32 %v1086, %v1134
        %v1215 = vsub.f32 %v1087, %v1135
        %v1216 = vsub.f32 %v1088, %v1136
        %v1217 = vsub.f32 %v1089, %v1137
        %v1218 = vsub.f32 %v1090, %v1138
        %v1219 = vsub.f32 %v1091, %v1139
        %v1220 = vsub.f32 %v1092, %v1140
        %v1221 = vsub.f32 %v1093, %v1141
        %v1222 = vsub.f32 %v1094, %v1142
        %v1223 = vsub.f32 %v1095, %v1143
        %v1224 = vmul.f32 %v1128, %v1128
        %v1225 = vmul.f32 %v1129, %v1129
        %v1226 = vmul.f32 %v1130, %v1130
        %v1227 = vmul.f32 %v1131, %v1131
        %v1228 = vmul.f32 %v1132, %v1132
        %v1229 = vmul.f32 %v1133, %v1133
        %v1230 = vmul.f32 %v1134, %v1134
        %v1231 = vmul.f32 %v1135, %v1135
        %v1232 = vmul.f32 %v1136, %v1136
        %v1233 = vmul.f32 %v1137, %v1137
        %v1234 = vmul.f32 %v1138, %v1138
        %v1235 = vmul.f32 %v1139, %v1139
        %v1236 = vmul.f32 %v1140, %v1140
        %v1237 = vmul.f32 %v1141, %v1141
        %v1238 = vmul.f32 %v1142, %v1142
        %v1239 = vmul.f32 %v1143, %v1143
        %v1240 = vsub.f32 %v1192, %v1224
        %v1241 = vsub.f32 %v1193, %v1225
        %v1242 = vsub.f32 %v1194, %v1226
        %v1243 = vsub.f32 %v1195, %v1227
        %v1244 = vsub.f32 %v1196, %v1228
        %v1245 = vsub.f32 %v1197, %v1229
        %v1246 = vsub.f32 %v1198, %v1230
        %v1247 = vsub.f32 %v1199, %v1231
        %v1248 = vsub.f32 %v1200, %v1232
        %v1249 = vsub.f32 %v1201, %v1233
        %v1250 = vsub.f32 %v1202, %v1234
        %v1251 = vsub.f32 %v1203, %v1235
        %v1252 = vsub.f32 %v1204, %v1236
        %v1253 = vsub.f32 %v1205, %v1237
        %v1254 = vsub.f32 %v1206, %v1238
        %v1255 = vsub.f32 %v1207, %v1239
        %v1256 = vadd.f32 %v1240, 1e-05
        %v1257 = vadd.f32 %v1241, 1e-05
        %v1258 = vadd.f32 %v1242, 1e-05
        %v1259 = vadd.f32 %v1243, 1e-05
        %v1260 = vadd.f32 %v1244, 1e-05
        %v1261 = vadd.f32 %v1245, 1e-05
        %v1262 = vadd.f32 %v1246, 1e-05
        %v1263 = vadd.f32 %v1247, 1e-05
        %v1264 = vadd.f32 %v1248, 1e-05
        %v1265 = vadd.f32 %v1249, 1e-05
        %v1266 = vadd.f32 %v1250, 1e-05
        %v1267 = vadd.f32 %v1251, 1e-05
        %v1268 = vadd.f32 %v1252, 1e-05
        %v1269 = vadd.f32 %v1253, 1e-05
        %v1270 = vadd.f32 %v1254, 1e-05
        %v1271 = vadd.f32 %v1255, 1e-05
        %v1272 = vrsqrt.pop %v1256
        %v1273 = vrsqrt.pop %v1257
        %v1274 = vrsqrt.pop %v1258
        %v1275 = vrsqrt.pop %v1259
        %v1276 = vrsqrt.pop %v1260
        %v1277 = vrsqrt.pop %v1261
        %v1278 = vrsqrt.pop %v1262
        %v1279 = vrsqrt.pop %v1263
        %v1280 = vrsqrt.pop %v1264
        %v1281 = vrsqrt.pop %v1265
        %v1282 = vrsqrt.pop %v1266
        %v1283 = vrsqrt.pop %v1267
        %v1284 = vrsqrt.pop %v1268
        %v1285 = vrsqrt.pop %v1269
        %v1286 = vrsqrt.pop %v1270
        %v1287 = vrsqrt.pop %v1271
        %v1288 = vmul.f32 %v1208, %v1272
        %v1289 = vmul.f32 %v1209, %v1273
        %v1290 = vmul.f32 %v1210, %v1274
        %v1291 = vmul.f32 %v1211, %v1275
        %v1292 = vmul.f32 %v1212, %v1276
        %v1293 = vmul.f32 %v1213, %v1277
        %v1294 = vmul.f32 %v1214, %v1278
        %v1295 = vmul.f32 %v1215, %v1279
        %v1296 = vmul.f32 %v1216, %v1280
        %v1297 = vmul.f32 %v1217, %v1281
        %v1298 = vmul.f32 %v1218, %v1282
        %v1299 = vmul.f32 %v1219, %v1283
        %v1300 = vmul.f32 %v1220, %v1284
        %v1301 = vmul.f32 %v1221, %v1285
        %v1302 = vmul.f32 %v1222, %v1286
        %v1303 = vmul.f32 %v1223, %v1287
        %v1305 = vlaneseq
        %v1306 = vshrl.u32 %v1305, 7
        %v1307 = vsub.s32 0, %v1306
        %v1308 = vrot.slane %v879, %v1307
        %v1310 = vmul.f32 %v1288, %v1308
        %v1311 = vmul.f32 %v1289, %v1308
        %v1312 = vmul.f32 %v1290, %v1308
        %v1313 = vmul.f32 %v1291, %v1308
        %v1314 = vmul.f32 %v1292, %v1308
        %v1315 = vmul.f32 %v1293, %v1308
        %v1316 = vmul.f32 %v1294, %v1308
        %v1317 = vmul.f32 %v1295, %v1308
        %v1318 = vmul.f32 %v1296, %v1308
        %v1319 = vmul.f32 %v1297, %v1308
        %v1320 = vmul.f32 %v1298, %v1308
        %v1321 = vmul.f32 %v1299, %v1308
        %v1322 = vmul.f32 %v1300, %v1308
        %v1323 = vmul.f32 %v1301, %v1308
        %v1324 = vmul.f32 %v1302, %v1308
        %v1325 = vmul.f32 %v1303, %v1308
        %v1327 = vlaneseq
        %v1328 = vshrl.u32 %v1327, 7
        %v1329 = vsub.s32 0, %v1328
        %v1330 = vrot.slane %v880, %v1329
        %v1332 = vadd.f32 %v1310, %v1330
        %v1333 = vadd.f32 %v1311, %v1330
        %v1334 = vadd.f32 %v1312, %v1330
        %v1335 = vadd.f32 %v1313, %v1330
        %v1336 = vadd.f32 %v1314, %v1330
        %v1337 = vadd.f32 %v1315, %v1330
        %v1338 = vadd.f32 %v1316, %v1330
        %v1339 = vadd.f32 %v1317, %v1330
        %v1340 = vadd.f32 %v1318, %v1330
        %v1341 = vadd.f32 %v1319, %v1330
        %v1342 = vadd.f32 %v1320, %v1330
        %v1343 = vadd.f32 %v1321, %v1330
        %v1344 = vadd.f32 %v1322, %v1330
        %v1345 = vadd.f32 %v1323, %v1330
        %v1346 = vadd.f32 %v1324, %v1330
        %v1347 = vadd.f32 %v1325, %v1330
        %v1348 = vpack.c.bf16 %v1333, %v1332
        %v1349 = vpack.c.bf16 %v1335, %v1334
        %v1350 = vpack.c.bf16 %v1337, %v1336
        %v1351 = vpack.c.bf16 %v1339, %v1338
        %v1352 = vpack.c.bf16 %v1341, %v1340
        %v1353 = vpack.c.bf16 %v1343, %v1342
        %v1354 = vpack.c.bf16 %v1345, %v1344
        %v1355 = vpack.c.bf16 %v1347, %v1346
        %v1358 = vlaneseq
        %v1359 = vshrl.u32 %v1358, 7
        %v1360 = vsub.s32 0, %v1359
        %v1361 = vrot.slane %v977, %v1360
        %v1362 = vlaneseq
        %v1363 = vshrl.u32 %v1362, 7
        %v1364 = vsub.s32 1, %v1363
        %v1365 = vrot.slane %v977, %v1364
        %v1366 = vlaneseq
        %v1367 = vshrl.u32 %v1366, 7
        %v1368 = vsub.s32 2, %v1367
        %v1369 = vrot.slane %v977, %v1368
        %v1370 = vlaneseq
        %v1371 = vshrl.u32 %v1370, 7
        %v1372 = vsub.s32 3, %v1371
        %v1373 = vrot.slane %v977, %v1372
        %v1374 = vlaneseq
        %v1375 = vshrl.u32 %v1374, 7
        %v1376 = vsub.s32 4, %v1375
        %v1377 = vrot.slane %v977, %v1376
        %v1378 = vlaneseq
        %v1379 = vshrl.u32 %v1378, 7
        %v1380 = vsub.s32 5, %v1379
        %v1381 = vrot.slane %v977, %v1380
        %v1382 = vlaneseq
        %v1383 = vshrl.u32 %v1382, 7
        %v1384 = vsub.s32 6, %v1383
        %v1385 = vrot.slane %v977, %v1384
        %v1386 = vlaneseq
        %v1387 = vshrl.u32 %v1386, 7
        %v1388 = vsub.s32 7, %v1387
        %v1389 = vrot.slane %v977, %v1388
        %v1390 = vlaneseq
        %v1391 = vshrl.u32 %v1390, 7
        %v1392 = vsub.s32 0, %v1391
        %v1393 = vrot.slane %v978, %v1392
        %v1394 = vlaneseq
        %v1395 = vshrl.u32 %v1394, 7
        %v1396 = vsub.s32 1, %v1395
        %v1397 = vrot.slane %v978, %v1396
        %v1398 = vlaneseq
        %v1399 = vshrl.u32 %v1398, 7
        %v1400 = vsub.s32 2, %v1399
        %v1401 = vrot.slane %v978, %v1400
        %v1402 = vlaneseq
        %v1403 = vshrl.u32 %v1402, 7
        %v1404 = vsub.s32 3, %v1403
        %v1405 = vrot.slane %v978, %v1404
        %v1514 = vunpack.c.l.b16 %v881
        %v1515 = vunpack.c.h.b16 %v881
        %v1516 = vunpack.c.l.b16 %v882
        %v1517 = vunpack.c.h.b16 %v882
        %v1518 = vunpack.c.l.b16 %v883
        %v1519 = vunpack.c.h.b16 %v883
        %v1520 = vunpack.c.l.b16 %v884
        %v1521 = vunpack.c.h.b16 %v884
        %v1522 = vunpack.c.l.b16 %v885
        %v1523 = vunpack.c.h.b16 %v885
        %v1524 = vunpack.c.l.b16 %v886
        %v1525 = vunpack.c.h.b16 %v886
        %v1526 = vunpack.c.l.b16 %v887
        %v1527 = vunpack.c.h.b16 %v887
        %v1528 = vunpack.c.l.b16 %v888
        %v1529 = vunpack.c.h.b16 %v888
        %v1530 = vunpack.c.l.b16 %v889
        %v1531 = vunpack.c.h.b16 %v889
        %v1532 = vunpack.c.l.b16 %v890
        %v1533 = vunpack.c.h.b16 %v890
        %v1534 = vunpack.c.l.b16 %v891
        %v1535 = vunpack.c.h.b16 %v891
        %v1536 = vunpack.c.l.b16 %v892
        %v1537 = vunpack.c.h.b16 %v892
        %v1538 = vunpack.c.l.b16 %v893
        %v1539 = vunpack.c.h.b16 %v893
        %v1540 = vunpack.c.l.b16 %v894
        %v1541 = vunpack.c.h.b16 %v894
        %v1542 = vunpack.c.l.b16 %v895
        %v1543 = vunpack.c.h.b16 %v895
        %v1544 = vunpack.c.l.b16 %v896
        %v1545 = vunpack.c.h.b16 %v896
        %v1546 = vunpack.c.l.b16 %v897
        %v1547 = vunpack.c.h.b16 %v897
        %v1548 = vunpack.c.l.b16 %v898
        %v1549 = vunpack.c.h.b16 %v898
        %v1550 = vunpack.c.l.b16 %v899
        %v1551 = vunpack.c.h.b16 %v899
        %v1552 = vunpack.c.l.b16 %v900
        %v1553 = vunpack.c.h.b16 %v900
        %v1554 = vunpack.c.l.b16 %v901
        %v1555 = vunpack.c.h.b16 %v901
        %v1556 = vunpack.c.l.b16 %v902
        %v1557 = vunpack.c.h.b16 %v902
        %v1558 = vunpack.c.l.b16 %v903
        %v1559 = vunpack.c.h.b16 %v903
        %v1560 = vunpack.c.l.b16 %v904
        %v1561 = vunpack.c.h.b16 %v904
        %v1562 = vunpack.c.l.b16 %v905
        %v1563 = vunpack.c.h.b16 %v905
        %v1564 = vunpack.c.l.b16 %v906
        %v1565 = vunpack.c.h.b16 %v906
        %v1566 = vunpack.c.l.b16 %v907
        %v1567 = vunpack.c.h.b16 %v907
        %v1568 = vunpack.c.l.b16 %v908
        %v1569 = vunpack.c.h.b16 %v908
        %v1570 = vunpack.c.l.b16 %v909
        %v1571 = vunpack.c.h.b16 %v909
        %v1572 = vunpack.c.l.b16 %v910
        %v1573 = vunpack.c.h.b16 %v910
        %v1574 = vunpack.c.l.b16 %v911
        %v1575 = vunpack.c.h.b16 %v911
        %v1576 = vunpack.c.l.b16 %v912
        %v1577 = vunpack.c.h.b16 %v912
        %v1578 = vunpack.c.l.b16 %v913
        %v1579 = vunpack.c.h.b16 %v913
        %v1580 = vunpack.c.l.b16 %v914
        %v1581 = vunpack.c.h.b16 %v914
        %v1582 = vunpack.c.l.b16 %v915
        %v1583 = vunpack.c.h.b16 %v915
        %v1584 = vunpack.c.l.b16 %v916
        %v1585 = vunpack.c.h.b16 %v916
        %v1586 = vunpack.c.l.b16 %v917
        %v1587 = vunpack.c.h.b16 %v917
        %v1588 = vunpack.c.l.b16 %v918
        %v1589 = vunpack.c.h.b16 %v918
        %v1590 = vunpack.c.l.b16 %v919
        %v1591 = vunpack.c.h.b16 %v919
        %v1592 = vunpack.c.l.b16 %v920
        %v1593 = vunpack.c.h.b16 %v920
        %v1594 = vunpack.c.l.b16 %v921
        %v1595 = vunpack.c.h.b16 %v921
        %v1596 = vunpack.c.l.b16 %v922
        %v1597 = vunpack.c.h.b16 %v922
        %v1598 = vunpack.c.l.b16 %v923
        %v1599 = vunpack.c.h.b16 %v923
        %v1600 = vunpack.c.l.b16 %v924
        %v1601 = vunpack.c.h.b16 %v924
        %v1602 = vunpack.c.l.b16 %v925
        %v1603 = vunpack.c.h.b16 %v925
        %v1604 = vunpack.c.l.b16 %v926
        %v1605 = vunpack.c.h.b16 %v926
        %v1606 = vunpack.c.l.b16 %v927
        %v1607 = vunpack.c.h.b16 %v927
        %v1608 = vunpack.c.l.b16 %v928
        %v1609 = vunpack.c.h.b16 %v928
        %v1610 = vunpack.c.l.b16 %v929
        %v1611 = vunpack.c.h.b16 %v929
        %v1612 = vunpack.c.l.b16 %v930
        %v1613 = vunpack.c.h.b16 %v930
        %v1614 = vunpack.c.l.b16 %v931
        %v1615 = vunpack.c.h.b16 %v931
        %v1616 = vunpack.c.l.b16 %v932
        %v1617 = vunpack.c.h.b16 %v932
        %v1618 = vunpack.c.l.b16 %v933
        %v1619 = vunpack.c.h.b16 %v933
        %v1620 = vunpack.c.l.b16 %v934
        %v1621 = vunpack.c.h.b16 %v934
        %v1622 = vunpack.c.l.b16 %v935
        %v1623 = vunpack.c.h.b16 %v935
        %v1624 = vunpack.c.l.b16 %v936
        %v1625 = vunpack.c.h.b16 %v936
        %v1626 = vunpack.c.l.b16 %v937
        %v1627 = vunpack.c.h.b16 %v937
        %v1628 = vunpack.c.l.b16 %v938
        %v1629 = vunpack.c.h.b16 %v938
        %v1630 = vunpack.c.l.b16 %v939
        %v1631 = vunpack.c.h.b16 %v939
        %v1632 = vunpack.c.l.b16 %v940
        %v1633 = vunpack.c.h.b16 %v940
        %v1634 = vunpack.c.l.b16 %v941
        %v1635 = vunpack.c.h.b16 %v941
        %v1636 = vunpack.c.l.b16 %v942
        %v1637 = vunpack.c.h.b16 %v942
        %v1638 = vunpack.c.l.b16 %v943
        %v1639 = vunpack.c.h.b16 %v943
        %v1640 = vunpack.c.l.b16 %v944
        %v1641 = vunpack.c.h.b16 %v944
        %v1642 = vunpack.c.l.b16 %v945
        %v1643 = vunpack.c.h.b16 %v945
        %v1644 = vunpack.c.l.b16 %v946
        %v1645 = vunpack.c.h.b16 %v946
        %v1646 = vunpack.c.l.b16 %v947
        %v1647 = vunpack.c.h.b16 %v947
        %v1648 = vunpack.c.l.b16 %v948
        %v1649 = vunpack.c.h.b16 %v948
        %v1650 = vunpack.c.l.b16 %v949
        %v1651 = vunpack.c.h.b16 %v949
        %v1652 = vunpack.c.l.b16 %v950
        %v1653 = vunpack.c.h.b16 %v950
        %v1654 = vunpack.c.l.b16 %v951
        %v1655 = vunpack.c.h.b16 %v951
        %v1656 = vunpack.c.l.b16 %v952
        %v1657 = vunpack.c.h.b16 %v952
        %v1658 = vunpack.c.l.b16 %v953
        %v1659 = vunpack.c.h.b16 %v953
        %v1660 = vunpack.c.l.b16 %v954
        %v1661 = vunpack.c.h.b16 %v954
        %v1662 = vunpack.c.l.b16 %v955
        %v1663 = vunpack.c.h.b16 %v955
        %v1664 = vunpack.c.l.b16 %v956
        %v1665 = vunpack.c.h.b16 %v956
        %v1666 = vunpack.c.l.b16 %v957
        %v1667 = vunpack.c.h.b16 %v957
        %v1668 = vunpack.c.l.b16 %v958
        %v1669 = vunpack.c.h.b16 %v958
        %v1670 = vunpack.c.l.b16 %v959
        %v1671 = vunpack.c.h.b16 %v959
        %v1672 = vunpack.c.l.b16 %v960
        %v1673 = vunpack.c.h.b16 %v960
        %v1674 = vunpack.c.l.b16 %v961
        %v1675 = vunpack.c.h.b16 %v961
        %v1676 = vunpack.c.l.b16 %v962
        %v1677 = vunpack.c.h.b16 %v962
        %v1678 = vunpack.c.l.b16 %v963
        %v1679 = vunpack.c.h.b16 %v963
        %v1680 = vunpack.c.l.b16 %v964
        %v1681 = vunpack.c.h.b16 %v964
        %v1682 = vunpack.c.l.b16 %v965
        %v1683 = vunpack.c.h.b16 %v965
        %v1684 = vunpack.c.l.b16 %v966
        %v1685 = vunpack.c.h.b16 %v966
        %v1686 = vunpack.c.l.b16 %v967
        %v1687 = vunpack.c.h.b16 %v967
        %v1688 = vunpack.c.l.b16 %v968
        %v1689 = vunpack.c.h.b16 %v968
        %v1690 = vunpack.c.l.b16 %v969
        %v1691 = vunpack.c.h.b16 %v969
        %v1692 = vunpack.c.l.b16 %v970
        %v1693 = vunpack.c.h.b16 %v970
        %v1694 = vunpack.c.l.b16 %v971
        %v1695 = vunpack.c.h.b16 %v971
        %v1696 = vunpack.c.l.b16 %v972
        %v1697 = vunpack.c.h.b16 %v972
        %v1698 = vunpack.c.l.b16 %v973
        %v1699 = vunpack.c.h.b16 %v973
        %v1700 = vunpack.c.l.b16 %v974
        %v1701 = vunpack.c.h.b16 %v974
        %v1702 = vunpack.c.l.b16 %v975
        %v1703 = vunpack.c.h.b16 %v975
        %v1704 = vunpack.c.l.b16 %v976
        %v1705 = vunpack.c.h.b16 %v976
        %v1706 = vpack.c.b16 %v1526, %v1514
        %v1707 = vpack.c.b16 %v1527, %v1515
        %v1708 = vpack.c.b16 %v1528, %v1516
        %v1709 = vpack.c.b16 %v1529, %v1517
        %v1710 = vpack.c.b16 %v1530, %v1518
        %v1711 = vpack.c.b16 %v1531, %v1519
        %v1712 = vpack.c.b16 %v1532, %v1520
        %v1713 = vpack.c.b16 %v1533, %v1521
        %v1714 = vpack.c.b16 %v1534, %v1522
        %v1715 = vpack.c.b16 %v1535, %v1523
        %v1716 = vpack.c.b16 %v1536, %v1524
        %v1717 = vpack.c.b16 %v1537, %v1525
        %v1718 = vpack.c.b16 %v1550, %v1538
        %v1719 = vpack.c.b16 %v1551, %v1539
        %v1720 = vpack.c.b16 %v1552, %v1540
        %v1721 = vpack.c.b16 %v1553, %v1541
        %v1722 = vpack.c.b16 %v1554, %v1542
        %v1723 = vpack.c.b16 %v1555, %v1543
        %v1724 = vpack.c.b16 %v1556, %v1544
        %v1725 = vpack.c.b16 %v1557, %v1545
        %v1726 = vpack.c.b16 %v1558, %v1546
        %v1727 = vpack.c.b16 %v1559, %v1547
        %v1728 = vpack.c.b16 %v1560, %v1548
        %v1729 = vpack.c.b16 %v1561, %v1549
        %v1730 = vpack.c.b16 %v1574, %v1562
        %v1731 = vpack.c.b16 %v1575, %v1563
        %v1732 = vpack.c.b16 %v1576, %v1564
        %v1733 = vpack.c.b16 %v1577, %v1565
        %v1734 = vpack.c.b16 %v1578, %v1566
        %v1735 = vpack.c.b16 %v1579, %v1567
        %v1736 = vpack.c.b16 %v1580, %v1568
        %v1737 = vpack.c.b16 %v1581, %v1569
        %v1738 = vpack.c.b16 %v1582, %v1570
        %v1739 = vpack.c.b16 %v1583, %v1571
        %v1740 = vpack.c.b16 %v1584, %v1572
        %v1741 = vpack.c.b16 %v1585, %v1573
        %v1742 = vpack.c.b16 %v1598, %v1586
        %v1743 = vpack.c.b16 %v1599, %v1587
        %v1744 = vpack.c.b16 %v1600, %v1588
        %v1745 = vpack.c.b16 %v1601, %v1589
        %v1746 = vpack.c.b16 %v1602, %v1590
        %v1747 = vpack.c.b16 %v1603, %v1591
        %v1748 = vpack.c.b16 %v1604, %v1592
        %v1749 = vpack.c.b16 %v1605, %v1593
        %v1750 = vpack.c.b16 %v1606, %v1594
        %v1751 = vpack.c.b16 %v1607, %v1595
        %v1752 = vpack.c.b16 %v1608, %v1596
        %v1753 = vpack.c.b16 %v1609, %v1597
        %v1754 = vpack.c.b16 %v1622, %v1610
        %v1755 = vpack.c.b16 %v1623, %v1611
        %v1756 = vpack.c.b16 %v1624, %v1612
        %v1757 = vpack.c.b16 %v1625, %v1613
        %v1758 = vpack.c.b16 %v1626, %v1614
        %v1759 = vpack.c.b16 %v1627, %v1615
        %v1760 = vpack.c.b16 %v1628, %v1616
        %v1761 = vpack.c.b16 %v1629, %v1617
        %v1762 = vpack.c.b16 %v1630, %v1618
        %v1763 = vpack.c.b16 %v1631, %v1619
        %v1764 = vpack.c.b16 %v1632, %v1620
        %v1765 = vpack.c.b16 %v1633, %v1621
        %v1766 = vpack.c.b16 %v1646, %v1634
        %v1767 = vpack.c.b16 %v1647, %v1635
        %v1768 = vpack.c.b16 %v1648, %v1636
        %v1769 = vpack.c.b16 %v1649, %v1637
        %v1770 = vpack.c.b16 %v1650, %v1638
        %v1771 = vpack.c.b16 %v1651, %v1639
        %v1772 = vpack.c.b16 %v1652, %v1640
        %v1773 = vpack.c.b16 %v1653, %v1641
        %v1774 = vpack.c.b16 %v1654, %v1642
        %v1775 = vpack.c.b16 %v1655, %v1643
        %v1776 = vpack.c.b16 %v1656, %v1644
        %v1777 = vpack.c.b16 %v1657, %v1645
        %v1778 = vpack.c.b16 %v1670, %v1658
        %v1779 = vpack.c.b16 %v1671, %v1659
        %v1780 = vpack.c.b16 %v1672, %v1660
        %v1781 = vpack.c.b16 %v1673, %v1661
        %v1782 = vpack.c.b16 %v1674, %v1662
        %v1783 = vpack.c.b16 %v1675, %v1663
        %v1784 = vpack.c.b16 %v1676, %v1664
        %v1785 = vpack.c.b16 %v1677, %v1665
        %v1786 = vpack.c.b16 %v1678, %v1666
        %v1787 = vpack.c.b16 %v1679, %v1667
        %v1788 = vpack.c.b16 %v1680, %v1668
        %v1789 = vpack.c.b16 %v1681, %v1669
        %v1790 = vpack.c.b16 %v1694, %v1682
        %v1791 = vpack.c.b16 %v1695, %v1683
        %v1792 = vpack.c.b16 %v1696, %v1684
        %v1793 = vpack.c.b16 %v1697, %v1685
        %v1794 = vpack.c.b16 %v1698, %v1686
        %v1795 = vpack.c.b16 %v1699, %v1687
        %v1796 = vpack.c.b16 %v1700, %v1688
        %v1797 = vpack.c.b16 %v1701, %v1689
        %v1798 = vpack.c.b16 %v1702, %v1690
        %v1799 = vpack.c.b16 %v1703, %v1691
        %v1800 = vpack.c.b16 %v1704, %v1692
        %v1801 = vpack.c.b16 %v1705, %v1693
        %1898 = vmatprep.subr.bf16.mxu0 %v1707
        %1899 = vmatpush1.bf16.msra.mxu0 %v1706
        %1900 = vmatprep.subr.bf16.mxu0 %v1719
        %1901 = vmatpush1.bf16.msra.mxu0 %v1718
        %1902 = vmatprep.subr.bf16.mxu0 %v1731
        %1903 = vmatpush1.bf16.msra.mxu0 %v1730
        %1904 = vmatprep.subr.bf16.mxu0 %v1743
        %1905 = vmatpush1.bf16.msra.mxu0 %v1742
        %1906 = vmatprep.subr.bf16.mxu0 %v1755
        %1907 = vmatpush1.bf16.msra.mxu0 %v1754
        %1908 = vmatprep.subr.bf16.mxu0 %v1767
        %1909 = vmatpush1.bf16.msra.mxu0 %v1766
        %1910 = vmatprep.subr.bf16.mxu0 %v1779
        %1911 = vmatpush1.bf16.msra.mxu0 %v1778
        %1912 = vmatprep.subr.bf16.mxu0 %v1791
        %1913 = vmatpush1.bf16.msra.mxu0 %v1790
        %1914 = vmatprep.subr.bf16.mxu0 0
        %1915 = vmatpush1.bf16.msra.mxu0 0
        %1916 = vmatprep.subr.bf16.mxu0 0
        %1917 = vmatpush1.bf16.msra.mxu0 0
        %1918 = vmatprep.subr.bf16.mxu0 0
        %1919 = vmatpush1.bf16.msra.mxu0 0
        %1920 = vmatprep.subr.bf16.mxu0 0
        %1921 = vmatpush1.bf16.msra.mxu0 0
        %1922 = vmatprep.subr.bf16.mxu0 0
        %1923 = vmatpush1.bf16.msra.mxu0 0
        %1924 = vmatprep.subr.bf16.mxu0 0
        %1925 = vmatpush1.bf16.msra.mxu0 0
        %1926 = vmatprep.subr.bf16.mxu0 0
        %1927 = vmatpush1.bf16.msra.mxu0 0
        %1928 = vmatprep.subr.bf16.mxu0 0
        %1929 = vmatpush1.bf16.msra.mxu0 0
        %1930 = vmatprep.mubr.bf16.mxu0 0
        %1931 = vmatmul.mubr.bf16.gmra.mrb[0].mxu0 %v1348
        %v1932 = vpop.f32.mrb[0].mxu0
        %v1933 = vadd.f32 %v1361, %v1932
        %v1934 = vpop.f32.mrb[0].mxu0
        %v1935 = vadd.f32 %v1365, %v1934
        %v1936 = vpop.f32.mrb[0].mxu0
        %v1937 = vadd.f32 %v1361, %v1936
        %v1938 = vpop.f32.mrb[0].mxu0
        %v1939 = vadd.f32 %v1365, %v1938
        %1940 = vmatprep.mubr.bf16.mxu0 0
        %1941 = vmatmul.mubr.bf16.gmra.mrb[0].mxu0 %v1349
        %v1942 = vpop.f32.mrb[0].mxu0
        %v1943 = vadd.f32 %v1361, %v1942
        %v1944 = vpop.f32.mrb[0].mxu0
        %v1945 = vadd.f32 %v1365, %v1944
        %v1946 = vpop.f32.mrb[0].mxu0
        %v1947 = vadd.f32 %v1361, %v1946
        %v1948 = vpop.f32.mrb[0].mxu0
        %v1949 = vadd.f32 %v1365, %v1948
        %1950 = vmatprep.mubr.bf16.mxu0 0
        %1951 = vmatmul.mubr.bf16.gmra.mrb[0].mxu0 %v1350
        %v1952 = vpop.f32.mrb[0].mxu0
        %v1953 = vadd.f32 %v1361, %v1952
        %v1954 = vpop.f32.mrb[0].mxu0
        %v1955 = vadd.f32 %v1365, %v1954
        %v1956 = vpop.f32.mrb[0].mxu0
        %v1957 = vadd.f32 %v1361, %v1956
        %v1958 = vpop.f32.mrb[0].mxu0
        %v1959 = vadd.f32 %v1365, %v1958
        %1960 = vmatprep.mubr.bf16.mxu0 0
        %1961 = vmatmul.mubr.bf16.gmra.mrb[0].mxu0 %v1351
        %v1962 = vpop.f32.mrb[0].mxu0
        %v1963 = vadd.f32 %v1361, %v1962
        %v1964 = vpop.f32.mrb[0].mxu0
        %v1965 = vadd.f32 %v1365, %v1964
        %v1966 = vpop.f32.mrb[0].mxu0
        %v1967 = vadd.f32 %v1361, %v1966
        %v1968 = vpop.f32.mrb[0].mxu0
        %v1969 = vadd.f32 %v1365, %v1968
        %1970 = vmatprep.mubr.bf16.mxu0 0
        %1971 = vmatmul.mubr.bf16.gmra.mrb[0].mxu0 %v1352
        %v1972 = vpop.f32.mrb[0].mxu0
        %v1973 = vadd.f32 %v1361, %v1972
        %v1974 = vpop.f32.mrb[0].mxu0
        %v1975 = vadd.f32 %v1365, %v1974
        %v1976 = vpop.f32.mrb[0].mxu0
        %v1977 = vadd.f32 %v1361, %v1976
        %v1978 = vpop.f32.mrb[0].mxu0
        %v1979 = vadd.f32 %v1365, %v1978
        %1980 = vmatprep.mubr.bf16.mxu0 0
        %1981 = vmatmul.mubr.bf16.gmra.mrb[0].mxu0 %v1353
        %v1982 = vpop.f32.mrb[0].mxu0
        %v1983 = vadd.f32 %v1361, %v1982
        %v1984 = vpop.f32.mrb[0].mxu0
        %v1985 = vadd.f32 %v1365, %v1984
        %v1986 = vpop.f32.mrb[0].mxu0
        %v1987 = vadd.f32 %v1361, %v1986
        %v1988 = vpop.f32.mrb[0].mxu0
        %v1989 = vadd.f32 %v1365, %v1988
        %1990 = vmatprep.mubr.bf16.mxu0 0
        %1991 = vmatmul.mubr.bf16.gmra.mrb[0].mxu0 %v1354
        %v1992 = vpop.f32.mrb[0].mxu0
        %v1993 = vadd.f32 %v1361, %v1992
        %v1994 = vpop.f32.mrb[0].mxu0
        %v1995 = vadd.f32 %v1365, %v1994
        %v1996 = vpop.f32.mrb[0].mxu0
        %v1997 = vadd.f32 %v1361, %v1996
        %v1998 = vpop.f32.mrb[0].mxu0
        %v1999 = vadd.f32 %v1365, %v1998
        %2000 = vmatprep.mubr.bf16.mxu0 0
        %2001 = vmatmul.mubr.bf16.gmra.mrb[0].mxu0 %v1355
        %v2002 = vpop.f32.mrb[0].mxu0
        %v2003 = vadd.f32 %v1361, %v2002
        %v2004 = vpop.f32.mrb[0].mxu0
        %v2005 = vadd.f32 %v1365, %v2004
        %v2006 = vpop.f32.mrb[0].mxu0
        %v2007 = vadd.f32 %v1361, %v2006
        %v2008 = vpop.f32.mrb[0].mxu0
        %v2009 = vadd.f32 %v1365, %v2008
        %2010 = vdwg.mxu0
        %2011 = vmatprep.subr.bf16.mxu0 %v1709
        %2012 = vmatpush1.bf16.msra.mxu0 %v1708
        %2013 = vmatprep.subr.bf16.mxu0 %v1721
        %2014 = vmatpush1.bf16.msra.mxu0 %v1720
        %2015 = vmatprep.subr.bf16.mxu0 %v1733
        %2016 = vmatpush1.bf16.msra.mxu0 %v1732
        %2017 = vmatprep.subr.bf16.mxu0 %v1745
        %2018 = vmatpush1.bf16.msra.mxu0 %v1744
        %2019 = vmatprep.subr.bf16.mxu0 %v1757
        %2020 = vmatpush1.bf16.msra.mxu0 %v1756
        %2021 = vmatprep.subr.bf16.mxu0 %v1769
        %2022 = vmatpush1.bf16.msra.mxu0 %v1768
        %2023 = vmatprep.subr.bf16.mxu0 %v1781
        %2024 = vmatpush1.bf16.msra.mxu0 %v1780
        %2025 = vmatprep.subr.bf16.mxu0 %v1793
        %2026 = vmatpush1.bf16.msra.mxu0 %v1792
        %2027 = vmatprep.subr.bf16.mxu0 0
        %2028 = vmatpush1.bf16.msra.mxu0 0
        %2029 = vmatprep.subr.bf16.mxu0 0
        %2030 = vmatpush1.bf16.msra.mxu0 0
        %2031 = vmatprep.subr.bf16.mxu0 0
        %2032 = vmatpush1.bf16.msra.mxu0 0
        %2033 = vmatprep.subr.bf16.mxu0 0
        %2034 = vmatpush1.bf16.msra.mxu0 0
        %2035 = vmatprep.subr.bf16.mxu0 0
        %2036 = vmatpush1.bf16.msra.mxu0 0
        %2037 = vmatprep.subr.bf16.mxu0 0
        %2038 = vmatpush1.bf16.msra.mxu0 0
        %2039 = vmatprep.subr.bf16.mxu0 0
        %2040 = vmatpush1.bf16.msra.mxu0 0
        %2041 = vmatprep.subr.bf16.mxu0 0
        %2042 = vmatpush1.bf16.msra.mxu0 0
        %2043 = vmatprep.mubr.bf16.mxu0 0
        %2044 = vmatmul.mubr.bf16.gmra.mrb[0].mxu0 %v1348
        %v2045 = vpop.f32.mrb[0].mxu0
        %v2046 = vadd.f32 %v1369, %v2045
        %v2047 = vpop.f32.mrb[0].mxu0
        %v2048 = vadd.f32 %v1373, %v2047
        %v2049 = vpop.f32.mrb[0].mxu0
        %v2050 = vadd.f32 %v1369, %v2049
        %v2051 = vpop.f32.mrb[0].mxu0
        %v2052 = vadd.f32 %v1373, %v2051
        %2053 = vmatprep.mubr.bf16.mxu0 0
        %2054 = vmatmul.mubr.bf16.gmra.mrb[0].mxu0 %v1349
        %v2055 = vpop.f32.mrb[0].mxu0
        %v2056 = vadd.f32 %v1369, %v2055
        %v2057 = vpop.f32.mrb[0].mxu0
        %v2058 = vadd.f32 %v1373, %v2057
        %v2059 = vpop.f32.mrb[0].mxu0
        %v2060 = vadd.f32 %v1369, %v2059
        %v2061 = vpop.f32.mrb[0].mxu0
        %v2062 = vadd.f32 %v1373, %v2061
        %2063 = vmatprep.mubr.bf16.mxu0 0
        %2064 = vmatmul.mubr.bf16.gmra.mrb[0].mxu0 %v1350
        %v2065 = vpop.f32.mrb[0].mxu0
        %v2066 = vadd.f32 %v1369, %v2065
        %v2067 = vpop.f32.mrb[0].mxu0
        %v2068 = vadd.f32 %v1373, %v2067
        %v2069 = vpop.f32.mrb[0].mxu0
        %v2070 = vadd.f32 %v1369, %v2069
        %v2071 = vpop.f32.mrb[0].mxu0
        %v2072 = vadd.f32 %v1373, %v2071
        %2073 = vmatprep.mubr.bf16.mxu0 0
        %2074 = vmatmul.mubr.bf16.gmra.mrb[0].mxu0 %v1351
        %v2075 = vpop.f32.mrb[0].mxu0
        %v2076 = vadd.f32 %v1369, %v2075
        %v2077 = vpop.f32.mrb[0].mxu0
        %v2078 = vadd.f32 %v1373, %v2077
        %v2079 = vpop.f32.mrb[0].mxu0
        %v2080 = vadd.f32 %v1369, %v2079
        %v2081 = vpop.f32.mrb[0].mxu0
        %v2082 = vadd.f32 %v1373, %v2081
        %2083 = vmatprep.mubr.bf16.mxu0 0
        %2084 = vmatmul.mubr.bf16.gmra.mrb[0].mxu0 %v1352
        %v2085 = vpop.f32.mrb[0].mxu0
        %v2086 = vadd.f32 %v1369, %v2085
        %v2087 = vpop.f32.mrb[0].mxu0
        %v2088 = vadd.f32 %v1373, %v2087
        %v2089 = vpop.f32.mrb[0].mxu0
        %v2090 = vadd.f32 %v1369, %v2089
        %v2091 = vpop.f32.mrb[0].mxu0
        %v2092 = vadd.f32 %v1373, %v2091
        %2093 = vmatprep.mubr.bf16.mxu0 0
        %2094 = vmatmul.mubr.bf16.gmra.mrb[0].mxu0 %v1353
        %v2095 = vpop.f32.mrb[0].mxu0
        %v2096 = vadd.f32 %v1369, %v2095
        %v2097 = vpop.f32.mrb[0].mxu0
        %v2098 = vadd.f32 %v1373, %v2097
        %v2099 = vpop.f32.mrb[0].mxu0
        %v2100 = vadd.f32 %v1369, %v2099
        %v2101 = vpop.f32.mrb[0].mxu0
        %v2102 = vadd.f32 %v1373, %v2101
        %2103 = vmatprep.mubr.bf16.mxu0 0
        %2104 = vmatmul.mubr.bf16.gmra.mrb[0].mxu0 %v1354
        %v2105 = vpop.f32.mrb[0].mxu0
        %v2106 = vadd.f32 %v1369, %v2105
        %v2107 = vpop.f32.mrb[0].mxu0
        %v2108 = vadd.f32 %v1373, %v2107
        %v2109 = vpop.f32.mrb[0].mxu0
        %v2110 = vadd.f32 %v1369, %v2109
        %v2111 = vpop.f32.mrb[0].mxu0
        %v2112 = vadd.f32 %v1373, %v2111
        %2113 = vmatprep.mubr.bf16.mxu0 0
        %2114 = vmatmul.mubr.bf16.gmra.mrb[0].mxu0 %v1355
        %v2115 = vpop.f32.mrb[0].mxu0
        %v2116 = vadd.f32 %v1369, %v2115
        %v2117 = vpop.f32.mrb[0].mxu0
        %v2118 = vadd.f32 %v1373, %v2117
        %v2119 = vpop.f32.mrb[0].mxu0
        %v2120 = vadd.f32 %v1369, %v2119
        %v2121 = vpop.f32.mrb[0].mxu0
        %v2122 = vadd.f32 %v1373, %v2121
        %2123 = vdwg.mxu0
        %2124 = vmatprep.subr.bf16.mxu0 %v1711
        %2125 = vmatpush1.bf16.msra.mxu0 %v1710
        %2126 = vmatprep.subr.bf16.mxu0 %v1723
        %2127 = vmatpush1.bf16.msra.mxu0 %v1722
        %2128 = vmatprep.subr.bf16.mxu0 %v1735
        %2129 = vmatpush1.bf16.msra.mxu0 %v1734
        %2130 = vmatprep.subr.bf16.mxu0 %v1747
        %2131 = vmatpush1.bf16.msra.mxu0 %v1746
        %2132 = vmatprep.subr.bf16.mxu0 %v1759
        %2133 = vmatpush1.bf16.msra.mxu0 %v1758
        %2134 = vmatprep.subr.bf16.mxu0 %v1771
        %2135 = vmatpush1.bf16.msra.mxu0 %v1770
        %2136 = vmatprep.subr.bf16.mxu0 %v1783
        %2137 = vmatpush1.bf16.msra.mxu0 %v1782
        %2138 = vmatprep.subr.bf16.mxu0 %v1795
        %2139 = vmatpush1.bf16.msra.mxu0 %v1794
        %2140 = vmatprep.subr.bf16.mxu0 0
        %2141 = vmatpush1.bf16.msra.mxu0 0
        %2142 = vmatprep.subr.bf16.mxu0 0
        %2143 = vmatpush1.bf16.msra.mxu0 0
        %2144 = vmatprep.subr.bf16.mxu0 0
        %2145 = vmatpush1.bf16.msra.mxu0 0
        %2146 = vmatprep.subr.bf16.mxu0 0
        %2147 = vmatpush1.bf16.msra.mxu0 0
        %2148 = vmatprep.subr.bf16.mxu0 0
        %2149 = vmatpush1.bf16.msra.mxu0 0
        %2150 = vmatprep.subr.bf16.mxu0 0
        %2151 = vmatpush1.bf16.msra.mxu0 0
        %2152 = vmatprep.subr.bf16.mxu0 0
        %2153 = vmatpush1.bf16.msra.mxu0 0
        %2154 = vmatprep.subr.bf16.mxu0 0
        %2155 = vmatpush1.bf16.msra.mxu0 0
        %2156 = vmatprep.mubr.bf16.mxu0 0
        %2157 = vmatmul.mubr.bf16.gmra.mrb[0].mxu0 %v1348
        %v2158 = vpop.f32.mrb[0].mxu0
        %v2159 = vadd.f32 %v1377, %v2158
        %v2160 = vpop.f32.mrb[0].mxu0
        %v2161 = vadd.f32 %v1381, %v2160
        %v2162 = vpop.f32.mrb[0].mxu0
        %v2163 = vadd.f32 %v1377, %v2162
        %v2164 = vpop.f32.mrb[0].mxu0
        %v2165 = vadd.f32 %v1381, %v2164
        %2166 = vmatprep.mubr.bf16.mxu0 0
        %2167 = vmatmul.mubr.bf16.gmra.mrb[0].mxu0 %v1349
        %v2168 = vpop.f32.mrb[0].mxu0
        %v2169 = vadd.f32 %v1377, %v2168
        %v2170 = vpop.f32.mrb[0].mxu0
        %v2171 = vadd.f32 %v1381, %v2170
        %v2172 = vpop.f32.mrb[0].mxu0
        %v2173 = vadd.f32 %v1377, %v2172
        %v2174 = vpop.f32.mrb[0].mxu0
        %v2175 = vadd.f32 %v1381, %v2174
        %2176 = vmatprep.mubr.bf16.mxu0 0
        %2177 = vmatmul.mubr.bf16.gmra.mrb[0].mxu0 %v1350
        %v2178 = vpop.f32.mrb[0].mxu0
        %v2179 = vadd.f32 %v1377, %v2178
        %v2180 = vpop.f32.mrb[0].mxu0
        %v2181 = vadd.f32 %v1381, %v2180
        %v2182 = vpop.f32.mrb[0].mxu0
        %v2183 = vadd.f32 %v1377, %v2182
        %v2184 = vpop.f32.mrb[0].mxu0
        %v2185 = vadd.f32 %v1381, %v2184
        %2186 = vmatprep.mubr.bf16.mxu0 0
        %2187 = vmatmul.mubr.bf16.gmra.mrb[0].mxu0 %v1351
        %v2188 = vpop.f32.mrb[0].mxu0
        %v2189 = vadd.f32 %v1377, %v2188
        %v2190 = vpop.f32.mrb[0].mxu0
        %v2191 = vadd.f32 %v1381, %v2190
        %v2192 = vpop.f32.mrb[0].mxu0
        %v2193 = vadd.f32 %v1377, %v2192
        %v2194 = vpop.f32.mrb[0].mxu0
        %v2195 = vadd.f32 %v1381, %v2194
        %2196 = vmatprep.mubr.bf16.mxu0 0
        %2197 = vmatmul.mubr.bf16.gmra.mrb[0].mxu0 %v1352
        %v2198 = vpop.f32.mrb[0].mxu0
        %v2199 = vadd.f32 %v1377, %v2198
        %v2200 = vpop.f32.mrb[0].mxu0
        %v2201 = vadd.f32 %v1381, %v2200
        %v2202 = vpop.f32.mrb[0].mxu0
        %v2203 = vadd.f32 %v1377, %v2202
        %v2204 = vpop.f32.mrb[0].mxu0
        %v2205 = vadd.f32 %v1381, %v2204
        %2206 = vmatprep.mubr.bf16.mxu0 0
        %2207 = vmatmul.mubr.bf16.gmra.mrb[0].mxu0 %v1353
        %v2208 = vpop.f32.mrb[0].mxu0
        %v2209 = vadd.f32 %v1377, %v2208
        %v2210 = vpop.f32.mrb[0].mxu0
        %v2211 = vadd.f32 %v1381, %v2210
        %v2212 = vpop.f32.mrb[0].mxu0
        %v2213 = vadd.f32 %v1377, %v2212
        %v2214 = vpop.f32.mrb[0].mxu0
        %v2215 = vadd.f32 %v1381, %v2214
        %2216 = vmatprep.mubr.bf16.mxu0 0
        %2217 = vmatmul.mubr.bf16.gmra.mrb[0].mxu0 %v1354
        %v2218 = vpop.f32.mrb[0].mxu0
        %v2219 = vadd.f32 %v1377, %v2218
        %v2220 = vpop.f32.mrb[0].mxu0
        %v2221 = vadd.f32 %v1381, %v2220
        %v2222 = vpop.f32.mrb[0].mxu0
        %v2223 = vadd.f32 %v1377, %v2222
        %v2224 = vpop.f32.mrb[0].mxu0
        %v2225 = vadd.f32 %v1381, %v2224
        %2226 = vmatprep.mubr.bf16.mxu0 0
        %2227 = vmatmul.mubr.bf16.gmra.mrb[0].mxu0 %v1355
        %v2228 = vpop.f32.mrb[0].mxu0
        %v2229 = vadd.f32 %v1377, %v2228
        %v2230 = vpop.f32.mrb[0].mxu0
        %v2231 = vadd.f32 %v1381, %v2230
        %v2232 = vpop.f32.mrb[0].mxu0
        %v2233 = vadd.f32 %v1377, %v2232
        %v2234 = vpop.f32.mrb[0].mxu0
        %v2235 = vadd.f32 %v1381, %v2234
        %2236 = vdwg.mxu0
        %2237 = vmatprep.subr.bf16.mxu0 %v1713
        %2238 = vmatpush1.bf16.msra.mxu0 %v1712
        %2239 = vmatprep.subr.bf16.mxu0 %v1725
        %2240 = vmatpush1.bf16.msra.mxu0 %v1724
        %2241 = vmatprep.subr.bf16.mxu0 %v1737
        %2242 = vmatpush1.bf16.msra.mxu0 %v1736
        %2243 = vmatprep.subr.bf16.mxu0 %v1749
        %2244 = vmatpush1.bf16.msra.mxu0 %v1748
        %2245 = vmatprep.subr.bf16.mxu0 %v1761
        %2246 = vmatpush1.bf16.msra.mxu0 %v1760
        %2247 = vmatprep.subr.bf16.mxu0 %v1773
        %2248 = vmatpush1.bf16.msra.mxu0 %v1772
        %2249 = vmatprep.subr.bf16.mxu0 %v1785
        %2250 = vmatpush1.bf16.msra.mxu0 %v1784
        %2251 = vmatprep.subr.bf16.mxu0 %v1797
        %2252 = vmatpush1.bf16.msra.mxu0 %v1796
        %2253 = vmatprep.subr.bf16.mxu0 0
        %2254 = vmatpush1.bf16.msra.mxu0 0
        %2255 = vmatprep.subr.bf16.mxu0 0
        %2256 = vmatpush1.bf16.msra.mxu0 0
        %2257 = vmatprep.subr.bf16.mxu0 0
        %2258 = vmatpush1.bf16.msra.mxu0 0
        %2259 = vmatprep.subr.bf16.mxu0 0
        %2260 = vmatpush1.bf16.msra.mxu0 0
        %2261 = vmatprep.subr.bf16.mxu0 0
        %2262 = vmatpush1.bf16.msra.mxu0 0
        %2263 = vmatprep.subr.bf16.mxu0 0
        %2264 = vmatpush1.bf16.msra.mxu0 0
        %2265 = vmatprep.subr.bf16.mxu0 0
        %2266 = vmatpush1.bf16.msra.mxu0 0
        %2267 = vmatprep.subr.bf16.mxu0 0
        %2268 = vmatpush1.bf16.msra.mxu0 0
        %2269 = vmatprep.mubr.bf16.mxu0 0
        %2270 = vmatmul.mubr.bf16.gmra.mrb[0].mxu0 %v1348
        %v2271 = vpop.f32.mrb[0].mxu0
        %v2272 = vadd.f32 %v1385, %v2271
        %v2273 = vpop.f32.mrb[0].mxu0
        %v2274 = vadd.f32 %v1389, %v2273
        %v2275 = vpop.f32.mrb[0].mxu0
        %v2276 = vadd.f32 %v1385, %v2275
        %v2277 = vpop.f32.mrb[0].mxu0
        %v2278 = vadd.f32 %v1389, %v2277
        %2279 = vmatprep.mubr.bf16.mxu0 0
        %2280 = vmatmul.mubr.bf16.gmra.mrb[0].mxu0 %v1349
        %v2281 = vpop.f32.mrb[0].mxu0
        %v2282 = vadd.f32 %v1385, %v2281
        %v2283 = vpop.f32.mrb[0].mxu0
        %v2284 = vadd.f32 %v1389, %v2283
        %v2285 = vpop.f32.mrb[0].mxu0
        %v2286 = vadd.f32 %v1385, %v2285
        %v2287 = vpop.f32.mrb[0].mxu0
        %v2288 = vadd.f32 %v1389, %v2287
        %2289 = vmatprep.mubr.bf16.mxu0 0
        %2290 = vmatmul.mubr.bf16.gmra.mrb[0].mxu0 %v1350
        %v2291 = vpop.f32.mrb[0].mxu0
        %v2292 = vadd.f32 %v1385, %v2291
        %v2293 = vpop.f32.mrb[0].mxu0
        %v2294 = vadd.f32 %v1389, %v2293
        %v2295 = vpop.f32.mrb[0].mxu0
        %v2296 = vadd.f32 %v1385, %v2295
        %v2297 = vpop.f32.mrb[0].mxu0
        %v2298 = vadd.f32 %v1389, %v2297
        %2299 = vmatprep.mubr.bf16.mxu0 0
        %2300 = vmatmul.mubr.bf16.gmra.mrb[0].mxu0 %v1351
        %v2301 = vpop.f32.mrb[0].mxu0
        %v2302 = vadd.f32 %v1385, %v2301
        %v2303 = vpop.f32.mrb[0].mxu0
        %v2304 = vadd.f32 %v1389, %v2303
        %v2305 = vpop.f32.mrb[0].mxu0
        %v2306 = vadd.f32 %v1385, %v2305
        %v2307 = vpop.f32.mrb[0].mxu0
        %v2308 = vadd.f32 %v1389, %v2307
        %2309 = vmatprep.mubr.bf16.mxu0 0
        %2310 = vmatmul.mubr.bf16.gmra.mrb[0].mxu0 %v1352
        %v2311 = vpop.f32.mrb[0].mxu0
        %v2312 = vadd.f32 %v1385, %v2311
        %v2313 = vpop.f32.mrb[0].mxu0
        %v2314 = vadd.f32 %v1389, %v2313
        %v2315 = vpop.f32.mrb[0].mxu0
        %v2316 = vadd.f32 %v1385, %v2315
        %v2317 = vpop.f32.mrb[0].mxu0
        %v2318 = vadd.f32 %v1389, %v2317
        %2319 = vmatprep.mubr.bf16.mxu0 0
        %2320 = vmatmul.mubr.bf16.gmra.mrb[0].mxu0 %v1353
        %v2321 = vpop.f32.mrb[0].mxu0
        %v2322 = vadd.f32 %v1385, %v2321
        %v2323 = vpop.f32.mrb[0].mxu0
        %v2324 = vadd.f32 %v1389, %v2323
        %v2325 = vpop.f32.mrb[0].mxu0
        %v2326 = vadd.f32 %v1385, %v2325
        %v2327 = vpop.f32.mrb[0].mxu0
        %v2328 = vadd.f32 %v1389, %v2327
        %2329 = vmatprep.mubr.bf16.mxu0 0
        %2330 = vmatmul.mubr.bf16.gmra.mrb[0].mxu0 %v1354
        %v2331 = vpop.f32.mrb[0].mxu0
        %v2332 = vadd.f32 %v1385, %v2331
        %v2333 = vpop.f32.mrb[0].mxu0
        %v2334 = vadd.f32 %v1389, %v2333
        %v2335 = vpop.f32.mrb[0].mxu0
        %v2336 = vadd.f32 %v1385, %v2335
        %v2337 = vpop.f32.mrb[0].mxu0
        %v2338 = vadd.f32 %v1389, %v2337
        %2339 = vmatprep.mubr.bf16.mxu0 0
        %2340 = vmatmul.mubr.bf16.gmra.mrb[0].mxu0 %v1355
        %v2341 = vpop.f32.mrb[0].mxu0
        %v2342 = vadd.f32 %v1385, %v2341
        %v2343 = vpop.f32.mrb[0].mxu0
        %v2344 = vadd.f32 %v1389, %v2343
        %v2345 = vpop.f32.mrb[0].mxu0
        %v2346 = vadd.f32 %v1385, %v2345
        %v2347 = vpop.f32.mrb[0].mxu0
        %v2348 = vadd.f32 %v1389, %v2347
        %2349 = vdwg.mxu0
        %2350 = vmatprep.subr.bf16.mxu0 %v1715
        %2351 = vmatpush1.bf16.msra.mxu0 %v1714
        %2352 = vmatprep.subr.bf16.mxu0 %v1727
        %2353 = vmatpush1.bf16.msra.mxu0 %v1726
        %2354 = vmatprep.subr.bf16.mxu0 %v1739
        %2355 = vmatpush1.bf16.msra.mxu0 %v1738
        %2356 = vmatprep.subr.bf16.mxu0 %v1751
        %2357 = vmatpush1.bf16.msra.mxu0 %v1750
        %2358 = vmatprep.subr.bf16.mxu0 %v1763
        %2359 = vmatpush1.bf16.msra.mxu0 %v1762
        %2360 = vmatprep.subr.bf16.mxu0 %v1775
        %2361 = vmatpush1.bf16.msra.mxu0 %v1774
        %2362 = vmatprep.subr.bf16.mxu0 %v1787
        %2363 = vmatpush1.bf16.msra.mxu0 %v1786
        %2364 = vmatprep.subr.bf16.mxu0 %v1799
        %2365 = vmatpush1.bf16.msra.mxu0 %v1798
        %2366 = vmatprep.subr.bf16.mxu0 0
        %2367 = vmatpush1.bf16.msra.mxu0 0
        %2368 = vmatprep.subr.bf16.mxu0 0
        %2369 = vmatpush1.bf16.msra.mxu0 0
        %2370 = vmatprep.subr.bf16.mxu0 0
        %2371 = vmatpush1.bf16.msra.mxu0 0
        %2372 = vmatprep.subr.bf16.mxu0 0
        %2373 = vmatpush1.bf16.msra.mxu0 0
        %2374 = vmatprep.subr.bf16.mxu0 0
        %2375 = vmatpush1.bf16.msra.mxu0 0
        %2376 = vmatprep.subr.bf16.mxu0 0
        %2377 = vmatpush1.bf16.msra.mxu0 0
        %2378 = vmatprep.subr.bf16.mxu0 0
        %2379 = vmatpush1.bf16.msra.mxu0 0
        %2380 = vmatprep.subr.bf16.mxu0 0
        %2381 = vmatpush1.bf16.msra.mxu0 0
        %2382 = vmatprep.mubr.bf16.mxu0 0
        %2383 = vmatmul.mubr.bf16.gmra.mrb[0].mxu0 %v1348
        %v2384 = vpop.f32.mrb[0].mxu0
        %v2385 = vadd.f32 %v1393, %v2384
        %v2386 = vpop.f32.mrb[0].mxu0
        %v2387 = vadd.f32 %v1397, %v2386
        %v2388 = vpop.f32.mrb[0].mxu0
        %v2389 = vadd.f32 %v1393, %v2388
        %v2390 = vpop.f32.mrb[0].mxu0
        %v2391 = vadd.f32 %v1397, %v2390
        %2392 = vmatprep.mubr.bf16.mxu0 0
        %2393 = vmatmul.mubr.bf16.gmra.mrb[0].mxu0 %v1349
        %v2394 = vpop.f32.mrb[0].mxu0
        %v2395 = vadd.f32 %v1393, %v2394
        %v2396 = vpop.f32.mrb[0].mxu0
        %v2397 = vadd.f32 %v1397, %v2396
        %v2398 = vpop.f32.mrb[0].mxu0
        %v2399 = vadd.f32 %v1393, %v2398
        %v2400 = vpop.f32.mrb[0].mxu0
        %v2401 = vadd.f32 %v1397, %v2400
        %2402 = vmatprep.mubr.bf16.mxu0 0
        %2403 = vmatmul.mubr.bf16.gmra.mrb[0].mxu0 %v1350
        %v2404 = vpop.f32.mrb[0].mxu0
        %v2405 = vadd.f32 %v1393, %v2404
        %v2406 = vpop.f32.mrb[0].mxu0
        %v2407 = vadd.f32 %v1397, %v2406
        %v2408 = vpop.f32.mrb[0].mxu0
        %v2409 = vadd.f32 %v1393, %v2408
        %v2410 = vpop.f32.mrb[0].mxu0
        %v2411 = vadd.f32 %v1397, %v2410
        %2412 = vmatprep.mubr.bf16.mxu0 0
        %2413 = vmatmul.mubr.bf16.gmra.mrb[0].mxu0 %v1351
        %v2414 = vpop.f32.mrb[0].mxu0
        %v2415 = vadd.f32 %v1393, %v2414
        %v2416 = vpop.f32.mrb[0].mxu0
        %v2417 = vadd.f32 %v1397, %v2416
        %v2418 = vpop.f32.mrb[0].mxu0
        %v2419 = vadd.f32 %v1393, %v2418
        %v2420 = vpop.f32.mrb[0].mxu0
        %v2421 = vadd.f32 %v1397, %v2420
        %2422 = vmatprep.mubr.bf16.mxu0 0
        %2423 = vmatmul.mubr.bf16.gmra.mrb[0].mxu0 %v1352
        %v2424 = vpop.f32.mrb[0].mxu0
        %v2425 = vadd.f32 %v1393, %v2424
        %v2426 = vpop.f32.mrb[0].mxu0
        %v2427 = vadd.f32 %v1397, %v2426
        %v2428 = vpop.f32.mrb[0].mxu0
        %v2429 = vadd.f32 %v1393, %v2428
        %v2430 = vpop.f32.mrb[0].mxu0
        %v2431 = vadd.f32 %v1397, %v2430
        %2432 = vmatprep.mubr.bf16.mxu0 0
        %2433 = vmatmul.mubr.bf16.gmra.mrb[0].mxu0 %v1353
        %v2434 = vpop.f32.mrb[0].mxu0
        %v2435 = vadd.f32 %v1393, %v2434
        %v2436 = vpop.f32.mrb[0].mxu0
        %v2437 = vadd.f32 %v1397, %v2436
        %v2438 = vpop.f32.mrb[0].mxu0
        %v2439 = vadd.f32 %v1393, %v2438
        %v2440 = vpop.f32.mrb[0].mxu0
        %v2441 = vadd.f32 %v1397, %v2440
        %2442 = vmatprep.mubr.bf16.mxu0 0
        %2443 = vmatmul.mubr.bf16.gmra.mrb[0].mxu0 %v1354
        %v2444 = vpop.f32.mrb[0].mxu0
        %v2445 = vadd.f32 %v1393, %v2444
        %v2446 = vpop.f32.mrb[0].mxu0
        %v2447 = vadd.f32 %v1397, %v2446
        %v2448 = vpop.f32.mrb[0].mxu0
        %v2449 = vadd.f32 %v1393, %v2448
        %v2450 = vpop.f32.mrb[0].mxu0
        %v2451 = vadd.f32 %v1397, %v2450
        %2452 = vmatprep.mubr.bf16.mxu0 0
        %2453 = vmatmul.mubr.bf16.gmra.mrb[0].mxu0 %v1355
        %v2454 = vpop.f32.mrb[0].mxu0
        %v2455 = vadd.f32 %v1393, %v2454
        %v2456 = vpop.f32.mrb[0].mxu0
        %v2457 = vadd.f32 %v1397, %v2456
        %v2458 = vpop.f32.mrb[0].mxu0
        %v2459 = vadd.f32 %v1393, %v2458
        %v2460 = vpop.f32.mrb[0].mxu0
        %v2461 = vadd.f32 %v1397, %v2460
        %2462 = vdwg.mxu0
        %2463 = vmatprep.subr.bf16.mxu0 %v1717
        %2464 = vmatpush1.bf16.msra.mxu0 %v1716
        %2465 = vmatprep.subr.bf16.mxu0 %v1729
        %2466 = vmatpush1.bf16.msra.mxu0 %v1728
        %2467 = vmatprep.subr.bf16.mxu0 %v1741
        %2468 = vmatpush1.bf16.msra.mxu0 %v1740
        %2469 = vmatprep.subr.bf16.mxu0 %v1753
        %2470 = vmatpush1.bf16.msra.mxu0 %v1752
        %2471 = vmatprep.subr.bf16.mxu0 %v1765
        %2472 = vmatpush1.bf16.msra.mxu0 %v1764
        %2473 = vmatprep.subr.bf16.mxu0 %v1777
        %2474 = vmatpush1.bf16.msra.mxu0 %v1776
        %2475 = vmatprep.subr.bf16.mxu0 %v1789
        %2476 = vmatpush1.bf16.msra.mxu0 %v1788
        %2477 = vmatprep.subr.bf16.mxu0 %v1801
        %2478 = vmatpush1.bf16.msra.mxu0 %v1800
        %2479 = vmatprep.subr.bf16.mxu0 0
        %2480 = vmatpush1.bf16.msra.mxu0 0
        %2481 = vmatprep.subr.bf16.mxu0 0
        %2482 = vmatpush1.bf16.msra.mxu0 0
        %2483 = vmatprep.subr.bf16.mxu0 0
        %2484 = vmatpush1.bf16.msra.mxu0 0
        %2485 = vmatprep.subr.bf16.mxu0 0
        %2486 = vmatpush1.bf16.msra.mxu0 0
        %2487 = vmatprep.subr.bf16.mxu0 0
        %2488 = vmatpush1.bf16.msra.mxu0 0
        %2489 = vmatprep.subr.bf16.mxu0 0
        %2490 = vmatpush1.bf16.msra.mxu0 0
        %2491 = vmatprep.subr.bf16.mxu0 0
        %2492 = vmatpush1.bf16.msra.mxu0 0
        %2493 = vmatprep.subr.bf16.mxu0 0
        %2494 = vmatpush1.bf16.msra.mxu0 0
        %2495 = vmatprep.mubr.bf16.mxu0 0
        %2496 = vmatmul.mubr.bf16.gmra.mrb[0].mxu0 %v1348
        %v2497 = vpop.f32.mrb[0].mxu0
        %v2498 = vadd.f32 %v1401, %v2497
        %v2499 = vpop.f32.mrb[0].mxu0
        %v2500 = vadd.f32 %v1405, %v2499
        %v2501 = vpop.f32.mrb[0].mxu0
        %v2502 = vadd.f32 %v1401, %v2501
        %v2503 = vpop.f32.mrb[0].mxu0
        %v2504 = vadd.f32 %v1405, %v2503
        %2505 = vmatprep.mubr.bf16.mxu0 0
        %2506 = vmatmul.mubr.bf16.gmra.mrb[0].mxu0 %v1349
        %v2507 = vpop.f32.mrb[0].mxu0
        %v2508 = vadd.f32 %v1401, %v2507
        %v2509 = vpop.f32.mrb[0].mxu0
        %v2510 = vadd.f32 %v1405, %v2509
        %v2511 = vpop.f32.mrb[0].mxu0
        %v2512 = vadd.f32 %v1401, %v2511
        %v2513 = vpop.f32.mrb[0].mxu0
        %v2514 = vadd.f32 %v1405, %v2513
        %2515 = vmatprep.mubr.bf16.mxu0 0
        %2516 = vmatmul.mubr.bf16.gmra.mrb[0].mxu0 %v1350
        %v2517 = vpop.f32.mrb[0].mxu0
        %v2518 = vadd.f32 %v1401, %v2517
        %v2519 = vpop.f32.mrb[0].mxu0
        %v2520 = vadd.f32 %v1405, %v2519
        %v2521 = vpop.f32.mrb[0].mxu0
        %v2522 = vadd.f32 %v1401, %v2521
        %v2523 = vpop.f32.mrb[0].mxu0
        %v2524 = vadd.f32 %v1405, %v2523
        %2525 = vmatprep.mubr.bf16.mxu0 0
        %2526 = vmatmul.mubr.bf16.gmra.mrb[0].mxu0 %v1351
        %v2527 = vpop.f32.mrb[0].mxu0
        %v2528 = vadd.f32 %v1401, %v2527
        %v2529 = vpop.f32.mrb[0].mxu0
        %v2530 = vadd.f32 %v1405, %v2529
        %v2531 = vpop.f32.mrb[0].mxu0
        %v2532 = vadd.f32 %v1401, %v2531
        %v2533 = vpop.f32.mrb[0].mxu0
        %v2534 = vadd.f32 %v1405, %v2533
        %2535 = vmatprep.mubr.bf16.mxu0 0
        %2536 = vmatmul.mubr.bf16.gmra.mrb[0].mxu0 %v1352
        %v2537 = vpop.f32.mrb[0].mxu0
        %v2538 = vadd.f32 %v1401, %v2537
        %v2539 = vpop.f32.mrb[0].mxu0
        %v2540 = vadd.f32 %v1405, %v2539
        %v2541 = vpop.f32.mrb[0].mxu0
        %v2542 = vadd.f32 %v1401, %v2541
        %v2543 = vpop.f32.mrb[0].mxu0
        %v2544 = vadd.f32 %v1405, %v2543
        %2545 = vmatprep.mubr.bf16.mxu0 0
        %2546 = vmatmul.mubr.bf16.gmra.mrb[0].mxu0 %v1353
        %v2547 = vpop.f32.mrb[0].mxu0
        %v2548 = vadd.f32 %v1401, %v2547
        %v2549 = vpop.f32.mrb[0].mxu0
        %v2550 = vadd.f32 %v1405, %v2549
        %v2551 = vpop.f32.mrb[0].mxu0
        %v2552 = vadd.f32 %v1401, %v2551
        %v2553 = vpop.f32.mrb[0].mxu0
        %v2554 = vadd.f32 %v1405, %v2553
        %2555 = vmatprep.mubr.bf16.mxu0 0
        %2556 = vmatmul.mubr.bf16.gmra.mrb[0].mxu0 %v1354
        %v2557 = vpop.f32.mrb[0].mxu0
        %v2558 = vadd.f32 %v1401, %v2557
        %v2559 = vpop.f32.mrb[0].mxu0
        %v2560 = vadd.f32 %v1405, %v2559
        %v2561 = vpop.f32.mrb[0].mxu0
        %v2562 = vadd.f32 %v1401, %v2561
        %v2563 = vpop.f32.mrb[0].mxu0
        %v2564 = vadd.f32 %v1405, %v2563
        %2565 = vmatprep.mubr.bf16.mxu0 0
        %2566 = vmatmul.mubr.bf16.gmra.mrb[0].mxu0 %v1355
        %v2567 = vpop.f32.mrb[0].mxu0
        %v2568 = vadd.f32 %v1401, %v2567
        %v2569 = vpop.f32.mrb[0].mxu0
        %v2570 = vadd.f32 %v1405, %v2569
        %v2571 = vpop.f32.mrb[0].mxu0
        %v2572 = vadd.f32 %v1401, %v2571
        %v2573 = vpop.f32.mrb[0].mxu0
        %v2574 = vadd.f32 %v1405, %v2573
        %2575 = vdwg.mxu0
        %v2576 = vlaneseq
        %v2577 = vand.u32 %v2576, 127
        %vm2578 = vcmp.lt.s32.totalorder %v2577, 8
        %v2580 = vlaneseq
        %v2581 = vshrl.u32 %v2580, 7
        %v2582 = vsub.s32 0, %v2581
        %v2583 = vrot.slane %v1043, %v2582
        %v2585 = vadd.f32 %v1080, %v2583
        %v2586 = vadd.f32 %v1081, %v2583
        %v2587 = vadd.f32 %v1082, %v2583
        %v2588 = vadd.f32 %v1083, %v2583
        %v2589 = vadd.f32 %v1084, %v2583
        %v2590 = vadd.f32 %v1085, %v2583
        %v2591 = vadd.f32 %v1086, %v2583
        %v2592 = vadd.f32 %v1087, %v2583
        %v2593 = vadd.f32 %v1088, %v2583
        %v2594 = vadd.f32 %v1089, %v2583
        %v2595 = vadd.f32 %v1090, %v2583
        %v2596 = vadd.f32 %v1091, %v2583
        %v2597 = vadd.f32 %v1092, %v2583
        %v2598 = vadd.f32 %v1093, %v2583
        %v2599 = vadd.f32 %v1094, %v2583
        %v2600 = vadd.f32 %v1095, %v2583
        %v2601 = vpack.c.bf16 %v1937, %v1933
        %v2602 = vpack.c.bf16 %v1947, %v1943
        %v2603 = vpack.c.bf16 %v1957, %v1953
        %v2604 = vpack.c.bf16 %v1967, %v1963
        %v2605 = vpack.c.bf16 %v1977, %v1973
        %v2606 = vpack.c.bf16 %v1987, %v1983
        %v2607 = vpack.c.bf16 %v1997, %v1993
        %v2608 = vpack.c.bf16 %v2007, %v2003
        %v2609 = vpack.c.bf16 %v2163, %v2159
        %v2610 = vpack.c.bf16 %v2173, %v2169
        %v2611 = vpack.c.bf16 %v2183, %v2179
        %v2612 = vpack.c.bf16 %v2193, %v2189
        %v2613 = vpack.c.bf16 %v2203, %v2199
        %v2614 = vpack.c.bf16 %v2213, %v2209
        %v2615 = vpack.c.bf16 %v2223, %v2219
        %v2616 = vpack.c.bf16 %v2233, %v2229
        %v2617 = vpack.c.bf16 %v2389, %v2385
        %v2618 = vpack.c.bf16 %v2399, %v2395
        %v2619 = vpack.c.bf16 %v2409, %v2405
        %v2620 = vpack.c.bf16 %v2419, %v2415
        %v2621 = vpack.c.bf16 %v2429, %v2425
        %v2622 = vpack.c.bf16 %v2439, %v2435
        %v2623 = vpack.c.bf16 %v2449, %v2445
        %v2624 = vpack.c.bf16 %v2459, %v2455
        %2625 = vmatprep.subr.bf16.mxu0 0
        %2626 = vmatpush1.bf16.xpose.msra.mxu0 %v2609
        %2627 = vmatprep.subr.bf16.mxu0 0
        %2628 = vmatpush1.bf16.xpose.msra.mxu0 %v2610
        %2629 = vmatprep.subr.bf16.mxu0 0
        %2630 = vmatpush1.bf16.xpose.msra.mxu0 %v2611
        %2631 = vmatprep.subr.bf16.mxu0 0
        %2632 = vmatpush1.bf16.xpose.msra.mxu0 %v2612
        %2633 = vmatprep.subr.bf16.mxu0 0
        %2634 = vmatpush1.bf16.xpose.msra.mxu0 %v2613
        %2635 = vmatprep.subr.bf16.mxu0 0
        %2636 = vmatpush1.bf16.xpose.msra.mxu0 %v2614
        %2637 = vmatprep.subr.bf16.mxu0 0
        %2638 = vmatpush1.bf16.xpose.msra.mxu0 %v2615
        %2639 = vmatprep.subr.bf16.mxu0 0
        %2640 = vmatpush1.bf16.xpose.msra.mxu0 %v2616
        %2641 = vmatprep.subr.bf16.mxu0 0
        %2642 = vmatpush1.bf16.xpose.msra.mxu0 0
        %2643 = vmatprep.subr.bf16.mxu0 0
        %2644 = vmatpush1.bf16.xpose.msra.mxu0 0
        %2645 = vmatprep.subr.bf16.mxu0 0
        %2646 = vmatpush1.bf16.xpose.msra.mxu0 0
        %2647 = vmatprep.subr.bf16.mxu0 0
        %2648 = vmatpush1.bf16.xpose.msra.mxu0 0
        %2649 = vmatprep.subr.bf16.mxu0 0
        %2650 = vmatpush1.bf16.xpose.msra.mxu0 0
        %2651 = vmatprep.subr.bf16.mxu0 0
        %2652 = vmatpush1.bf16.xpose.msra.mxu0 0
        %2653 = vmatprep.subr.bf16.mxu0 0
        %2654 = vmatpush1.bf16.xpose.msra.mxu0 0
        %2655 = vmatprep.subr.bf16.mxu0 0
        %2656 = vmatpush1.bf16.xpose.msra.mxu0 0
        %2657 = vmatprep.mubr.bf16.mxu0 0
        %2658 = vmatmul.mubr.bf16.gmra.mrb[0].mxu0 %v2601
        %v2659 = vpop.f32.mrb[0].mxu0
        %v2660 = vadd.f32 0.0, %v2659
        %v2661 = vpop.f32.mrb[0].mxu0
        %v2662 = vpop.f32.mrb[0].mxu0
        %v2663 = vadd.f32 0.0, %v2662
        %v2664 = vpop.f32.mrb[0].mxu0
        %2665 = vmatprep.mubr.bf16.mxu0 0
        %2666 = vmatmul.mubr.bf16.gmra.mrb[0].mxu0 %v2602
        %v2667 = vpop.f32.mrb[0].mxu0
        %v2668 = vadd.f32 0.0, %v2667
        %v2669 = vpop.f32.mrb[0].mxu0
        %v2670 = vpop.f32.mrb[0].mxu0
        %v2671 = vadd.f32 0.0, %v2670
        %v2672 = vpop.f32.mrb[0].mxu0
        %2673 = vmatprep.mubr.bf16.mxu0 0
        %2674 = vmatmul.mubr.bf16.gmra.mrb[0].mxu0 %v2603
        %v2675 = vpop.f32.mrb[0].mxu0
        %v2676 = vadd.f32 0.0, %v2675
        %v2677 = vpop.f32.mrb[0].mxu0
        %v2678 = vpop.f32.mrb[0].mxu0
        %v2679 = vadd.f32 0.0, %v2678
        %v2680 = vpop.f32.mrb[0].mxu0
        %2681 = vmatprep.mubr.bf16.mxu0 0
        %2682 = vmatmul.mubr.bf16.gmra.mrb[0].mxu0 %v2604
        %v2683 = vpop.f32.mrb[0].mxu0
        %v2684 = vadd.f32 0.0, %v2683
        %v2685 = vpop.f32.mrb[0].mxu0
        %v2686 = vpop.f32.mrb[0].mxu0
        %v2687 = vadd.f32 0.0, %v2686
        %v2688 = vpop.f32.mrb[0].mxu0
        %2689 = vmatprep.mubr.bf16.mxu0 0
        %2690 = vmatmul.mubr.bf16.gmra.mrb[0].mxu0 %v2605
        %v2691 = vpop.f32.mrb[0].mxu0
        %v2692 = vadd.f32 0.0, %v2691
        %v2693 = vpop.f32.mrb[0].mxu0
        %v2694 = vpop.f32.mrb[0].mxu0
        %v2695 = vadd.f32 0.0, %v2694
        %v2696 = vpop.f32.mrb[0].mxu0
        %2697 = vmatprep.mubr.bf16.mxu0 0
        %2698 = vmatmul.mubr.bf16.gmra.mrb[0].mxu0 %v2606
        %v2699 = vpop.f32.mrb[0].mxu0
        %v2700 = vadd.f32 0.0, %v2699
        %v2701 = vpop.f32.mrb[0].mxu0
        %v2702 = vpop.f32.mrb[0].mxu0
        %v2703 = vadd.f32 0.0, %v2702
        %v2704 = vpop.f32.mrb[0].mxu0
        %2705 = vmatprep.mubr.bf16.mxu0 0
        %2706 = vmatmul.mubr.bf16.gmra.mrb[0].mxu0 %v2607
        %v2707 = vpop.f32.mrb[0].mxu0
        %v2708 = vadd.f32 0.0, %v2707
        %v2709 = vpop.f32.mrb[0].mxu0
        %v2710 = vpop.f32.mrb[0].mxu0
        %v2711 = vadd.f32 0.0, %v2710
        %v2712 = vpop.f32.mrb[0].mxu0
        %2713 = vmatprep.mubr.bf16.mxu0 0
        %2714 = vmatmul.mubr.bf16.gmra.mrb[0].mxu0 %v2608
        %v2715 = vpop.f32.mrb[0].mxu0
        %v2716 = vadd.f32 0.0, %v2715
        %v2717 = vpop.f32.mrb[0].mxu0
        %v2718 = vpop.f32.mrb[0].mxu0
        %v2719 = vadd.f32 0.0, %v2718
        %v2720 = vpop.f32.mrb[0].mxu0
        %2721 = vdwg.mxu0
        %v2722 = vsel %vm2578, 1, 0
        %vm2723 = vcmp.eq.s32.totalorder %v2722, 1
        %v2724 = vsel %vm2723, %v2660, -1e+30
        %v2725 = vsel %vm2723, %v2663, -1e+30
        %v2726 = vsel %vm2723, %v2668, -1e+30
        %v2727 = vsel %vm2723, %v2671, -1e+30
        %v2728 = vsel %vm2723, %v2676, -1e+30
        %v2729 = vsel %vm2723, %v2679, -1e+30
        %v2730 = vsel %vm2723, %v2684, -1e+30
        %v2731 = vsel %vm2723, %v2687, -1e+30
        %v2732 = vsel %vm2723, %v2692, -1e+30
        %v2733 = vsel %vm2723, %v2695, -1e+30
        %v2734 = vsel %vm2723, %v2700, -1e+30
        %v2735 = vsel %vm2723, %v2703, -1e+30
        %v2736 = vsel %vm2723, %v2708, -1e+30
        %v2737 = vsel %vm2723, %v2711, -1e+30
        %v2738 = vsel %vm2723, %v2716, -1e+30
        %v2739 = vsel %vm2723, %v2719, -1e+30
        %2740 = vmax.xlane.f32.xlu0 %v2724
        %v2741 = vpop.xlane.xlu0 %2740
        %2742 = vmax.xlane.f32.xlu0 %v2725
        %v2743 = vpop.xlane.xlu0 %2742
        %2744 = vmax.xlane.f32.xlu0 %v2726
        %v2745 = vpop.xlane.xlu0 %2744
        %2746 = vmax.xlane.f32.xlu0 %v2727
        %v2747 = vpop.xlane.xlu0 %2746
        %2748 = vmax.xlane.f32.xlu0 %v2728
        %v2749 = vpop.xlane.xlu0 %2748
        %2750 = vmax.xlane.f32.xlu0 %v2729
        %v2751 = vpop.xlane.xlu0 %2750
        %2752 = vmax.xlane.f32.xlu0 %v2730
        %v2753 = vpop.xlane.xlu0 %2752
        %2754 = vmax.xlane.f32.xlu0 %v2731
        %v2755 = vpop.xlane.xlu0 %2754
        %2756 = vmax.xlane.f32.xlu0 %v2732
        %v2757 = vpop.xlane.xlu0 %2756
        %2758 = vmax.xlane.f32.xlu0 %v2733
        %v2759 = vpop.xlane.xlu0 %2758
        %2760 = vmax.xlane.f32.xlu0 %v2734
        %v2761 = vpop.xlane.xlu0 %2760
        %2762 = vmax.xlane.f32.xlu0 %v2735
        %v2763 = vpop.xlane.xlu0 %2762
        %2764 = vmax.xlane.f32.xlu0 %v2736
        %v2765 = vpop.xlane.xlu0 %2764
        %2766 = vmax.xlane.f32.xlu0 %v2737
        %v2767 = vpop.xlane.xlu0 %2766
        %2768 = vmax.xlane.f32.xlu0 %v2738
        %v2769 = vpop.xlane.xlu0 %2768
        %2770 = vmax.xlane.f32.xlu0 %v2739
        %v2771 = vpop.xlane.xlu0 %2770
        %v2772 = vsub.f32 %v2724, %v2741
        %v2773 = vsub.f32 %v2725, %v2743
        %v2774 = vsub.f32 %v2726, %v2745
        %v2775 = vsub.f32 %v2727, %v2747
        %v2776 = vsub.f32 %v2728, %v2749
        %v2777 = vsub.f32 %v2729, %v2751
        %v2778 = vsub.f32 %v2730, %v2753
        %v2779 = vsub.f32 %v2731, %v2755
        %v2780 = vsub.f32 %v2732, %v2757
        %v2781 = vsub.f32 %v2733, %v2759
        %v2782 = vsub.f32 %v2734, %v2761
        %v2783 = vsub.f32 %v2735, %v2763
        %v2784 = vsub.f32 %v2736, %v2765
        %v2785 = vsub.f32 %v2737, %v2767
        %v2786 = vsub.f32 %v2738, %v2769
        %v2787 = vsub.f32 %v2739, %v2771
        %v2788 = vmul.f32 %v2772, 1.442695
        %v2789 = vpow.pop %v2788
        %v2790 = vmul.f32 %v2773, 1.442695
        %v2791 = vpow.pop %v2790
        %v2792 = vmul.f32 %v2774, 1.442695
        %v2793 = vpow.pop %v2792
        %v2794 = vmul.f32 %v2775, 1.442695
        %v2795 = vpow.pop %v2794
        %v2796 = vmul.f32 %v2776, 1.442695
        %v2797 = vpow.pop %v2796
        %v2798 = vmul.f32 %v2777, 1.442695
        %v2799 = vpow.pop %v2798
        %v2800 = vmul.f32 %v2778, 1.442695
        %v2801 = vpow.pop %v2800
        %v2802 = vmul.f32 %v2779, 1.442695
        %v2803 = vpow.pop %v2802
        %v2804 = vmul.f32 %v2780, 1.442695
        %v2805 = vpow.pop %v2804
        %v2806 = vmul.f32 %v2781, 1.442695
        %v2807 = vpow.pop %v2806
        %v2808 = vmul.f32 %v2782, 1.442695
        %v2809 = vpow.pop %v2808
        %v2810 = vmul.f32 %v2783, 1.442695
        %v2811 = vpow.pop %v2810
        %v2812 = vmul.f32 %v2784, 1.442695
        %v2813 = vpow.pop %v2812
        %v2814 = vmul.f32 %v2785, 1.442695
        %v2815 = vpow.pop %v2814
        %v2816 = vmul.f32 %v2786, 1.442695
        %v2817 = vpow.pop %v2816
        %v2818 = vmul.f32 %v2787, 1.442695
        %v2819 = vpow.pop %v2818
        %2820 = vadd.xlane.f32.xlu0 %v2789
        %v2821 = vpop.xlane.xlu0 %2820
        %2822 = vadd.xlane.f32.xlu0 %v2791
        %v2823 = vpop.xlane.xlu0 %2822
        %2824 = vadd.xlane.f32.xlu0 %v2793
        %v2825 = vpop.xlane.xlu0 %2824
        %2826 = vadd.xlane.f32.xlu0 %v2795
        %v2827 = vpop.xlane.xlu0 %2826
        %2828 = vadd.xlane.f32.xlu0 %v2797
        %v2829 = vpop.xlane.xlu0 %2828
        %2830 = vadd.xlane.f32.xlu0 %v2799
        %v2831 = vpop.xlane.xlu0 %2830
        %2832 = vadd.xlane.f32.xlu0 %v2801
        %v2833 = vpop.xlane.xlu0 %2832
        %2834 = vadd.xlane.f32.xlu0 %v2803
        %v2835 = vpop.xlane.xlu0 %2834
        %2836 = vadd.xlane.f32.xlu0 %v2805
        %v2837 = vpop.xlane.xlu0 %2836
        %2838 = vadd.xlane.f32.xlu0 %v2807
        %v2839 = vpop.xlane.xlu0 %2838
        %2840 = vadd.xlane.f32.xlu0 %v2809
        %v2841 = vpop.xlane.xlu0 %2840
        %2842 = vadd.xlane.f32.xlu0 %v2811
        %v2843 = vpop.xlane.xlu0 %2842
        %2844 = vadd.xlane.f32.xlu0 %v2813
        %v2845 = vpop.xlane.xlu0 %2844
        %2846 = vadd.xlane.f32.xlu0 %v2815
        %v2847 = vpop.xlane.xlu0 %2846
        %2848 = vadd.xlane.f32.xlu0 %v2817
        %v2849 = vpop.xlane.xlu0 %2848
        %2850 = vadd.xlane.f32.xlu0 %v2819
        %v2851 = vpop.xlane.xlu0 %2850
        %v2852 = vrcp.pop %v2821
        %v2853 = vrcp.pop %v2823
        %v2854 = vrcp.pop %v2825
        %v2855 = vrcp.pop %v2827
        %v2856 = vrcp.pop %v2829
        %v2857 = vrcp.pop %v2831
        %v2858 = vrcp.pop %v2833
        %v2859 = vrcp.pop %v2835
        %v2860 = vrcp.pop %v2837
        %v2861 = vrcp.pop %v2839
        %v2862 = vrcp.pop %v2841
        %v2863 = vrcp.pop %v2843
        %v2864 = vrcp.pop %v2845
        %v2865 = vrcp.pop %v2847
        %v2866 = vrcp.pop %v2849
        %v2867 = vrcp.pop %v2851
        %v2868 = vmul.f32 %v2789, %v2852
        %v2869 = vmul.f32 %v2791, %v2853
        %v2870 = vmul.f32 %v2793, %v2854
        %v2871 = vmul.f32 %v2795, %v2855
        %v2872 = vmul.f32 %v2797, %v2856
        %v2873 = vmul.f32 %v2799, %v2857
        %v2874 = vmul.f32 %v2801, %v2858
        %v2875 = vmul.f32 %v2803, %v2859
        %v2876 = vmul.f32 %v2805, %v2860
        %v2877 = vmul.f32 %v2807, %v2861
        %v2878 = vmul.f32 %v2809, %v2862
        %v2879 = vmul.f32 %v2811, %v2863
        %v2880 = vmul.f32 %v2813, %v2864
        %v2881 = vmul.f32 %v2815, %v2865
        %v2882 = vmul.f32 %v2817, %v2866
        %v2883 = vmul.f32 %v2819, %v2867
        %v2884 = vpack.c.bf16 %v2869, %v2868
        %v2885 = vpack.c.bf16 %v2871, %v2870
        %v2886 = vpack.c.bf16 %v2873, %v2872
        %v2887 = vpack.c.bf16 %v2875, %v2874
        %v2888 = vpack.c.bf16 %v2877, %v2876
        %v2889 = vpack.c.bf16 %v2879, %v2878
        %v2890 = vpack.c.bf16 %v2881, %v2880
        %v2891 = vpack.c.bf16 %v2883, %v2882
        %2892 = vmatprep.subr.bf16.mxu0 0
        %2893 = vmatpush1.bf16.msra.mxu0 %v2617
        %2894 = vmatprep.subr.bf16.mxu0 0
        %2895 = vmatpush1.bf16.msra.mxu0 %v2618
        %2896 = vmatprep.subr.bf16.mxu0 0
        %2897 = vmatpush1.bf16.msra.mxu0 %v2619
        %2898 = vmatprep.subr.bf16.mxu0 0
        %2899 = vmatpush1.bf16.msra.mxu0 %v2620
        %2900 = vmatprep.subr.bf16.mxu0 0
        %2901 = vmatpush1.bf16.msra.mxu0 %v2621
        %2902 = vmatprep.subr.bf16.mxu0 0
        %2903 = vmatpush1.bf16.msra.mxu0 %v2622
        %2904 = vmatprep.subr.bf16.mxu0 0
        %2905 = vmatpush1.bf16.msra.mxu0 %v2623
        %2906 = vmatprep.subr.bf16.mxu0 0
        %2907 = vmatpush1.bf16.msra.mxu0 %v2624
        %2908 = vmatprep.subr.bf16.mxu0 0
        %2909 = vmatpush1.bf16.msra.mxu0 0
        %2910 = vmatprep.subr.bf16.mxu0 0
        %2911 = vmatpush1.bf16.msra.mxu0 0
        %2912 = vmatprep.subr.bf16.mxu0 0
        %2913 = vmatpush1.bf16.msra.mxu0 0
        %2914 = vmatprep.subr.bf16.mxu0 0
        %2915 = vmatpush1.bf16.msra.mxu0 0
        %2916 = vmatprep.subr.bf16.mxu0 0
        %2917 = vmatpush1.bf16.msra.mxu0 0
        %2918 = vmatprep.subr.bf16.mxu0 0
        %2919 = vmatpush1.bf16.msra.mxu0 0
        %2920 = vmatprep.subr.bf16.mxu0 0
        %2921 = vmatpush1.bf16.msra.mxu0 0
        %2922 = vmatprep.subr.bf16.mxu0 0
        %2923 = vmatpush1.bf16.msra.mxu0 0
        %2924 = vmatprep.mubr.bf16.mxu0 0
        %2925 = vmatmul.mubr.bf16.gmra.mrb[0].mxu0 %v2884
        %v2926 = vpop.f32.mrb[0].mxu0
        %v2927 = vadd.f32 0.0, %v2926
        %v2928 = vpop.f32.mrb[0].mxu0
        %v2929 = vpop.f32.mrb[0].mxu0
        %v2930 = vadd.f32 0.0, %v2929
        %v2931 = vpop.f32.mrb[0].mxu0
        %2932 = vmatprep.mubr.bf16.mxu0 0
        %2933 = vmatmul.mubr.bf16.gmra.mrb[0].mxu0 %v2885
        %v2934 = vpop.f32.mrb[0].mxu0
        %v2935 = vadd.f32 0.0, %v2934
        %v2936 = vpop.f32.mrb[0].mxu0
        %v2937 = vpop.f32.mrb[0].mxu0
        %v2938 = vadd.f32 0.0, %v2937
        %v2939 = vpop.f32.mrb[0].mxu0
        %2940 = vmatprep.mubr.bf16.mxu0 0
        %2941 = vmatmul.mubr.bf16.gmra.mrb[0].mxu0 %v2886
        %v2942 = vpop.f32.mrb[0].mxu0
        %v2943 = vadd.f32 0.0, %v2942
        %v2944 = vpop.f32.mrb[0].mxu0
        %v2945 = vpop.f32.mrb[0].mxu0
        %v2946 = vadd.f32 0.0, %v2945
        %v2947 = vpop.f32.mrb[0].mxu0
        %2948 = vmatprep.mubr.bf16.mxu0 0
        %2949 = vmatmul.mubr.bf16.gmra.mrb[0].mxu0 %v2887
        %v2950 = vpop.f32.mrb[0].mxu0
        %v2951 = vadd.f32 0.0, %v2950
        %v2952 = vpop.f32.mrb[0].mxu0
        %v2953 = vpop.f32.mrb[0].mxu0
        %v2954 = vadd.f32 0.0, %v2953
        %v2955 = vpop.f32.mrb[0].mxu0
        %2956 = vmatprep.mubr.bf16.mxu0 0
        %2957 = vmatmul.mubr.bf16.gmra.mrb[0].mxu0 %v2888
        %v2958 = vpop.f32.mrb[0].mxu0
        %v2959 = vadd.f32 0.0, %v2958
        %v2960 = vpop.f32.mrb[0].mxu0
        %v2961 = vpop.f32.mrb[0].mxu0
        %v2962 = vadd.f32 0.0, %v2961
        %v2963 = vpop.f32.mrb[0].mxu0
        %2964 = vmatprep.mubr.bf16.mxu0 0
        %2965 = vmatmul.mubr.bf16.gmra.mrb[0].mxu0 %v2889
        %v2966 = vpop.f32.mrb[0].mxu0
        %v2967 = vadd.f32 0.0, %v2966
        %v2968 = vpop.f32.mrb[0].mxu0
        %v2969 = vpop.f32.mrb[0].mxu0
        %v2970 = vadd.f32 0.0, %v2969
        %v2971 = vpop.f32.mrb[0].mxu0
        %2972 = vmatprep.mubr.bf16.mxu0 0
        %2973 = vmatmul.mubr.bf16.gmra.mrb[0].mxu0 %v2890
        %v2974 = vpop.f32.mrb[0].mxu0
        %v2975 = vadd.f32 0.0, %v2974
        %v2976 = vpop.f32.mrb[0].mxu0
        %v2977 = vpop.f32.mrb[0].mxu0
        %v2978 = vadd.f32 0.0, %v2977
        %v2979 = vpop.f32.mrb[0].mxu0
        %2980 = vmatprep.mubr.bf16.mxu0 0
        %2981 = vmatmul.mubr.bf16.gmra.mrb[0].mxu0 %v2891
        %v2982 = vpop.f32.mrb[0].mxu0
        %v2983 = vadd.f32 0.0, %v2982
        %v2984 = vpop.f32.mrb[0].mxu0
        %v2985 = vpop.f32.mrb[0].mxu0
        %v2986 = vadd.f32 0.0, %v2985
        %v2987 = vpop.f32.mrb[0].mxu0
        %2988 = vdwg.mxu0
        %v2989 = vpack.c.bf16 %v2930, %v2927
        %v2990 = vpack.c.bf16 %v2938, %v2935
        %v2991 = vpack.c.bf16 %v2946, %v2943
        %v2992 = vpack.c.bf16 %v2954, %v2951
        %v2993 = vpack.c.bf16 %v2962, %v2959
        %v2994 = vpack.c.bf16 %v2970, %v2967
        %v2995 = vpack.c.bf16 %v2978, %v2975
        %v2996 = vpack.c.bf16 %v2986, %v2983
        %v3013 = vunpack.c.l.b16 %v979
        %v3014 = vunpack.c.l.b16 %v980
        %v3015 = vunpack.c.l.b16 %v981
        %v3016 = vunpack.c.l.b16 %v982
        %v3017 = vunpack.c.l.b16 %v983
        %v3018 = vunpack.c.l.b16 %v984
        %v3019 = vunpack.c.l.b16 %v985
        %v3020 = vunpack.c.l.b16 %v986
        %v3021 = vunpack.c.l.b16 %v987
        %v3022 = vunpack.c.l.b16 %v988
        %v3023 = vunpack.c.l.b16 %v989
        %v3024 = vunpack.c.l.b16 %v990
        %v3025 = vunpack.c.l.b16 %v991
        %v3026 = vunpack.c.l.b16 %v992
        %v3027 = vunpack.c.l.b16 %v993
        %v3028 = vunpack.c.l.b16 %v994
        %v3029 = vpack.c.b16 %v3014, %v3013
        %v3030 = vpack.c.b16 %v3016, %v3015
        %v3031 = vpack.c.b16 %v3018, %v3017
        %v3032 = vpack.c.b16 %v3020, %v3019
        %v3033 = vpack.c.b16 %v3022, %v3021
        %v3034 = vpack.c.b16 %v3024, %v3023
        %v3035 = vpack.c.b16 %v3026, %v3025
        %v3036 = vpack.c.b16 %v3028, %v3027
        %3045 = vmatprep.subr.bf16.mxu0 0
        %3046 = vmatpush1.bf16.msra.mxu0 %v3029
        %3047 = vmatprep.subr.bf16.mxu0 0
        %3048 = vmatpush1.bf16.msra.mxu0 %v3030
        %3049 = vmatprep.subr.bf16.mxu0 0
        %3050 = vmatpush1.bf16.msra.mxu0 %v3031
        %3051 = vmatprep.subr.bf16.mxu0 0
        %3052 = vmatpush1.bf16.msra.mxu0 %v3032
        %3053 = vmatprep.subr.bf16.mxu0 0
        %3054 = vmatpush1.bf16.msra.mxu0 %v3033
        %3055 = vmatprep.subr.bf16.mxu0 0
        %3056 = vmatpush1.bf16.msra.mxu0 %v3034
        %3057 = vmatprep.subr.bf16.mxu0 0
        %3058 = vmatpush1.bf16.msra.mxu0 %v3035
        %3059 = vmatprep.subr.bf16.mxu0 0
        %3060 = vmatpush1.bf16.msra.mxu0 %v3036
        %3061 = vmatprep.subr.bf16.mxu0 0
        %3062 = vmatpush1.bf16.msra.mxu0 0
        %3063 = vmatprep.subr.bf16.mxu0 0
        %3064 = vmatpush1.bf16.msra.mxu0 0
        %3065 = vmatprep.subr.bf16.mxu0 0
        %3066 = vmatpush1.bf16.msra.mxu0 0
        %3067 = vmatprep.subr.bf16.mxu0 0
        %3068 = vmatpush1.bf16.msra.mxu0 0
        %3069 = vmatprep.subr.bf16.mxu0 0
        %3070 = vmatpush1.bf16.msra.mxu0 0
        %3071 = vmatprep.subr.bf16.mxu0 0
        %3072 = vmatpush1.bf16.msra.mxu0 0
        %3073 = vmatprep.subr.bf16.mxu0 0
        %3074 = vmatpush1.bf16.msra.mxu0 0
        %3075 = vmatprep.subr.bf16.mxu0 0
        %3076 = vmatpush1.bf16.msra.mxu0 0
        %3077 = vmatprep.mubr.bf16.mxu0 0
        %3078 = vmatmul.mubr.bf16.gmra.mrb[0].mxu0 %v2989
        %v3079 = vpop.f32.mrb[0].mxu0
        %v3080 = vadd.f32 0.0, %v3079
        %v3081 = vpop.f32.mrb[0].mxu0
        %v3082 = vpop.f32.mrb[0].mxu0
        %v3083 = vadd.f32 0.0, %v3082
        %v3084 = vpop.f32.mrb[0].mxu0
        %3085 = vmatprep.mubr.bf16.mxu0 0
        %3086 = vmatmul.mubr.bf16.gmra.mrb[0].mxu0 %v2990
        %v3087 = vpop.f32.mrb[0].mxu0
        %v3088 = vadd.f32 0.0, %v3087
        %v3089 = vpop.f32.mrb[0].mxu0
        %v3090 = vpop.f32.mrb[0].mxu0
        %v3091 = vadd.f32 0.0, %v3090
        %v3092 = vpop.f32.mrb[0].mxu0
        %3093 = vmatprep.mubr.bf16.mxu0 0
        %3094 = vmatmul.mubr.bf16.gmra.mrb[0].mxu0 %v2991
        %v3095 = vpop.f32.mrb[0].mxu0
        %v3096 = vadd.f32 0.0, %v3095
        %v3097 = vpop.f32.mrb[0].mxu0
        %v3098 = vpop.f32.mrb[0].mxu0
        %v3099 = vadd.f32 0.0, %v3098
        %v3100 = vpop.f32.mrb[0].mxu0
        %3101 = vmatprep.mubr.bf16.mxu0 0
        %3102 = vmatmul.mubr.bf16.gmra.mrb[0].mxu0 %v2992
        %v3103 = vpop.f32.mrb[0].mxu0
        %v3104 = vadd.f32 0.0, %v3103
        %v3105 = vpop.f32.mrb[0].mxu0
        %v3106 = vpop.f32.mrb[0].mxu0
        %v3107 = vadd.f32 0.0, %v3106
        %v3108 = vpop.f32.mrb[0].mxu0
        %3109 = vmatprep.mubr.bf16.mxu0 0
        %3110 = vmatmul.mubr.bf16.gmra.mrb[0].mxu0 %v2993
        %v3111 = vpop.f32.mrb[0].mxu0
        %v3112 = vadd.f32 0.0, %v3111
        %v3113 = vpop.f32.mrb[0].mxu0
        %v3114 = vpop.f32.mrb[0].mxu0
        %v3115 = vadd.f32 0.0, %v3114
        %v3116 = vpop.f32.mrb[0].mxu0
        %3117 = vmatprep.mubr.bf16.mxu0 0
        %3118 = vmatmul.mubr.bf16.gmra.mrb[0].mxu0 %v2994
        %v3119 = vpop.f32.mrb[0].mxu0
        %v3120 = vadd.f32 0.0, %v3119
        %v3121 = vpop.f32.mrb[0].mxu0
        %v3122 = vpop.f32.mrb[0].mxu0
        %v3123 = vadd.f32 0.0, %v3122
        %v3124 = vpop.f32.mrb[0].mxu0
        %3125 = vmatprep.mubr.bf16.mxu0 0
        %3126 = vmatmul.mubr.bf16.gmra.mrb[0].mxu0 %v2995
        %v3127 = vpop.f32.mrb[0].mxu0
        %v3128 = vadd.f32 0.0, %v3127
        %v3129 = vpop.f32.mrb[0].mxu0
        %v3130 = vpop.f32.mrb[0].mxu0
        %v3131 = vadd.f32 0.0, %v3130
        %v3132 = vpop.f32.mrb[0].mxu0
        %3133 = vmatprep.mubr.bf16.mxu0 0
        %3134 = vmatmul.mubr.bf16.gmra.mrb[0].mxu0 %v2996
        %v3135 = vpop.f32.mrb[0].mxu0
        %v3136 = vadd.f32 0.0, %v3135
        %v3137 = vpop.f32.mrb[0].mxu0
        %v3138 = vpop.f32.mrb[0].mxu0
        %v3139 = vadd.f32 0.0, %v3138
        %v3140 = vpop.f32.mrb[0].mxu0
        %3141 = vdwg.mxu0
        %v3142 = vadd.f32 %v2585, %v3080
        %v3143 = vadd.f32 %v2586, %v3083
        %v3144 = vadd.f32 %v2587, %v3088
        %v3145 = vadd.f32 %v2588, %v3091
        %v3146 = vadd.f32 %v2589, %v3096
        %v3147 = vadd.f32 %v2590, %v3099
        %v3148 = vadd.f32 %v2591, %v3104
        %v3149 = vadd.f32 %v2592, %v3107
        %v3150 = vadd.f32 %v2593, %v3112
        %v3151 = vadd.f32 %v2594, %v3115
        %v3152 = vadd.f32 %v2595, %v3120
        %v3153 = vadd.f32 %v2596, %v3123
        %v3154 = vadd.f32 %v2597, %v3128
        %v3155 = vadd.f32 %v2598, %v3131
        %v3156 = vadd.f32 %v2599, %v3136
        %v3157 = vadd.f32 %v2600, %v3139
        %v3158 = vpack.c.bf16 %v1939, %v1935
        %v3159 = vpack.c.bf16 %v1949, %v1945
        %v3160 = vpack.c.bf16 %v1959, %v1955
        %v3161 = vpack.c.bf16 %v1969, %v1965
        %v3162 = vpack.c.bf16 %v1979, %v1975
        %v3163 = vpack.c.bf16 %v1989, %v1985
        %v3164 = vpack.c.bf16 %v1999, %v1995
        %v3165 = vpack.c.bf16 %v2009, %v2005
        %v3166 = vpack.c.bf16 %v2165, %v2161
        %v3167 = vpack.c.bf16 %v2175, %v2171
        %v3168 = vpack.c.bf16 %v2185, %v2181
        %v3169 = vpack.c.bf16 %v2195, %v2191
        %v3170 = vpack.c.bf16 %v2205, %v2201
        %v3171 = vpack.c.bf16 %v2215, %v2211
        %v3172 = vpack.c.bf16 %v2225, %v2221
        %v3173 = vpack.c.bf16 %v2235, %v2231
        %v3174 = vpack.c.bf16 %v2391, %v2387
        %v3175 = vpack.c.bf16 %v2401, %v2397
        %v3176 = vpack.c.bf16 %v2411, %v2407
        %v3177 = vpack.c.bf16 %v2421, %v2417
        %v3178 = vpack.c.bf16 %v2431, %v2427
        %v3179 = vpack.c.bf16 %v2441, %v2437
        %v3180 = vpack.c.bf16 %v2451, %v2447
        %v3181 = vpack.c.bf16 %v2461, %v2457
        %3182 = vmatprep.subr.bf16.mxu0 0
        %3183 = vmatpush1.bf16.xpose.msra.mxu0 %v3166
        %3184 = vmatprep.subr.bf16.mxu0 0
        %3185 = vmatpush1.bf16.xpose.msra.mxu0 %v3167
        %3186 = vmatprep.subr.bf16.mxu0 0
        %3187 = vmatpush1.bf16.xpose.msra.mxu0 %v3168
        %3188 = vmatprep.subr.bf16.mxu0 0
        %3189 = vmatpush1.bf16.xpose.msra.mxu0 %v3169
        %3190 = vmatprep.subr.bf16.mxu0 0
        %3191 = vmatpush1.bf16.xpose.msra.mxu0 %v3170
        %3192 = vmatprep.subr.bf16.mxu0 0
        %3193 = vmatpush1.bf16.xpose.msra.mxu0 %v3171
        %3194 = vmatprep.subr.bf16.mxu0 0
        %3195 = vmatpush1.bf16.xpose.msra.mxu0 %v3172
        %3196 = vmatprep.subr.bf16.mxu0 0
        %3197 = vmatpush1.bf16.xpose.msra.mxu0 %v3173
        %3198 = vmatprep.subr.bf16.mxu0 0
        %3199 = vmatpush1.bf16.xpose.msra.mxu0 0
        %3200 = vmatprep.subr.bf16.mxu0 0
        %3201 = vmatpush1.bf16.xpose.msra.mxu0 0
        %3202 = vmatprep.subr.bf16.mxu0 0
        %3203 = vmatpush1.bf16.xpose.msra.mxu0 0
        %3204 = vmatprep.subr.bf16.mxu0 0
        %3205 = vmatpush1.bf16.xpose.msra.mxu0 0
        %3206 = vmatprep.subr.bf16.mxu0 0
        %3207 = vmatpush1.bf16.xpose.msra.mxu0 0
        %3208 = vmatprep.subr.bf16.mxu0 0
        %3209 = vmatpush1.bf16.xpose.msra.mxu0 0
        %3210 = vmatprep.subr.bf16.mxu0 0
        %3211 = vmatpush1.bf16.xpose.msra.mxu0 0
        %3212 = vmatprep.subr.bf16.mxu0 0
        %3213 = vmatpush1.bf16.xpose.msra.mxu0 0
        %3214 = vmatprep.mubr.bf16.mxu0 0
        %3215 = vmatmul.mubr.bf16.gmra.mrb[0].mxu0 %v3158
        %v3216 = vpop.f32.mrb[0].mxu0
        %v3217 = vadd.f32 0.0, %v3216
        %v3218 = vpop.f32.mrb[0].mxu0
        %v3219 = vpop.f32.mrb[0].mxu0
        %v3220 = vadd.f32 0.0, %v3219
        %v3221 = vpop.f32.mrb[0].mxu0
        %3222 = vmatprep.mubr.bf16.mxu0 0
        %3223 = vmatmul.mubr.bf16.gmra.mrb[0].mxu0 %v3159
        %v3224 = vpop.f32.mrb[0].mxu0
        %v3225 = vadd.f32 0.0, %v3224
        %v3226 = vpop.f32.mrb[0].mxu0
        %v3227 = vpop.f32.mrb[0].mxu0
        %v3228 = vadd.f32 0.0, %v3227
        %v3229 = vpop.f32.mrb[0].mxu0
        %3230 = vmatprep.mubr.bf16.mxu0 0
        %3231 = vmatmul.mubr.bf16.gmra.mrb[0].mxu0 %v3160
        %v3232 = vpop.f32.mrb[0].mxu0
        %v3233 = vadd.f32 0.0, %v3232
        %v3234 = vpop.f32.mrb[0].mxu0
        %v3235 = vpop.f32.mrb[0].mxu0
        %v3236 = vadd.f32 0.0, %v3235
        %v3237 = vpop.f32.mrb[0].mxu0
        %3238 = vmatprep.mubr.bf16.mxu0 0
        %3239 = vmatmul.mubr.bf16.gmra.mrb[0].mxu0 %v3161
        %v3240 = vpop.f32.mrb[0].mxu0
        %v3241 = vadd.f32 0.0, %v3240
        %v3242 = vpop.f32.mrb[0].mxu0
        %v3243 = vpop.f32.mrb[0].mxu0
        %v3244 = vadd.f32 0.0, %v3243
        %v3245 = vpop.f32.mrb[0].mxu0
        %3246 = vmatprep.mubr.bf16.mxu0 0
        %3247 = vmatmul.mubr.bf16.gmra.mrb[0].mxu0 %v3162
        %v3248 = vpop.f32.mrb[0].mxu0
        %v3249 = vadd.f32 0.0, %v3248
        %v3250 = vpop.f32.mrb[0].mxu0
        %v3251 = vpop.f32.mrb[0].mxu0
        %v3252 = vadd.f32 0.0, %v3251
        %v3253 = vpop.f32.mrb[0].mxu0
        %3254 = vmatprep.mubr.bf16.mxu0 0
        %3255 = vmatmul.mubr.bf16.gmra.mrb[0].mxu0 %v3163
        %v3256 = vpop.f32.mrb[0].mxu0
        %v3257 = vadd.f32 0.0, %v3256
        %v3258 = vpop.f32.mrb[0].mxu0
        %v3259 = vpop.f32.mrb[0].mxu0
        %v3260 = vadd.f32 0.0, %v3259
        %v3261 = vpop.f32.mrb[0].mxu0
        %3262 = vmatprep.mubr.bf16.mxu0 0
        %3263 = vmatmul.mubr.bf16.gmra.mrb[0].mxu0 %v3164
        %v3264 = vpop.f32.mrb[0].mxu0
        %v3265 = vadd.f32 0.0, %v3264
        %v3266 = vpop.f32.mrb[0].mxu0
        %v3267 = vpop.f32.mrb[0].mxu0
        %v3268 = vadd.f32 0.0, %v3267
        %v3269 = vpop.f32.mrb[0].mxu0
        %3270 = vmatprep.mubr.bf16.mxu0 0
        %3271 = vmatmul.mubr.bf16.gmra.mrb[0].mxu0 %v3165
        %v3272 = vpop.f32.mrb[0].mxu0
        %v3273 = vadd.f32 0.0, %v3272
        %v3274 = vpop.f32.mrb[0].mxu0
        %v3275 = vpop.f32.mrb[0].mxu0
        %v3276 = vadd.f32 0.0, %v3275
        %v3277 = vpop.f32.mrb[0].mxu0
        %3278 = vdwg.mxu0
        %v3279 = vsel %vm2723, %v3217, -1e+30
        %v3280 = vsel %vm2723, %v3220, -1e+30
        %v3281 = vsel %vm2723, %v3225, -1e+30
        %v3282 = vsel %vm2723, %v3228, -1e+30
        %v3283 = vsel %vm2723, %v3233, -1e+30
        %v3284 = vsel %vm2723, %v3236, -1e+30
        %v3285 = vsel %vm2723, %v3241, -1e+30
        %v3286 = vsel %vm2723, %v3244, -1e+30
        %v3287 = vsel %vm2723, %v3249, -1e+30
        %v3288 = vsel %vm2723, %v3252, -1e+30
        %v3289 = vsel %vm2723, %v3257, -1e+30
        %v3290 = vsel %vm2723, %v3260, -1e+30
        %v3291 = vsel %vm2723, %v3265, -1e+30
        %v3292 = vsel %vm2723, %v3268, -1e+30
        %v3293 = vsel %vm2723, %v3273, -1e+30
        %v3294 = vsel %vm2723, %v3276, -1e+30
        %3295 = vmax.xlane.f32.xlu0 %v3279
        %v3296 = vpop.xlane.xlu0 %3295
        %3297 = vmax.xlane.f32.xlu0 %v3280
        %v3298 = vpop.xlane.xlu0 %3297
        %3299 = vmax.xlane.f32.xlu0 %v3281
        %v3300 = vpop.xlane.xlu0 %3299
        %3301 = vmax.xlane.f32.xlu0 %v3282
        %v3302 = vpop.xlane.xlu0 %3301
        %3303 = vmax.xlane.f32.xlu0 %v3283
        %v3304 = vpop.xlane.xlu0 %3303
        %3305 = vmax.xlane.f32.xlu0 %v3284
        %v3306 = vpop.xlane.xlu0 %3305
        %3307 = vmax.xlane.f32.xlu0 %v3285
        %v3308 = vpop.xlane.xlu0 %3307
        %3309 = vmax.xlane.f32.xlu0 %v3286
        %v3310 = vpop.xlane.xlu0 %3309
        %3311 = vmax.xlane.f32.xlu0 %v3287
        %v3312 = vpop.xlane.xlu0 %3311
        %3313 = vmax.xlane.f32.xlu0 %v3288
        %v3314 = vpop.xlane.xlu0 %3313
        %3315 = vmax.xlane.f32.xlu0 %v3289
        %v3316 = vpop.xlane.xlu0 %3315
        %3317 = vmax.xlane.f32.xlu0 %v3290
        %v3318 = vpop.xlane.xlu0 %3317
        %3319 = vmax.xlane.f32.xlu0 %v3291
        %v3320 = vpop.xlane.xlu0 %3319
        %3321 = vmax.xlane.f32.xlu0 %v3292
        %v3322 = vpop.xlane.xlu0 %3321
        %3323 = vmax.xlane.f32.xlu0 %v3293
        %v3324 = vpop.xlane.xlu0 %3323
        %3325 = vmax.xlane.f32.xlu0 %v3294
        %v3326 = vpop.xlane.xlu0 %3325
        %v3327 = vsub.f32 %v3279, %v3296
        %v3328 = vsub.f32 %v3280, %v3298
        %v3329 = vsub.f32 %v3281, %v3300
        %v3330 = vsub.f32 %v3282, %v3302
        %v3331 = vsub.f32 %v3283, %v3304
        %v3332 = vsub.f32 %v3284, %v3306
        %v3333 = vsub.f32 %v3285, %v3308
        %v3334 = vsub.f32 %v3286, %v3310
        %v3335 = vsub.f32 %v3287, %v3312
        %v3336 = vsub.f32 %v3288, %v3314
        %v3337 = vsub.f32 %v3289, %v3316
        %v3338 = vsub.f32 %v3290, %v3318
        %v3339 = vsub.f32 %v3291, %v3320
        %v3340 = vsub.f32 %v3292, %v3322
        %v3341 = vsub.f32 %v3293, %v3324
        %v3342 = vsub.f32 %v3294, %v3326
        %v3343 = vmul.f32 %v3327, 1.442695
        %v3344 = vpow.pop %v3343
        %v3345 = vmul.f32 %v3328, 1.442695
        %v3346 = vpow.pop %v3345
        %v3347 = vmul.f32 %v3329, 1.442695
        %v3348 = vpow.pop %v3347
        %v3349 = vmul.f32 %v3330, 1.442695
        %v3350 = vpow.pop %v3349
        %v3351 = vmul.f32 %v3331, 1.442695
        %v3352 = vpow.pop %v3351
        %v3353 = vmul.f32 %v3332, 1.442695
        %v3354 = vpow.pop %v3353
        %v3355 = vmul.f32 %v3333, 1.442695
        %v3356 = vpow.pop %v3355
        %v3357 = vmul.f32 %v3334, 1.442695
        %v3358 = vpow.pop %v3357
        %v3359 = vmul.f32 %v3335, 1.442695
        %v3360 = vpow.pop %v3359
        %v3361 = vmul.f32 %v3336, 1.442695
        %v3362 = vpow.pop %v3361
        %v3363 = vmul.f32 %v3337, 1.442695
        %v3364 = vpow.pop %v3363
        %v3365 = vmul.f32 %v3338, 1.442695
        %v3366 = vpow.pop %v3365
        %v3367 = vmul.f32 %v3339, 1.442695
        %v3368 = vpow.pop %v3367
        %v3369 = vmul.f32 %v3340, 1.442695
        %v3370 = vpow.pop %v3369
        %v3371 = vmul.f32 %v3341, 1.442695
        %v3372 = vpow.pop %v3371
        %v3373 = vmul.f32 %v3342, 1.442695
        %v3374 = vpow.pop %v3373
        %3375 = vadd.xlane.f32.xlu0 %v3344
        %v3376 = vpop.xlane.xlu0 %3375
        %3377 = vadd.xlane.f32.xlu0 %v3346
        %v3378 = vpop.xlane.xlu0 %3377
        %3379 = vadd.xlane.f32.xlu0 %v3348
        %v3380 = vpop.xlane.xlu0 %3379
        %3381 = vadd.xlane.f32.xlu0 %v3350
        %v3382 = vpop.xlane.xlu0 %3381
        %3383 = vadd.xlane.f32.xlu0 %v3352
        %v3384 = vpop.xlane.xlu0 %3383
        %3385 = vadd.xlane.f32.xlu0 %v3354
        %v3386 = vpop.xlane.xlu0 %3385
        %3387 = vadd.xlane.f32.xlu0 %v3356
        %v3388 = vpop.xlane.xlu0 %3387
        %3389 = vadd.xlane.f32.xlu0 %v3358
        %v3390 = vpop.xlane.xlu0 %3389
        %3391 = vadd.xlane.f32.xlu0 %v3360
        %v3392 = vpop.xlane.xlu0 %3391
        %3393 = vadd.xlane.f32.xlu0 %v3362
        %v3394 = vpop.xlane.xlu0 %3393
        %3395 = vadd.xlane.f32.xlu0 %v3364
        %v3396 = vpop.xlane.xlu0 %3395
        %3397 = vadd.xlane.f32.xlu0 %v3366
        %v3398 = vpop.xlane.xlu0 %3397
        %3399 = vadd.xlane.f32.xlu0 %v3368
        %v3400 = vpop.xlane.xlu0 %3399
        %3401 = vadd.xlane.f32.xlu0 %v3370
        %v3402 = vpop.xlane.xlu0 %3401
        %3403 = vadd.xlane.f32.xlu0 %v3372
        %v3404 = vpop.xlane.xlu0 %3403
        %3405 = vadd.xlane.f32.xlu0 %v3374
        %v3406 = vpop.xlane.xlu0 %3405
        %v3407 = vrcp.pop %v3376
        %v3408 = vrcp.pop %v3378
        %v3409 = vrcp.pop %v3380
        %v3410 = vrcp.pop %v3382
        %v3411 = vrcp.pop %v3384
        %v3412 = vrcp.pop %v3386
        %v3413 = vrcp.pop %v3388
        %v3414 = vrcp.pop %v3390
        %v3415 = vrcp.pop %v3392
        %v3416 = vrcp.pop %v3394
        %v3417 = vrcp.pop %v3396
        %v3418 = vrcp.pop %v3398
        %v3419 = vrcp.pop %v3400
        %v3420 = vrcp.pop %v3402
        %v3421 = vrcp.pop %v3404
        %v3422 = vrcp.pop %v3406
        %v3423 = vmul.f32 %v3344, %v3407
        %v3424 = vmul.f32 %v3346, %v3408
        %v3425 = vmul.f32 %v3348, %v3409
        %v3426 = vmul.f32 %v3350, %v3410
        %v3427 = vmul.f32 %v3352, %v3411
        %v3428 = vmul.f32 %v3354, %v3412
        %v3429 = vmul.f32 %v3356, %v3413
        %v3430 = vmul.f32 %v3358, %v3414
        %v3431 = vmul.f32 %v3360, %v3415
        %v3432 = vmul.f32 %v3362, %v3416
        %v3433 = vmul.f32 %v3364, %v3417
        %v3434 = vmul.f32 %v3366, %v3418
        %v3435 = vmul.f32 %v3368, %v3419
        %v3436 = vmul.f32 %v3370, %v3420
        %v3437 = vmul.f32 %v3372, %v3421
        %v3438 = vmul.f32 %v3374, %v3422
        %v3439 = vpack.c.bf16 %v3424, %v3423
        %v3440 = vpack.c.bf16 %v3426, %v3425
        %v3441 = vpack.c.bf16 %v3428, %v3427
        %v3442 = vpack.c.bf16 %v3430, %v3429
        %v3443 = vpack.c.bf16 %v3432, %v3431
        %v3444 = vpack.c.bf16 %v3434, %v3433
        %v3445 = vpack.c.bf16 %v3436, %v3435
        %v3446 = vpack.c.bf16 %v3438, %v3437
        %3447 = vmatprep.subr.bf16.mxu0 0
        %3448 = vmatpush1.bf16.msra.mxu0 %v3174
        %3449 = vmatprep.subr.bf16.mxu0 0
        %3450 = vmatpush1.bf16.msra.mxu0 %v3175
        %3451 = vmatprep.subr.bf16.mxu0 0
        %3452 = vmatpush1.bf16.msra.mxu0 %v3176
        %3453 = vmatprep.subr.bf16.mxu0 0
        %3454 = vmatpush1.bf16.msra.mxu0 %v3177
        %3455 = vmatprep.subr.bf16.mxu0 0
        %3456 = vmatpush1.bf16.msra.mxu0 %v3178
        %3457 = vmatprep.subr.bf16.mxu0 0
        %3458 = vmatpush1.bf16.msra.mxu0 %v3179
        %3459 = vmatprep.subr.bf16.mxu0 0
        %3460 = vmatpush1.bf16.msra.mxu0 %v3180
        %3461 = vmatprep.subr.bf16.mxu0 0
        %3462 = vmatpush1.bf16.msra.mxu0 %v3181
        %3463 = vmatprep.subr.bf16.mxu0 0
        %3464 = vmatpush1.bf16.msra.mxu0 0
        %3465 = vmatprep.subr.bf16.mxu0 0
        %3466 = vmatpush1.bf16.msra.mxu0 0
        %3467 = vmatprep.subr.bf16.mxu0 0
        %3468 = vmatpush1.bf16.msra.mxu0 0
        %3469 = vmatprep.subr.bf16.mxu0 0
        %3470 = vmatpush1.bf16.msra.mxu0 0
        %3471 = vmatprep.subr.bf16.mxu0 0
        %3472 = vmatpush1.bf16.msra.mxu0 0
        %3473 = vmatprep.subr.bf16.mxu0 0
        %3474 = vmatpush1.bf16.msra.mxu0 0
        %3475 = vmatprep.subr.bf16.mxu0 0
        %3476 = vmatpush1.bf16.msra.mxu0 0
        %3477 = vmatprep.subr.bf16.mxu0 0
        %3478 = vmatpush1.bf16.msra.mxu0 0
        %3479 = vmatprep.mubr.bf16.mxu0 0
        %3480 = vmatmul.mubr.bf16.gmra.mrb[0].mxu0 %v3439
        %v3481 = vpop.f32.mrb[0].mxu0
        %v3482 = vadd.f32 0.0, %v3481
        %v3483 = vpop.f32.mrb[0].mxu0
        %v3484 = vpop.f32.mrb[0].mxu0
        %v3485 = vadd.f32 0.0, %v3484
        %v3486 = vpop.f32.mrb[0].mxu0
        %3487 = vmatprep.mubr.bf16.mxu0 0
        %3488 = vmatmul.mubr.bf16.gmra.mrb[0].mxu0 %v3440
        %v3489 = vpop.f32.mrb[0].mxu0
        %v3490 = vadd.f32 0.0, %v3489
        %v3491 = vpop.f32.mrb[0].mxu0
        %v3492 = vpop.f32.mrb[0].mxu0
        %v3493 = vadd.f32 0.0, %v3492
        %v3494 = vpop.f32.mrb[0].mxu0
        %3495 = vmatprep.mubr.bf16.mxu0 0
        %3496 = vmatmul.mubr.bf16.gmra.mrb[0].mxu0 %v3441
        %v3497 = vpop.f32.mrb[0].mxu0
        %v3498 = vadd.f32 0.0, %v3497
        %v3499 = vpop.f32.mrb[0].mxu0
        %v3500 = vpop.f32.mrb[0].mxu0
        %v3501 = vadd.f32 0.0, %v3500
        %v3502 = vpop.f32.mrb[0].mxu0
        %3503 = vmatprep.mubr.bf16.mxu0 0
        %3504 = vmatmul.mubr.bf16.gmra.mrb[0].mxu0 %v3442
        %v3505 = vpop.f32.mrb[0].mxu0
        %v3506 = vadd.f32 0.0, %v3505
        %v3507 = vpop.f32.mrb[0].mxu0
        %v3508 = vpop.f32.mrb[0].mxu0
        %v3509 = vadd.f32 0.0, %v3508
        %v3510 = vpop.f32.mrb[0].mxu0
        %3511 = vmatprep.mubr.bf16.mxu0 0
        %3512 = vmatmul.mubr.bf16.gmra.mrb[0].mxu0 %v3443
        %v3513 = vpop.f32.mrb[0].mxu0
        %v3514 = vadd.f32 0.0, %v3513
        %v3515 = vpop.f32.mrb[0].mxu0
        %v3516 = vpop.f32.mrb[0].mxu0
        %v3517 = vadd.f32 0.0, %v3516
        %v3518 = vpop.f32.mrb[0].mxu0
        %3519 = vmatprep.mubr.bf16.mxu0 0
        %3520 = vmatmul.mubr.bf16.gmra.mrb[0].mxu0 %v3444
        %v3521 = vpop.f32.mrb[0].mxu0
        %v3522 = vadd.f32 0.0, %v3521
        %v3523 = vpop.f32.mrb[0].mxu0
        %v3524 = vpop.f32.mrb[0].mxu0
        %v3525 = vadd.f32 0.0, %v3524
        %v3526 = vpop.f32.mrb[0].mxu0
        %3527 = vmatprep.mubr.bf16.mxu0 0
        %3528 = vmatmul.mubr.bf16.gmra.mrb[0].mxu0 %v3445
        %v3529 = vpop.f32.mrb[0].mxu0
        %v3530 = vadd.f32 0.0, %v3529
        %v3531 = vpop.f32.mrb[0].mxu0
        %v3532 = vpop.f32.mrb[0].mxu0
        %v3533 = vadd.f32 0.0, %v3532
        %v3534 = vpop.f32.mrb[0].mxu0
        %3535 = vmatprep.mubr.bf16.mxu0 0
        %3536 = vmatmul.mubr.bf16.gmra.mrb[0].mxu0 %v3446
        %v3537 = vpop.f32.mrb[0].mxu0
        %v3538 = vadd.f32 0.0, %v3537
        %v3539 = vpop.f32.mrb[0].mxu0
        %v3540 = vpop.f32.mrb[0].mxu0
        %v3541 = vadd.f32 0.0, %v3540
        %v3542 = vpop.f32.mrb[0].mxu0
        %3543 = vdwg.mxu0
        %v3544 = vpack.c.bf16 %v3485, %v3482
        %v3545 = vpack.c.bf16 %v3493, %v3490
        %v3546 = vpack.c.bf16 %v3501, %v3498
        %v3547 = vpack.c.bf16 %v3509, %v3506
        %v3548 = vpack.c.bf16 %v3517, %v3514
        %v3549 = vpack.c.bf16 %v3525, %v3522
        %v3550 = vpack.c.bf16 %v3533, %v3530
        %v3551 = vpack.c.bf16 %v3541, %v3538
        %v3568 = vunpack.c.l.b16 %v995
        %v3569 = vunpack.c.l.b16 %v996
        %v3570 = vunpack.c.l.b16 %v997
        %v3571 = vunpack.c.l.b16 %v998
        %v3572 = vunpack.c.l.b16 %v999
        %v3573 = vunpack.c.l.b16 %v1000
        %v3574 = vunpack.c.l.b16 %v1001
        %v3575 = vunpack.c.l.b16 %v1002
        %v3576 = vunpack.c.l.b16 %v1003
        %v3577 = vunpack.c.l.b16 %v1004
        %v3578 = vunpack.c.l.b16 %v1005
        %v3579 = vunpack.c.l.b16 %v1006
        %v3580 = vunpack.c.l.b16 %v1007
        %v3581 = vunpack.c.l.b16 %v1008
        %v3582 = vunpack.c.l.b16 %v1009
        %v3583 = vunpack.c.l.b16 %v1010
        %v3584 = vpack.c.b16 %v3569, %v3568
        %v3585 = vpack.c.b16 %v3571, %v3570
        %v3586 = vpack.c.b16 %v3573, %v3572
        %v3587 = vpack.c.b16 %v3575, %v3574
        %v3588 = vpack.c.b16 %v3577, %v3576
        %v3589 = vpack.c.b16 %v3579, %v3578
        %v3590 = vpack.c.b16 %v3581, %v3580
        %v3591 = vpack.c.b16 %v3583, %v3582
        %3600 = vmatprep.subr.bf16.mxu0 0
        %3601 = vmatpush1.bf16.msra.mxu0 %v3584
        %3602 = vmatprep.subr.bf16.mxu0 0
        %3603 = vmatpush1.bf16.msra.mxu0 %v3585
        %3604 = vmatprep.subr.bf16.mxu0 0
        %3605 = vmatpush1.bf16.msra.mxu0 %v3586
        %3606 = vmatprep.subr.bf16.mxu0 0
        %3607 = vmatpush1.bf16.msra.mxu0 %v3587
        %3608 = vmatprep.subr.bf16.mxu0 0
        %3609 = vmatpush1.bf16.msra.mxu0 %v3588
        %3610 = vmatprep.subr.bf16.mxu0 0
        %3611 = vmatpush1.bf16.msra.mxu0 %v3589
        %3612 = vmatprep.subr.bf16.mxu0 0
        %3613 = vmatpush1.bf16.msra.mxu0 %v3590
        %3614 = vmatprep.subr.bf16.mxu0 0
        %3615 = vmatpush1.bf16.msra.mxu0 %v3591
        %3616 = vmatprep.subr.bf16.mxu0 0
        %3617 = vmatpush1.bf16.msra.mxu0 0
        %3618 = vmatprep.subr.bf16.mxu0 0
        %3619 = vmatpush1.bf16.msra.mxu0 0
        %3620 = vmatprep.subr.bf16.mxu0 0
        %3621 = vmatpush1.bf16.msra.mxu0 0
        %3622 = vmatprep.subr.bf16.mxu0 0
        %3623 = vmatpush1.bf16.msra.mxu0 0
        %3624 = vmatprep.subr.bf16.mxu0 0
        %3625 = vmatpush1.bf16.msra.mxu0 0
        %3626 = vmatprep.subr.bf16.mxu0 0
        %3627 = vmatpush1.bf16.msra.mxu0 0
        %3628 = vmatprep.subr.bf16.mxu0 0
        %3629 = vmatpush1.bf16.msra.mxu0 0
        %3630 = vmatprep.subr.bf16.mxu0 0
        %3631 = vmatpush1.bf16.msra.mxu0 0
        %3632 = vmatprep.mubr.bf16.mxu0 0
        %3633 = vmatmul.mubr.bf16.gmra.mrb[0].mxu0 %v3544
        %v3634 = vpop.f32.mrb[0].mxu0
        %v3635 = vadd.f32 0.0, %v3634
        %v3636 = vpop.f32.mrb[0].mxu0
        %v3637 = vpop.f32.mrb[0].mxu0
        %v3638 = vadd.f32 0.0, %v3637
        %v3639 = vpop.f32.mrb[0].mxu0
        %3640 = vmatprep.mubr.bf16.mxu0 0
        %3641 = vmatmul.mubr.bf16.gmra.mrb[0].mxu0 %v3545
        %v3642 = vpop.f32.mrb[0].mxu0
        %v3643 = vadd.f32 0.0, %v3642
        %v3644 = vpop.f32.mrb[0].mxu0
        %v3645 = vpop.f32.mrb[0].mxu0
        %v3646 = vadd.f32 0.0, %v3645
        %v3647 = vpop.f32.mrb[0].mxu0
        %3648 = vmatprep.mubr.bf16.mxu0 0
        %3649 = vmatmul.mubr.bf16.gmra.mrb[0].mxu0 %v3546
        %v3650 = vpop.f32.mrb[0].mxu0
        %v3651 = vadd.f32 0.0, %v3650
        %v3652 = vpop.f32.mrb[0].mxu0
        %v3653 = vpop.f32.mrb[0].mxu0
        %v3654 = vadd.f32 0.0, %v3653
        %v3655 = vpop.f32.mrb[0].mxu0
        %3656 = vmatprep.mubr.bf16.mxu0 0
        %3657 = vmatmul.mubr.bf16.gmra.mrb[0].mxu0 %v3547
        %v3658 = vpop.f32.mrb[0].mxu0
        %v3659 = vadd.f32 0.0, %v3658
        %v3660 = vpop.f32.mrb[0].mxu0
        %v3661 = vpop.f32.mrb[0].mxu0
        %v3662 = vadd.f32 0.0, %v3661
        %v3663 = vpop.f32.mrb[0].mxu0
        %3664 = vmatprep.mubr.bf16.mxu0 0
        %3665 = vmatmul.mubr.bf16.gmra.mrb[0].mxu0 %v3548
        %v3666 = vpop.f32.mrb[0].mxu0
        %v3667 = vadd.f32 0.0, %v3666
        %v3668 = vpop.f32.mrb[0].mxu0
        %v3669 = vpop.f32.mrb[0].mxu0
        %v3670 = vadd.f32 0.0, %v3669
        %v3671 = vpop.f32.mrb[0].mxu0
        %3672 = vmatprep.mubr.bf16.mxu0 0
        %3673 = vmatmul.mubr.bf16.gmra.mrb[0].mxu0 %v3549
        %v3674 = vpop.f32.mrb[0].mxu0
        %v3675 = vadd.f32 0.0, %v3674
        %v3676 = vpop.f32.mrb[0].mxu0
        %v3677 = vpop.f32.mrb[0].mxu0
        %v3678 = vadd.f32 0.0, %v3677
        %v3679 = vpop.f32.mrb[0].mxu0
        %3680 = vmatprep.mubr.bf16.mxu0 0
        %3681 = vmatmul.mubr.bf16.gmra.mrb[0].mxu0 %v3550
        %v3682 = vpop.f32.mrb[0].mxu0
        %v3683 = vadd.f32 0.0, %v3682
        %v3684 = vpop.f32.mrb[0].mxu0
        %v3685 = vpop.f32.mrb[0].mxu0
        %v3686 = vadd.f32 0.0, %v3685
        %v3687 = vpop.f32.mrb[0].mxu0
        %3688 = vmatprep.mubr.bf16.mxu0 0
        %3689 = vmatmul.mubr.bf16.gmra.mrb[0].mxu0 %v3551
        %v3690 = vpop.f32.mrb[0].mxu0
        %v3691 = vadd.f32 0.0, %v3690
        %v3692 = vpop.f32.mrb[0].mxu0
        %v3693 = vpop.f32.mrb[0].mxu0
        %v3694 = vadd.f32 0.0, %v3693
        %v3695 = vpop.f32.mrb[0].mxu0
        %3696 = vdwg.mxu0
        %v3697 = vadd.f32 %v3142, %v3635
        %v3698 = vadd.f32 %v3143, %v3638
        %v3699 = vadd.f32 %v3144, %v3643
        %v3700 = vadd.f32 %v3145, %v3646
        %v3701 = vadd.f32 %v3146, %v3651
        %v3702 = vadd.f32 %v3147, %v3654
        %v3703 = vadd.f32 %v3148, %v3659
        %v3704 = vadd.f32 %v3149, %v3662
        %v3705 = vadd.f32 %v3150, %v3667
        %v3706 = vadd.f32 %v3151, %v3670
        %v3707 = vadd.f32 %v3152, %v3675
        %v3708 = vadd.f32 %v3153, %v3678
        %v3709 = vadd.f32 %v3154, %v3683
        %v3710 = vadd.f32 %v3155, %v3686
        %v3711 = vadd.f32 %v3156, %v3691
        %v3712 = vadd.f32 %v3157, %v3694
        %v3713 = vpack.c.bf16 %v2050, %v2046
        %v3714 = vpack.c.bf16 %v2060, %v2056
        %v3715 = vpack.c.bf16 %v2070, %v2066
        %v3716 = vpack.c.bf16 %v2080, %v2076
        %v3717 = vpack.c.bf16 %v2090, %v2086
        %v3718 = vpack.c.bf16 %v2100, %v2096
        %v3719 = vpack.c.bf16 %v2110, %v2106
        %v3720 = vpack.c.bf16 %v2120, %v2116
        %v3721 = vpack.c.bf16 %v2276, %v2272
        %v3722 = vpack.c.bf16 %v2286, %v2282
        %v3723 = vpack.c.bf16 %v2296, %v2292
        %v3724 = vpack.c.bf16 %v2306, %v2302
        %v3725 = vpack.c.bf16 %v2316, %v2312
        %v3726 = vpack.c.bf16 %v2326, %v2322
        %v3727 = vpack.c.bf16 %v2336, %v2332
        %v3728 = vpack.c.bf16 %v2346, %v2342
        %v3729 = vpack.c.bf16 %v2502, %v2498
        %v3730 = vpack.c.bf16 %v2512, %v2508
        %v3731 = vpack.c.bf16 %v2522, %v2518
        %v3732 = vpack.c.bf16 %v2532, %v2528
        %v3733 = vpack.c.bf16 %v2542, %v2538
        %v3734 = vpack.c.bf16 %v2552, %v2548
        %v3735 = vpack.c.bf16 %v2562, %v2558
        %v3736 = vpack.c.bf16 %v2572, %v2568
        %3737 = vmatprep.subr.bf16.mxu0 0
        %3738 = vmatpush1.bf16.xpose.msra.mxu0 %v3721
        %3739 = vmatprep.subr.bf16.mxu0 0
        %3740 = vmatpush1.bf16.xpose.msra.mxu0 %v3722
        %3741 = vmatprep.subr.bf16.mxu0 0
        %3742 = vmatpush1.bf16.xpose.msra.mxu0 %v3723
        %3743 = vmatprep.subr.bf16.mxu0 0
        %3744 = vmatpush1.bf16.xpose.msra.mxu0 %v3724
        %3745 = vmatprep.subr.bf16.mxu0 0
        %3746 = vmatpush1.bf16.xpose.msra.mxu0 %v3725
        %3747 = vmatprep.subr.bf16.mxu0 0
        %3748 = vmatpush1.bf16.xpose.msra.mxu0 %v3726
        %3749 = vmatprep.subr.bf16.mxu0 0
        %3750 = vmatpush1.bf16.xpose.msra.mxu0 %v3727
        %3751 = vmatprep.subr.bf16.mxu0 0
        %3752 = vmatpush1.bf16.xpose.msra.mxu0 %v3728
        %3753 = vmatprep.subr.bf16.mxu0 0
        %3754 = vmatpush1.bf16.xpose.msra.mxu0 0
        %3755 = vmatprep.subr.bf16.mxu0 0
        %3756 = vmatpush1.bf16.xpose.msra.mxu0 0
        %3757 = vmatprep.subr.bf16.mxu0 0
        %3758 = vmatpush1.bf16.xpose.msra.mxu0 0
        %3759 = vmatprep.subr.bf16.mxu0 0
        %3760 = vmatpush1.bf16.xpose.msra.mxu0 0
        %3761 = vmatprep.subr.bf16.mxu0 0
        %3762 = vmatpush1.bf16.xpose.msra.mxu0 0
        %3763 = vmatprep.subr.bf16.mxu0 0
        %3764 = vmatpush1.bf16.xpose.msra.mxu0 0
        %3765 = vmatprep.subr.bf16.mxu0 0
        %3766 = vmatpush1.bf16.xpose.msra.mxu0 0
        %3767 = vmatprep.subr.bf16.mxu0 0
        %3768 = vmatpush1.bf16.xpose.msra.mxu0 0
        %3769 = vmatprep.mubr.bf16.mxu0 0
        %3770 = vmatmul.mubr.bf16.gmra.mrb[0].mxu0 %v3713
        %v3771 = vpop.f32.mrb[0].mxu0
        %v3772 = vadd.f32 0.0, %v3771
        %v3773 = vpop.f32.mrb[0].mxu0
        %v3774 = vpop.f32.mrb[0].mxu0
        %v3775 = vadd.f32 0.0, %v3774
        %v3776 = vpop.f32.mrb[0].mxu0
        %3777 = vmatprep.mubr.bf16.mxu0 0
        %3778 = vmatmul.mubr.bf16.gmra.mrb[0].mxu0 %v3714
        %v3779 = vpop.f32.mrb[0].mxu0
        %v3780 = vadd.f32 0.0, %v3779
        %v3781 = vpop.f32.mrb[0].mxu0
        %v3782 = vpop.f32.mrb[0].mxu0
        %v3783 = vadd.f32 0.0, %v3782
        %v3784 = vpop.f32.mrb[0].mxu0
        %3785 = vmatprep.mubr.bf16.mxu0 0
        %3786 = vmatmul.mubr.bf16.gmra.mrb[0].mxu0 %v3715
        %v3787 = vpop.f32.mrb[0].mxu0
        %v3788 = vadd.f32 0.0, %v3787
        %v3789 = vpop.f32.mrb[0].mxu0
        %v3790 = vpop.f32.mrb[0].mxu0
        %v3791 = vadd.f32 0.0, %v3790
        %v3792 = vpop.f32.mrb[0].mxu0
        %3793 = vmatprep.mubr.bf16.mxu0 0
        %3794 = vmatmul.mubr.bf16.gmra.mrb[0].mxu0 %v3716
        %v3795 = vpop.f32.mrb[0].mxu0
        %v3796 = vadd.f32 0.0, %v3795
        %v3797 = vpop.f32.mrb[0].mxu0
        %v3798 = vpop.f32.mrb[0].mxu0
        %v3799 = vadd.f32 0.0, %v3798
        %v3800 = vpop.f32.mrb[0].mxu0
        %3801 = vmatprep.mubr.bf16.mxu0 0
        %3802 = vmatmul.mubr.bf16.gmra.mrb[0].mxu0 %v3717
        %v3803 = vpop.f32.mrb[0].mxu0
        %v3804 = vadd.f32 0.0, %v3803
        %v3805 = vpop.f32.mrb[0].mxu0
        %v3806 = vpop.f32.mrb[0].mxu0
        %v3807 = vadd.f32 0.0, %v3806
        %v3808 = vpop.f32.mrb[0].mxu0
        %3809 = vmatprep.mubr.bf16.mxu0 0
        %3810 = vmatmul.mubr.bf16.gmra.mrb[0].mxu0 %v3718
        %v3811 = vpop.f32.mrb[0].mxu0
        %v3812 = vadd.f32 0.0, %v3811
        %v3813 = vpop.f32.mrb[0].mxu0
        %v3814 = vpop.f32.mrb[0].mxu0
        %v3815 = vadd.f32 0.0, %v3814
        %v3816 = vpop.f32.mrb[0].mxu0
        %3817 = vmatprep.mubr.bf16.mxu0 0
        %3818 = vmatmul.mubr.bf16.gmra.mrb[0].mxu0 %v3719
        %v3819 = vpop.f32.mrb[0].mxu0
        %v3820 = vadd.f32 0.0, %v3819
        %v3821 = vpop.f32.mrb[0].mxu0
        %v3822 = vpop.f32.mrb[0].mxu0
        %v3823 = vadd.f32 0.0, %v3822
        %v3824 = vpop.f32.mrb[0].mxu0
        %3825 = vmatprep.mubr.bf16.mxu0 0
        %3826 = vmatmul.mubr.bf16.gmra.mrb[0].mxu0 %v3720
        %v3827 = vpop.f32.mrb[0].mxu0
        %v3828 = vadd.f32 0.0, %v3827
        %v3829 = vpop.f32.mrb[0].mxu0
        %v3830 = vpop.f32.mrb[0].mxu0
        %v3831 = vadd.f32 0.0, %v3830
        %v3832 = vpop.f32.mrb[0].mxu0
        %3833 = vdwg.mxu0
        %v3834 = vsel %vm2723, %v3772, -1e+30
        %v3835 = vsel %vm2723, %v3775, -1e+30
        %v3836 = vsel %vm2723, %v3780, -1e+30
        %v3837 = vsel %vm2723, %v3783, -1e+30
        %v3838 = vsel %vm2723, %v3788, -1e+30
        %v3839 = vsel %vm2723, %v3791, -1e+30
        %v3840 = vsel %vm2723, %v3796, -1e+30
        %v3841 = vsel %vm2723, %v3799, -1e+30
        %v3842 = vsel %vm2723, %v3804, -1e+30
        %v3843 = vsel %vm2723, %v3807, -1e+30
        %v3844 = vsel %vm2723, %v3812, -1e+30
        %v3845 = vsel %vm2723, %v3815, -1e+30
        %v3846 = vsel %vm2723, %v3820, -1e+30
        %v3847 = vsel %vm2723, %v3823, -1e+30
        %v3848 = vsel %vm2723, %v3828, -1e+30
        %v3849 = vsel %vm2723, %v3831, -1e+30
        %3850 = vmax.xlane.f32.xlu0 %v3834
        %v3851 = vpop.xlane.xlu0 %3850
        %3852 = vmax.xlane.f32.xlu0 %v3835
        %v3853 = vpop.xlane.xlu0 %3852
        %3854 = vmax.xlane.f32.xlu0 %v3836
        %v3855 = vpop.xlane.xlu0 %3854
        %3856 = vmax.xlane.f32.xlu0 %v3837
        %v3857 = vpop.xlane.xlu0 %3856
        %3858 = vmax.xlane.f32.xlu0 %v3838
        %v3859 = vpop.xlane.xlu0 %3858
        %3860 = vmax.xlane.f32.xlu0 %v3839
        %v3861 = vpop.xlane.xlu0 %3860
        %3862 = vmax.xlane.f32.xlu0 %v3840
        %v3863 = vpop.xlane.xlu0 %3862
        %3864 = vmax.xlane.f32.xlu0 %v3841
        %v3865 = vpop.xlane.xlu0 %3864
        %3866 = vmax.xlane.f32.xlu0 %v3842
        %v3867 = vpop.xlane.xlu0 %3866
        %3868 = vmax.xlane.f32.xlu0 %v3843
        %v3869 = vpop.xlane.xlu0 %3868
        %3870 = vmax.xlane.f32.xlu0 %v3844
        %v3871 = vpop.xlane.xlu0 %3870
        %3872 = vmax.xlane.f32.xlu0 %v3845
        %v3873 = vpop.xlane.xlu0 %3872
        %3874 = vmax.xlane.f32.xlu0 %v3846
        %v3875 = vpop.xlane.xlu0 %3874
        %3876 = vmax.xlane.f32.xlu0 %v3847
        %v3877 = vpop.xlane.xlu0 %3876
        %3878 = vmax.xlane.f32.xlu0 %v3848
        %v3879 = vpop.xlane.xlu0 %3878
        %3880 = vmax.xlane.f32.xlu0 %v3849
        %v3881 = vpop.xlane.xlu0 %3880
        %v3882 = vsub.f32 %v3834, %v3851
        %v3883 = vsub.f32 %v3835, %v3853
        %v3884 = vsub.f32 %v3836, %v3855
        %v3885 = vsub.f32 %v3837, %v3857
        %v3886 = vsub.f32 %v3838, %v3859
        %v3887 = vsub.f32 %v3839, %v3861
        %v3888 = vsub.f32 %v3840, %v3863
        %v3889 = vsub.f32 %v3841, %v3865
        %v3890 = vsub.f32 %v3842, %v3867
        %v3891 = vsub.f32 %v3843, %v3869
        %v3892 = vsub.f32 %v3844, %v3871
        %v3893 = vsub.f32 %v3845, %v3873
        %v3894 = vsub.f32 %v3846, %v3875
        %v3895 = vsub.f32 %v3847, %v3877
        %v3896 = vsub.f32 %v3848, %v3879
        %v3897 = vsub.f32 %v3849, %v3881
        %v3898 = vmul.f32 %v3882, 1.442695
        %v3899 = vpow.pop %v3898
        %v3900 = vmul.f32 %v3883, 1.442695
        %v3901 = vpow.pop %v3900
        %v3902 = vmul.f32 %v3884, 1.442695
        %v3903 = vpow.pop %v3902
        %v3904 = vmul.f32 %v3885, 1.442695
        %v3905 = vpow.pop %v3904
        %v3906 = vmul.f32 %v3886, 1.442695
        %v3907 = vpow.pop %v3906
        %v3908 = vmul.f32 %v3887, 1.442695
        %v3909 = vpow.pop %v3908
        %v3910 = vmul.f32 %v3888, 1.442695
        %v3911 = vpow.pop %v3910
        %v3912 = vmul.f32 %v3889, 1.442695
        %v3913 = vpow.pop %v3912
        %v3914 = vmul.f32 %v3890, 1.442695
        %v3915 = vpow.pop %v3914
        %v3916 = vmul.f32 %v3891, 1.442695
        %v3917 = vpow.pop %v3916
        %v3918 = vmul.f32 %v3892, 1.442695
        %v3919 = vpow.pop %v3918
        %v3920 = vmul.f32 %v3893, 1.442695
        %v3921 = vpow.pop %v3920
        %v3922 = vmul.f32 %v3894, 1.442695
        %v3923 = vpow.pop %v3922
        %v3924 = vmul.f32 %v3895, 1.442695
        %v3925 = vpow.pop %v3924
        %v3926 = vmul.f32 %v3896, 1.442695
        %v3927 = vpow.pop %v3926
        %v3928 = vmul.f32 %v3897, 1.442695
        %v3929 = vpow.pop %v3928
        %3930 = vadd.xlane.f32.xlu0 %v3899
        %v3931 = vpop.xlane.xlu0 %3930
        %3932 = vadd.xlane.f32.xlu0 %v3901
        %v3933 = vpop.xlane.xlu0 %3932
        %3934 = vadd.xlane.f32.xlu0 %v3903
        %v3935 = vpop.xlane.xlu0 %3934
        %3936 = vadd.xlane.f32.xlu0 %v3905
        %v3937 = vpop.xlane.xlu0 %3936
        %3938 = vadd.xlane.f32.xlu0 %v3907
        %v3939 = vpop.xlane.xlu0 %3938
        %3940 = vadd.xlane.f32.xlu0 %v3909
        %v3941 = vpop.xlane.xlu0 %3940
        %3942 = vadd.xlane.f32.xlu0 %v3911
        %v3943 = vpop.xlane.xlu0 %3942
        %3944 = vadd.xlane.f32.xlu0 %v3913
        %v3945 = vpop.xlane.xlu0 %3944
        %3946 = vadd.xlane.f32.xlu0 %v3915
        %v3947 = vpop.xlane.xlu0 %3946
        %3948 = vadd.xlane.f32.xlu0 %v3917
        %v3949 = vpop.xlane.xlu0 %3948
        %3950 = vadd.xlane.f32.xlu0 %v3919
        %v3951 = vpop.xlane.xlu0 %3950
        %3952 = vadd.xlane.f32.xlu0 %v3921
        %v3953 = vpop.xlane.xlu0 %3952
        %3954 = vadd.xlane.f32.xlu0 %v3923
        %v3955 = vpop.xlane.xlu0 %3954
        %3956 = vadd.xlane.f32.xlu0 %v3925
        %v3957 = vpop.xlane.xlu0 %3956
        %3958 = vadd.xlane.f32.xlu0 %v3927
        %v3959 = vpop.xlane.xlu0 %3958
        %3960 = vadd.xlane.f32.xlu0 %v3929
        %v3961 = vpop.xlane.xlu0 %3960
        %v3962 = vrcp.pop %v3931
        %v3963 = vrcp.pop %v3933
        %v3964 = vrcp.pop %v3935
        %v3965 = vrcp.pop %v3937
        %v3966 = vrcp.pop %v3939
        %v3967 = vrcp.pop %v3941
        %v3968 = vrcp.pop %v3943
        %v3969 = vrcp.pop %v3945
        %v3970 = vrcp.pop %v3947
        %v3971 = vrcp.pop %v3949
        %v3972 = vrcp.pop %v3951
        %v3973 = vrcp.pop %v3953
        %v3974 = vrcp.pop %v3955
        %v3975 = vrcp.pop %v3957
        %v3976 = vrcp.pop %v3959
        %v3977 = vrcp.pop %v3961
        %v3978 = vmul.f32 %v3899, %v3962
        %v3979 = vmul.f32 %v3901, %v3963
        %v3980 = vmul.f32 %v3903, %v3964
        %v3981 = vmul.f32 %v3905, %v3965
        %v3982 = vmul.f32 %v3907, %v3966
        %v3983 = vmul.f32 %v3909, %v3967
        %v3984 = vmul.f32 %v3911, %v3968
        %v3985 = vmul.f32 %v3913, %v3969
        %v3986 = vmul.f32 %v3915, %v3970
        %v3987 = vmul.f32 %v3917, %v3971
        %v3988 = vmul.f32 %v3919, %v3972
        %v3989 = vmul.f32 %v3921, %v3973
        %v3990 = vmul.f32 %v3923, %v3974
        %v3991 = vmul.f32 %v3925, %v3975
        %v3992 = vmul.f32 %v3927, %v3976
        %v3993 = vmul.f32 %v3929, %v3977
        %v3994 = vpack.c.bf16 %v3979, %v3978
        %v3995 = vpack.c.bf16 %v3981, %v3980
        %v3996 = vpack.c.bf16 %v3983, %v3982
        %v3997 = vpack.c.bf16 %v3985, %v3984
        %v3998 = vpack.c.bf16 %v3987, %v3986
        %v3999 = vpack.c.bf16 %v3989, %v3988
        %v4000 = vpack.c.bf16 %v3991, %v3990
        %v4001 = vpack.c.bf16 %v3993, %v3992
        %4002 = vmatprep.subr.bf16.mxu0 0
        %4003 = vmatpush1.bf16.msra.mxu0 %v3729
        %4004 = vmatprep.subr.bf16.mxu0 0
        %4005 = vmatpush1.bf16.msra.mxu0 %v3730
        %4006 = vmatprep.subr.bf16.mxu0 0
        %4007 = vmatpush1.bf16.msra.mxu0 %v3731
        %4008 = vmatprep.subr.bf16.mxu0 0
        %4009 = vmatpush1.bf16.msra.mxu0 %v3732
        %4010 = vmatprep.subr.bf16.mxu0 0
        %4011 = vmatpush1.bf16.msra.mxu0 %v3733
        %4012 = vmatprep.subr.bf16.mxu0 0
        %4013 = vmatpush1.bf16.msra.mxu0 %v3734
        %4014 = vmatprep.subr.bf16.mxu0 0
        %4015 = vmatpush1.bf16.msra.mxu0 %v3735
        %4016 = vmatprep.subr.bf16.mxu0 0
        %4017 = vmatpush1.bf16.msra.mxu0 %v3736
        %4018 = vmatprep.subr.bf16.mxu0 0
        %4019 = vmatpush1.bf16.msra.mxu0 0
        %4020 = vmatprep.subr.bf16.mxu0 0
        %4021 = vmatpush1.bf16.msra.mxu0 0
        %4022 = vmatprep.subr.bf16.mxu0 0
        %4023 = vmatpush1.bf16.msra.mxu0 0
        %4024 = vmatprep.subr.bf16.mxu0 0
        %4025 = vmatpush1.bf16.msra.mxu0 0
        %4026 = vmatprep.subr.bf16.mxu0 0
        %4027 = vmatpush1.bf16.msra.mxu0 0
        %4028 = vmatprep.subr.bf16.mxu0 0
        %4029 = vmatpush1.bf16.msra.mxu0 0
        %4030 = vmatprep.subr.bf16.mxu0 0
        %4031 = vmatpush1.bf16.msra.mxu0 0
        %4032 = vmatprep.subr.bf16.mxu0 0
        %4033 = vmatpush1.bf16.msra.mxu0 0
        %4034 = vmatprep.mubr.bf16.mxu0 0
        %4035 = vmatmul.mubr.bf16.gmra.mrb[0].mxu0 %v3994
        %v4036 = vpop.f32.mrb[0].mxu0
        %v4037 = vadd.f32 0.0, %v4036
        %v4038 = vpop.f32.mrb[0].mxu0
        %v4039 = vpop.f32.mrb[0].mxu0
        %v4040 = vadd.f32 0.0, %v4039
        %v4041 = vpop.f32.mrb[0].mxu0
        %4042 = vmatprep.mubr.bf16.mxu0 0
        %4043 = vmatmul.mubr.bf16.gmra.mrb[0].mxu0 %v3995
        %v4044 = vpop.f32.mrb[0].mxu0
        %v4045 = vadd.f32 0.0, %v4044
        %v4046 = vpop.f32.mrb[0].mxu0
        %v4047 = vpop.f32.mrb[0].mxu0
        %v4048 = vadd.f32 0.0, %v4047
        %v4049 = vpop.f32.mrb[0].mxu0
        %4050 = vmatprep.mubr.bf16.mxu0 0
        %4051 = vmatmul.mubr.bf16.gmra.mrb[0].mxu0 %v3996
        %v4052 = vpop.f32.mrb[0].mxu0
        %v4053 = vadd.f32 0.0, %v4052
        %v4054 = vpop.f32.mrb[0].mxu0
        %v4055 = vpop.f32.mrb[0].mxu0
        %v4056 = vadd.f32 0.0, %v4055
        %v4057 = vpop.f32.mrb[0].mxu0
        %4058 = vmatprep.mubr.bf16.mxu0 0
        %4059 = vmatmul.mubr.bf16.gmra.mrb[0].mxu0 %v3997
        %v4060 = vpop.f32.mrb[0].mxu0
        %v4061 = vadd.f32 0.0, %v4060
        %v4062 = vpop.f32.mrb[0].mxu0
        %v4063 = vpop.f32.mrb[0].mxu0
        %v4064 = vadd.f32 0.0, %v4063
        %v4065 = vpop.f32.mrb[0].mxu0
        %4066 = vmatprep.mubr.bf16.mxu0 0
        %4067 = vmatmul.mubr.bf16.gmra.mrb[0].mxu0 %v3998
        %v4068 = vpop.f32.mrb[0].mxu0
        %v4069 = vadd.f32 0.0, %v4068
        %v4070 = vpop.f32.mrb[0].mxu0
        %v4071 = vpop.f32.mrb[0].mxu0
        %v4072 = vadd.f32 0.0, %v4071
        %v4073 = vpop.f32.mrb[0].mxu0
        %4074 = vmatprep.mubr.bf16.mxu0 0
        %4075 = vmatmul.mubr.bf16.gmra.mrb[0].mxu0 %v3999
        %v4076 = vpop.f32.mrb[0].mxu0
        %v4077 = vadd.f32 0.0, %v4076
        %v4078 = vpop.f32.mrb[0].mxu0
        %v4079 = vpop.f32.mrb[0].mxu0
        %v4080 = vadd.f32 0.0, %v4079
        %v4081 = vpop.f32.mrb[0].mxu0
        %4082 = vmatprep.mubr.bf16.mxu0 0
        %4083 = vmatmul.mubr.bf16.gmra.mrb[0].mxu0 %v4000
        %v4084 = vpop.f32.mrb[0].mxu0
        %v4085 = vadd.f32 0.0, %v4084
        %v4086 = vpop.f32.mrb[0].mxu0
        %v4087 = vpop.f32.mrb[0].mxu0
        %v4088 = vadd.f32 0.0, %v4087
        %v4089 = vpop.f32.mrb[0].mxu0
        %4090 = vmatprep.mubr.bf16.mxu0 0
        %4091 = vmatmul.mubr.bf16.gmra.mrb[0].mxu0 %v4001
        %v4092 = vpop.f32.mrb[0].mxu0
        %v4093 = vadd.f32 0.0, %v4092
        %v4094 = vpop.f32.mrb[0].mxu0
        %v4095 = vpop.f32.mrb[0].mxu0
        %v4096 = vadd.f32 0.0, %v4095
        %v4097 = vpop.f32.mrb[0].mxu0
        %4098 = vdwg.mxu0
        %v4099 = vpack.c.bf16 %v4040, %v4037
        %v4100 = vpack.c.bf16 %v4048, %v4045
        %v4101 = vpack.c.bf16 %v4056, %v4053
        %v4102 = vpack.c.bf16 %v4064, %v4061
        %v4103 = vpack.c.bf16 %v4072, %v4069
        %v4104 = vpack.c.bf16 %v4080, %v4077
        %v4105 = vpack.c.bf16 %v4088, %v4085
        %v4106 = vpack.c.bf16 %v4096, %v4093
        %v4123 = vunpack.c.l.b16 %v1011
        %v4124 = vunpack.c.l.b16 %v1012
        %v4125 = vunpack.c.l.b16 %v1013
        %v4126 = vunpack.c.l.b16 %v1014
        %v4127 = vunpack.c.l.b16 %v1015
        %v4128 = vunpack.c.l.b16 %v1016
        %v4129 = vunpack.c.l.b16 %v1017
        %v4130 = vunpack.c.l.b16 %v1018
        %v4131 = vunpack.c.l.b16 %v1019
        %v4132 = vunpack.c.l.b16 %v1020
        %v4133 = vunpack.c.l.b16 %v1021
        %v4134 = vunpack.c.l.b16 %v1022
        %v4135 = vunpack.c.l.b16 %v1023
        %v4136 = vunpack.c.l.b16 %v1024
        %v4137 = vunpack.c.l.b16 %v1025
        %v4138 = vunpack.c.l.b16 %v1026
        %v4139 = vpack.c.b16 %v4124, %v4123
        %v4140 = vpack.c.b16 %v4126, %v4125
        %v4141 = vpack.c.b16 %v4128, %v4127
        %v4142 = vpack.c.b16 %v4130, %v4129
        %v4143 = vpack.c.b16 %v4132, %v4131
        %v4144 = vpack.c.b16 %v4134, %v4133
        %v4145 = vpack.c.b16 %v4136, %v4135
        %v4146 = vpack.c.b16 %v4138, %v4137
        %4155 = vmatprep.subr.bf16.mxu0 0
        %4156 = vmatpush1.bf16.msra.mxu0 %v4139
        %4157 = vmatprep.subr.bf16.mxu0 0
        %4158 = vmatpush1.bf16.msra.mxu0 %v4140
        %4159 = vmatprep.subr.bf16.mxu0 0
        %4160 = vmatpush1.bf16.msra.mxu0 %v4141
        %4161 = vmatprep.subr.bf16.mxu0 0
        %4162 = vmatpush1.bf16.msra.mxu0 %v4142
        %4163 = vmatprep.subr.bf16.mxu0 0
        %4164 = vmatpush1.bf16.msra.mxu0 %v4143
        %4165 = vmatprep.subr.bf16.mxu0 0
        %4166 = vmatpush1.bf16.msra.mxu0 %v4144
        %4167 = vmatprep.subr.bf16.mxu0 0
        %4168 = vmatpush1.bf16.msra.mxu0 %v4145
        %4169 = vmatprep.subr.bf16.mxu0 0
        %4170 = vmatpush1.bf16.msra.mxu0 %v4146
        %4171 = vmatprep.subr.bf16.mxu0 0
        %4172 = vmatpush1.bf16.msra.mxu0 0
        %4173 = vmatprep.subr.bf16.mxu0 0
        %4174 = vmatpush1.bf16.msra.mxu0 0
        %4175 = vmatprep.subr.bf16.mxu0 0
        %4176 = vmatpush1.bf16.msra.mxu0 0
        %4177 = vmatprep.subr.bf16.mxu0 0
        %4178 = vmatpush1.bf16.msra.mxu0 0
        %4179 = vmatprep.subr.bf16.mxu0 0
        %4180 = vmatpush1.bf16.msra.mxu0 0
        %4181 = vmatprep.subr.bf16.mxu0 0
        %4182 = vmatpush1.bf16.msra.mxu0 0
        %4183 = vmatprep.subr.bf16.mxu0 0
        %4184 = vmatpush1.bf16.msra.mxu0 0
        %4185 = vmatprep.subr.bf16.mxu0 0
        %4186 = vmatpush1.bf16.msra.mxu0 0
        %4187 = vmatprep.mubr.bf16.mxu0 0
        %4188 = vmatmul.mubr.bf16.gmra.mrb[0].mxu0 %v4099
        %v4189 = vpop.f32.mrb[0].mxu0
        %v4190 = vadd.f32 0.0, %v4189
        %v4191 = vpop.f32.mrb[0].mxu0
        %v4192 = vpop.f32.mrb[0].mxu0
        %v4193 = vadd.f32 0.0, %v4192
        %v4194 = vpop.f32.mrb[0].mxu0
        %4195 = vmatprep.mubr.bf16.mxu0 0
        %4196 = vmatmul.mubr.bf16.gmra.mrb[0].mxu0 %v4100
        %v4197 = vpop.f32.mrb[0].mxu0
        %v4198 = vadd.f32 0.0, %v4197
        %v4199 = vpop.f32.mrb[0].mxu0
        %v4200 = vpop.f32.mrb[0].mxu0
        %v4201 = vadd.f32 0.0, %v4200
        %v4202 = vpop.f32.mrb[0].mxu0
        %4203 = vmatprep.mubr.bf16.mxu0 0
        %4204 = vmatmul.mubr.bf16.gmra.mrb[0].mxu0 %v4101
        %v4205 = vpop.f32.mrb[0].mxu0
        %v4206 = vadd.f32 0.0, %v4205
        %v4207 = vpop.f32.mrb[0].mxu0
        %v4208 = vpop.f32.mrb[0].mxu0
        %v4209 = vadd.f32 0.0, %v4208
        %v4210 = vpop.f32.mrb[0].mxu0
        %4211 = vmatprep.mubr.bf16.mxu0 0
        %4212 = vmatmul.mubr.bf16.gmra.mrb[0].mxu0 %v4102
        %v4213 = vpop.f32.mrb[0].mxu0
        %v4214 = vadd.f32 0.0, %v4213
        %v4215 = vpop.f32.mrb[0].mxu0
        %v4216 = vpop.f32.mrb[0].mxu0
        %v4217 = vadd.f32 0.0, %v4216
        %v4218 = vpop.f32.mrb[0].mxu0
        %4219 = vmatprep.mubr.bf16.mxu0 0
        %4220 = vmatmul.mubr.bf16.gmra.mrb[0].mxu0 %v4103
        %v4221 = vpop.f32.mrb[0].mxu0
        %v4222 = vadd.f32 0.0, %v4221
        %v4223 = vpop.f32.mrb[0].mxu0
        %v4224 = vpop.f32.mrb[0].mxu0
        %v4225 = vadd.f32 0.0, %v4224
        %v4226 = vpop.f32.mrb[0].mxu0
        %4227 = vmatprep.mubr.bf16.mxu0 0
        %4228 = vmatmul.mubr.bf16.gmra.mrb[0].mxu0 %v4104
        %v4229 = vpop.f32.mrb[0].mxu0
        %v4230 = vadd.f32 0.0, %v4229
        %v4231 = vpop.f32.mrb[0].mxu0
        %v4232 = vpop.f32.mrb[0].mxu0
        %v4233 = vadd.f32 0.0, %v4232
        %v4234 = vpop.f32.mrb[0].mxu0
        %4235 = vmatprep.mubr.bf16.mxu0 0
        %4236 = vmatmul.mubr.bf16.gmra.mrb[0].mxu0 %v4105
        %v4237 = vpop.f32.mrb[0].mxu0
        %v4238 = vadd.f32 0.0, %v4237
        %v4239 = vpop.f32.mrb[0].mxu0
        %v4240 = vpop.f32.mrb[0].mxu0
        %v4241 = vadd.f32 0.0, %v4240
        %v4242 = vpop.f32.mrb[0].mxu0
        %4243 = vmatprep.mubr.bf16.mxu0 0
        %4244 = vmatmul.mubr.bf16.gmra.mrb[0].mxu0 %v4106
        %v4245 = vpop.f32.mrb[0].mxu0
        %v4246 = vadd.f32 0.0, %v4245
        %v4247 = vpop.f32.mrb[0].mxu0
        %v4248 = vpop.f32.mrb[0].mxu0
        %v4249 = vadd.f32 0.0, %v4248
        %v4250 = vpop.f32.mrb[0].mxu0
        %4251 = vdwg.mxu0
        %v4252 = vadd.f32 %v3697, %v4190
        %v4253 = vadd.f32 %v3698, %v4193
        %v4254 = vadd.f32 %v3699, %v4198
        %v4255 = vadd.f32 %v3700, %v4201
        %v4256 = vadd.f32 %v3701, %v4206
        %v4257 = vadd.f32 %v3702, %v4209
        %v4258 = vadd.f32 %v3703, %v4214
        %v4259 = vadd.f32 %v3704, %v4217
        %v4260 = vadd.f32 %v3705, %v4222
        %v4261 = vadd.f32 %v3706, %v4225
        %v4262 = vadd.f32 %v3707, %v4230
        %v4263 = vadd.f32 %v3708, %v4233
        %v4264 = vadd.f32 %v3709, %v4238
        %v4265 = vadd.f32 %v3710, %v4241
        %v4266 = vadd.f32 %v3711, %v4246
        %v4267 = vadd.f32 %v3712, %v4249
        %v4268 = vpack.c.bf16 %v2052, %v2048
        %v4269 = vpack.c.bf16 %v2062, %v2058
        %v4270 = vpack.c.bf16 %v2072, %v2068
        %v4271 = vpack.c.bf16 %v2082, %v2078
        %v4272 = vpack.c.bf16 %v2092, %v2088
        %v4273 = vpack.c.bf16 %v2102, %v2098
        %v4274 = vpack.c.bf16 %v2112, %v2108
        %v4275 = vpack.c.bf16 %v2122, %v2118
        %v4276 = vpack.c.bf16 %v2278, %v2274
        %v4277 = vpack.c.bf16 %v2288, %v2284
        %v4278 = vpack.c.bf16 %v2298, %v2294
        %v4279 = vpack.c.bf16 %v2308, %v2304
        %v4280 = vpack.c.bf16 %v2318, %v2314
        %v4281 = vpack.c.bf16 %v2328, %v2324
        %v4282 = vpack.c.bf16 %v2338, %v2334
        %v4283 = vpack.c.bf16 %v2348, %v2344
        %v4284 = vpack.c.bf16 %v2504, %v2500
        %v4285 = vpack.c.bf16 %v2514, %v2510
        %v4286 = vpack.c.bf16 %v2524, %v2520
        %v4287 = vpack.c.bf16 %v2534, %v2530
        %v4288 = vpack.c.bf16 %v2544, %v2540
        %v4289 = vpack.c.bf16 %v2554, %v2550
        %v4290 = vpack.c.bf16 %v2564, %v2560
        %v4291 = vpack.c.bf16 %v2574, %v2570
        %4292 = vmatprep.subr.bf16.mxu0 0
        %4293 = vmatpush1.bf16.xpose.msra.mxu0 %v4276
        %4294 = vmatprep.subr.bf16.mxu0 0
        %4295 = vmatpush1.bf16.xpose.msra.mxu0 %v4277
        %4296 = vmatprep.subr.bf16.mxu0 0
        %4297 = vmatpush1.bf16.xpose.msra.mxu0 %v4278
        %4298 = vmatprep.subr.bf16.mxu0 0
        %4299 = vmatpush1.bf16.xpose.msra.mxu0 %v4279
        %4300 = vmatprep.subr.bf16.mxu0 0
        %4301 = vmatpush1.bf16.xpose.msra.mxu0 %v4280
        %4302 = vmatprep.subr.bf16.mxu0 0
        %4303 = vmatpush1.bf16.xpose.msra.mxu0 %v4281
        %4304 = vmatprep.subr.bf16.mxu0 0
        %4305 = vmatpush1.bf16.xpose.msra.mxu0 %v4282
        %4306 = vmatprep.subr.bf16.mxu0 0
        %4307 = vmatpush1.bf16.xpose.msra.mxu0 %v4283
        %4308 = vmatprep.subr.bf16.mxu0 0
        %4309 = vmatpush1.bf16.xpose.msra.mxu0 0
        %4310 = vmatprep.subr.bf16.mxu0 0
        %4311 = vmatpush1.bf16.xpose.msra.mxu0 0
        %4312 = vmatprep.subr.bf16.mxu0 0
        %4313 = vmatpush1.bf16.xpose.msra.mxu0 0
        %4314 = vmatprep.subr.bf16.mxu0 0
        %4315 = vmatpush1.bf16.xpose.msra.mxu0 0
        %4316 = vmatprep.subr.bf16.mxu0 0
        %4317 = vmatpush1.bf16.xpose.msra.mxu0 0
        %4318 = vmatprep.subr.bf16.mxu0 0
        %4319 = vmatpush1.bf16.xpose.msra.mxu0 0
        %4320 = vmatprep.subr.bf16.mxu0 0
        %4321 = vmatpush1.bf16.xpose.msra.mxu0 0
        %4322 = vmatprep.subr.bf16.mxu0 0
        %4323 = vmatpush1.bf16.xpose.msra.mxu0 0
        %4324 = vmatprep.mubr.bf16.mxu0 0
        %4325 = vmatmul.mubr.bf16.gmra.mrb[0].mxu0 %v4268
        %v4326 = vpop.f32.mrb[0].mxu0
        %v4327 = vadd.f32 0.0, %v4326
        %v4328 = vpop.f32.mrb[0].mxu0
        %v4329 = vpop.f32.mrb[0].mxu0
        %v4330 = vadd.f32 0.0, %v4329
        %v4331 = vpop.f32.mrb[0].mxu0
        %4332 = vmatprep.mubr.bf16.mxu0 0
        %4333 = vmatmul.mubr.bf16.gmra.mrb[0].mxu0 %v4269
        %v4334 = vpop.f32.mrb[0].mxu0
        %v4335 = vadd.f32 0.0, %v4334
        %v4336 = vpop.f32.mrb[0].mxu0
        %v4337 = vpop.f32.mrb[0].mxu0
        %v4338 = vadd.f32 0.0, %v4337
        %v4339 = vpop.f32.mrb[0].mxu0
        %4340 = vmatprep.mubr.bf16.mxu0 0
        %4341 = vmatmul.mubr.bf16.gmra.mrb[0].mxu0 %v4270
        %v4342 = vpop.f32.mrb[0].mxu0
        %v4343 = vadd.f32 0.0, %v4342
        %v4344 = vpop.f32.mrb[0].mxu0
        %v4345 = vpop.f32.mrb[0].mxu0
        %v4346 = vadd.f32 0.0, %v4345
        %v4347 = vpop.f32.mrb[0].mxu0
        %4348 = vmatprep.mubr.bf16.mxu0 0
        %4349 = vmatmul.mubr.bf16.gmra.mrb[0].mxu0 %v4271
        %v4350 = vpop.f32.mrb[0].mxu0
        %v4351 = vadd.f32 0.0, %v4350
        %v4352 = vpop.f32.mrb[0].mxu0
        %v4353 = vpop.f32.mrb[0].mxu0
        %v4354 = vadd.f32 0.0, %v4353
        %v4355 = vpop.f32.mrb[0].mxu0
        %4356 = vmatprep.mubr.bf16.mxu0 0
        %4357 = vmatmul.mubr.bf16.gmra.mrb[0].mxu0 %v4272
        %v4358 = vpop.f32.mrb[0].mxu0
        %v4359 = vadd.f32 0.0, %v4358
        %v4360 = vpop.f32.mrb[0].mxu0
        %v4361 = vpop.f32.mrb[0].mxu0
        %v4362 = vadd.f32 0.0, %v4361
        %v4363 = vpop.f32.mrb[0].mxu0
        %4364 = vmatprep.mubr.bf16.mxu0 0
        %4365 = vmatmul.mubr.bf16.gmra.mrb[0].mxu0 %v4273
        %v4366 = vpop.f32.mrb[0].mxu0
        %v4367 = vadd.f32 0.0, %v4366
        %v4368 = vpop.f32.mrb[0].mxu0
        %v4369 = vpop.f32.mrb[0].mxu0
        %v4370 = vadd.f32 0.0, %v4369
        %v4371 = vpop.f32.mrb[0].mxu0
        %4372 = vmatprep.mubr.bf16.mxu0 0
        %4373 = vmatmul.mubr.bf16.gmra.mrb[0].mxu0 %v4274
        %v4374 = vpop.f32.mrb[0].mxu0
        %v4375 = vadd.f32 0.0, %v4374
        %v4376 = vpop.f32.mrb[0].mxu0
        %v4377 = vpop.f32.mrb[0].mxu0
        %v4378 = vadd.f32 0.0, %v4377
        %v4379 = vpop.f32.mrb[0].mxu0
        %4380 = vmatprep.mubr.bf16.mxu0 0
        %4381 = vmatmul.mubr.bf16.gmra.mrb[0].mxu0 %v4275
        %v4382 = vpop.f32.mrb[0].mxu0
        %v4383 = vadd.f32 0.0, %v4382
        %v4384 = vpop.f32.mrb[0].mxu0
        %v4385 = vpop.f32.mrb[0].mxu0
        %v4386 = vadd.f32 0.0, %v4385
        %v4387 = vpop.f32.mrb[0].mxu0
        %4388 = vdwg.mxu0
        %v4389 = vsel %vm2723, %v4327, -1e+30
        %v4390 = vsel %vm2723, %v4330, -1e+30
        %v4391 = vsel %vm2723, %v4335, -1e+30
        %v4392 = vsel %vm2723, %v4338, -1e+30
        %v4393 = vsel %vm2723, %v4343, -1e+30
        %v4394 = vsel %vm2723, %v4346, -1e+30
        %v4395 = vsel %vm2723, %v4351, -1e+30
        %v4396 = vsel %vm2723, %v4354, -1e+30
        %v4397 = vsel %vm2723, %v4359, -1e+30
        %v4398 = vsel %vm2723, %v4362, -1e+30
        %v4399 = vsel %vm2723, %v4367, -1e+30
        %v4400 = vsel %vm2723, %v4370, -1e+30
        %v4401 = vsel %vm2723, %v4375, -1e+30
        %v4402 = vsel %vm2723, %v4378, -1e+30
        %v4403 = vsel %vm2723, %v4383, -1e+30
        %v4404 = vsel %vm2723, %v4386, -1e+30
        %4405 = vmax.xlane.f32.xlu0 %v4389
        %v4406 = vpop.xlane.xlu0 %4405
        %4407 = vmax.xlane.f32.xlu0 %v4390
        %v4408 = vpop.xlane.xlu0 %4407
        %4409 = vmax.xlane.f32.xlu0 %v4391
        %v4410 = vpop.xlane.xlu0 %4409
        %4411 = vmax.xlane.f32.xlu0 %v4392
        %v4412 = vpop.xlane.xlu0 %4411
        %4413 = vmax.xlane.f32.xlu0 %v4393
        %v4414 = vpop.xlane.xlu0 %4413
        %4415 = vmax.xlane.f32.xlu0 %v4394
        %v4416 = vpop.xlane.xlu0 %4415
        %4417 = vmax.xlane.f32.xlu0 %v4395
        %v4418 = vpop.xlane.xlu0 %4417
        %4419 = vmax.xlane.f32.xlu0 %v4396
        %v4420 = vpop.xlane.xlu0 %4419
        %4421 = vmax.xlane.f32.xlu0 %v4397
        %v4422 = vpop.xlane.xlu0 %4421
        %4423 = vmax.xlane.f32.xlu0 %v4398
        %v4424 = vpop.xlane.xlu0 %4423
        %4425 = vmax.xlane.f32.xlu0 %v4399
        %v4426 = vpop.xlane.xlu0 %4425
        %4427 = vmax.xlane.f32.xlu0 %v4400
        %v4428 = vpop.xlane.xlu0 %4427
        %4429 = vmax.xlane.f32.xlu0 %v4401
        %v4430 = vpop.xlane.xlu0 %4429
        %4431 = vmax.xlane.f32.xlu0 %v4402
        %v4432 = vpop.xlane.xlu0 %4431
        %4433 = vmax.xlane.f32.xlu0 %v4403
        %v4434 = vpop.xlane.xlu0 %4433
        %4435 = vmax.xlane.f32.xlu0 %v4404
        %v4436 = vpop.xlane.xlu0 %4435
        %v4437 = vsub.f32 %v4389, %v4406
        %v4438 = vsub.f32 %v4390, %v4408
        %v4439 = vsub.f32 %v4391, %v4410
        %v4440 = vsub.f32 %v4392, %v4412
        %v4441 = vsub.f32 %v4393, %v4414
        %v4442 = vsub.f32 %v4394, %v4416
        %v4443 = vsub.f32 %v4395, %v4418
        %v4444 = vsub.f32 %v4396, %v4420
        %v4445 = vsub.f32 %v4397, %v4422
        %v4446 = vsub.f32 %v4398, %v4424
        %v4447 = vsub.f32 %v4399, %v4426
        %v4448 = vsub.f32 %v4400, %v4428
        %v4449 = vsub.f32 %v4401, %v4430
        %v4450 = vsub.f32 %v4402, %v4432
        %v4451 = vsub.f32 %v4403, %v4434
        %v4452 = vsub.f32 %v4404, %v4436
        %v4453 = vmul.f32 %v4437, 1.442695
        %v4454 = vpow.pop %v4453
        %v4455 = vmul.f32 %v4438, 1.442695
        %v4456 = vpow.pop %v4455
        %v4457 = vmul.f32 %v4439, 1.442695
        %v4458 = vpow.pop %v4457
        %v4459 = vmul.f32 %v4440, 1.442695
        %v4460 = vpow.pop %v4459
        %v4461 = vmul.f32 %v4441, 1.442695
        %v4462 = vpow.pop %v4461
        %v4463 = vmul.f32 %v4442, 1.442695
        %v4464 = vpow.pop %v4463
        %v4465 = vmul.f32 %v4443, 1.442695
        %v4466 = vpow.pop %v4465
        %v4467 = vmul.f32 %v4444, 1.442695
        %v4468 = vpow.pop %v4467
        %v4469 = vmul.f32 %v4445, 1.442695
        %v4470 = vpow.pop %v4469
        %v4471 = vmul.f32 %v4446, 1.442695
        %v4472 = vpow.pop %v4471
        %v4473 = vmul.f32 %v4447, 1.442695
        %v4474 = vpow.pop %v4473
        %v4475 = vmul.f32 %v4448, 1.442695
        %v4476 = vpow.pop %v4475
        %v4477 = vmul.f32 %v4449, 1.442695
        %v4478 = vpow.pop %v4477
        %v4479 = vmul.f32 %v4450, 1.442695
        %v4480 = vpow.pop %v4479
        %v4481 = vmul.f32 %v4451, 1.442695
        %v4482 = vpow.pop %v4481
        %v4483 = vmul.f32 %v4452, 1.442695
        %v4484 = vpow.pop %v4483
        %4485 = vadd.xlane.f32.xlu0 %v4454
        %v4486 = vpop.xlane.xlu0 %4485
        %4487 = vadd.xlane.f32.xlu0 %v4456
        %v4488 = vpop.xlane.xlu0 %4487
        %4489 = vadd.xlane.f32.xlu0 %v4458
        %v4490 = vpop.xlane.xlu0 %4489
        %4491 = vadd.xlane.f32.xlu0 %v4460
        %v4492 = vpop.xlane.xlu0 %4491
        %4493 = vadd.xlane.f32.xlu0 %v4462
        %v4494 = vpop.xlane.xlu0 %4493
        %4495 = vadd.xlane.f32.xlu0 %v4464
        %v4496 = vpop.xlane.xlu0 %4495
        %4497 = vadd.xlane.f32.xlu0 %v4466
        %v4498 = vpop.xlane.xlu0 %4497
        %4499 = vadd.xlane.f32.xlu0 %v4468
        %v4500 = vpop.xlane.xlu0 %4499
        %4501 = vadd.xlane.f32.xlu0 %v4470
        %v4502 = vpop.xlane.xlu0 %4501
        %4503 = vadd.xlane.f32.xlu0 %v4472
        %v4504 = vpop.xlane.xlu0 %4503
        %4505 = vadd.xlane.f32.xlu0 %v4474
        %v4506 = vpop.xlane.xlu0 %4505
        %4507 = vadd.xlane.f32.xlu0 %v4476
        %v4508 = vpop.xlane.xlu0 %4507
        %4509 = vadd.xlane.f32.xlu0 %v4478
        %v4510 = vpop.xlane.xlu0 %4509
        %4511 = vadd.xlane.f32.xlu0 %v4480
        %v4512 = vpop.xlane.xlu0 %4511
        %4513 = vadd.xlane.f32.xlu0 %v4482
        %v4514 = vpop.xlane.xlu0 %4513
        %4515 = vadd.xlane.f32.xlu0 %v4484
        %v4516 = vpop.xlane.xlu0 %4515
        %v4517 = vrcp.pop %v4486
        %v4518 = vrcp.pop %v4488
        %v4519 = vrcp.pop %v4490
        %v4520 = vrcp.pop %v4492
        %v4521 = vrcp.pop %v4494
        %v4522 = vrcp.pop %v4496
        %v4523 = vrcp.pop %v4498
        %v4524 = vrcp.pop %v4500
        %v4525 = vrcp.pop %v4502
        %v4526 = vrcp.pop %v4504
        %v4527 = vrcp.pop %v4506
        %v4528 = vrcp.pop %v4508
        %v4529 = vrcp.pop %v4510
        %v4530 = vrcp.pop %v4512
        %v4531 = vrcp.pop %v4514
        %v4532 = vrcp.pop %v4516
        %v4533 = vmul.f32 %v4454, %v4517
        %v4534 = vmul.f32 %v4456, %v4518
        %v4535 = vmul.f32 %v4458, %v4519
        %v4536 = vmul.f32 %v4460, %v4520
        %v4537 = vmul.f32 %v4462, %v4521
        %v4538 = vmul.f32 %v4464, %v4522
        %v4539 = vmul.f32 %v4466, %v4523
        %v4540 = vmul.f32 %v4468, %v4524
        %v4541 = vmul.f32 %v4470, %v4525
        %v4542 = vmul.f32 %v4472, %v4526
        %v4543 = vmul.f32 %v4474, %v4527
        %v4544 = vmul.f32 %v4476, %v4528
        %v4545 = vmul.f32 %v4478, %v4529
        %v4546 = vmul.f32 %v4480, %v4530
        %v4547 = vmul.f32 %v4482, %v4531
        %v4548 = vmul.f32 %v4484, %v4532
        %v4549 = vpack.c.bf16 %v4534, %v4533
        %v4550 = vpack.c.bf16 %v4536, %v4535
        %v4551 = vpack.c.bf16 %v4538, %v4537
        %v4552 = vpack.c.bf16 %v4540, %v4539
        %v4553 = vpack.c.bf16 %v4542, %v4541
        %v4554 = vpack.c.bf16 %v4544, %v4543
        %v4555 = vpack.c.bf16 %v4546, %v4545
        %v4556 = vpack.c.bf16 %v4548, %v4547
        %4557 = vmatprep.subr.bf16.mxu0 0
        %4558 = vmatpush1.bf16.msra.mxu0 %v4284
        %4559 = vmatprep.subr.bf16.mxu0 0
        %4560 = vmatpush1.bf16.msra.mxu0 %v4285
        %4561 = vmatprep.subr.bf16.mxu0 0
        %4562 = vmatpush1.bf16.msra.mxu0 %v4286
        %4563 = vmatprep.subr.bf16.mxu0 0
        %4564 = vmatpush1.bf16.msra.mxu0 %v4287
        %4565 = vmatprep.subr.bf16.mxu0 0
        %4566 = vmatpush1.bf16.msra.mxu0 %v4288
        %4567 = vmatprep.subr.bf16.mxu0 0
        %4568 = vmatpush1.bf16.msra.mxu0 %v4289
        %4569 = vmatprep.subr.bf16.mxu0 0
        %4570 = vmatpush1.bf16.msra.mxu0 %v4290
        %4571 = vmatprep.subr.bf16.mxu0 0
        %4572 = vmatpush1.bf16.msra.mxu0 %v4291
        %4573 = vmatprep.subr.bf16.mxu0 0
        %4574 = vmatpush1.bf16.msra.mxu0 0
        %4575 = vmatprep.subr.bf16.mxu0 0
        %4576 = vmatpush1.bf16.msra.mxu0 0
        %4577 = vmatprep.subr.bf16.mxu0 0
        %4578 = vmatpush1.bf16.msra.mxu0 0
        %4579 = vmatprep.subr.bf16.mxu0 0
        %4580 = vmatpush1.bf16.msra.mxu0 0
        %4581 = vmatprep.subr.bf16.mxu0 0
        %4582 = vmatpush1.bf16.msra.mxu0 0
        %4583 = vmatprep.subr.bf16.mxu0 0
        %4584 = vmatpush1.bf16.msra.mxu0 0
        %4585 = vmatprep.subr.bf16.mxu0 0
        %4586 = vmatpush1.bf16.msra.mxu0 0
        %4587 = vmatprep.subr.bf16.mxu0 0
        %4588 = vmatpush1.bf16.msra.mxu0 0
        %4589 = vmatprep.mubr.bf16.mxu0 0
        %4590 = vmatmul.mubr.bf16.gmra.mrb[0].mxu0 %v4549
        %v4591 = vpop.f32.mrb[0].mxu0
        %v4592 = vadd.f32 0.0, %v4591
        %v4593 = vpop.f32.mrb[0].mxu0
        %v4594 = vpop.f32.mrb[0].mxu0
        %v4595 = vadd.f32 0.0, %v4594
        %v4596 = vpop.f32.mrb[0].mxu0
        %4597 = vmatprep.mubr.bf16.mxu0 0
        %4598 = vmatmul.mubr.bf16.gmra.mrb[0].mxu0 %v4550
        %v4599 = vpop.f32.mrb[0].mxu0
        %v4600 = vadd.f32 0.0, %v4599
        %v4601 = vpop.f32.mrb[0].mxu0
        %v4602 = vpop.f32.mrb[0].mxu0
        %v4603 = vadd.f32 0.0, %v4602
        %v4604 = vpop.f32.mrb[0].mxu0
        %4605 = vmatprep.mubr.bf16.mxu0 0
        %4606 = vmatmul.mubr.bf16.gmra.mrb[0].mxu0 %v4551
        %v4607 = vpop.f32.mrb[0].mxu0
        %v4608 = vadd.f32 0.0, %v4607
        %v4609 = vpop.f32.mrb[0].mxu0
        %v4610 = vpop.f32.mrb[0].mxu0
        %v4611 = vadd.f32 0.0, %v4610
        %v4612 = vpop.f32.mrb[0].mxu0
        %4613 = vmatprep.mubr.bf16.mxu0 0
        %4614 = vmatmul.mubr.bf16.gmra.mrb[0].mxu0 %v4552
        %v4615 = vpop.f32.mrb[0].mxu0
        %v4616 = vadd.f32 0.0, %v4615
        %v4617 = vpop.f32.mrb[0].mxu0
        %v4618 = vpop.f32.mrb[0].mxu0
        %v4619 = vadd.f32 0.0, %v4618
        %v4620 = vpop.f32.mrb[0].mxu0
        %4621 = vmatprep.mubr.bf16.mxu0 0
        %4622 = vmatmul.mubr.bf16.gmra.mrb[0].mxu0 %v4553
        %v4623 = vpop.f32.mrb[0].mxu0
        %v4624 = vadd.f32 0.0, %v4623
        %v4625 = vpop.f32.mrb[0].mxu0
        %v4626 = vpop.f32.mrb[0].mxu0
        %v4627 = vadd.f32 0.0, %v4626
        %v4628 = vpop.f32.mrb[0].mxu0
        %4629 = vmatprep.mubr.bf16.mxu0 0
        %4630 = vmatmul.mubr.bf16.gmra.mrb[0].mxu0 %v4554
        %v4631 = vpop.f32.mrb[0].mxu0
        %v4632 = vadd.f32 0.0, %v4631
        %v4633 = vpop.f32.mrb[0].mxu0
        %v4634 = vpop.f32.mrb[0].mxu0
        %v4635 = vadd.f32 0.0, %v4634
        %v4636 = vpop.f32.mrb[0].mxu0
        %4637 = vmatprep.mubr.bf16.mxu0 0
        %4638 = vmatmul.mubr.bf16.gmra.mrb[0].mxu0 %v4555
        %v4639 = vpop.f32.mrb[0].mxu0
        %v4640 = vadd.f32 0.0, %v4639
        %v4641 = vpop.f32.mrb[0].mxu0
        %v4642 = vpop.f32.mrb[0].mxu0
        %v4643 = vadd.f32 0.0, %v4642
        %v4644 = vpop.f32.mrb[0].mxu0
        %4645 = vmatprep.mubr.bf16.mxu0 0
        %4646 = vmatmul.mubr.bf16.gmra.mrb[0].mxu0 %v4556
        %v4647 = vpop.f32.mrb[0].mxu0
        %v4648 = vadd.f32 0.0, %v4647
        %v4649 = vpop.f32.mrb[0].mxu0
        %v4650 = vpop.f32.mrb[0].mxu0
        %v4651 = vadd.f32 0.0, %v4650
        %v4652 = vpop.f32.mrb[0].mxu0
        %4653 = vdwg.mxu0
        %v4654 = vpack.c.bf16 %v4595, %v4592
        %v4655 = vpack.c.bf16 %v4603, %v4600
        %v4656 = vpack.c.bf16 %v4611, %v4608
        %v4657 = vpack.c.bf16 %v4619, %v4616
        %v4658 = vpack.c.bf16 %v4627, %v4624
        %v4659 = vpack.c.bf16 %v4635, %v4632
        %v4660 = vpack.c.bf16 %v4643, %v4640
        %v4661 = vpack.c.bf16 %v4651, %v4648
        %v4678 = vunpack.c.l.b16 %v1027
        %v4679 = vunpack.c.l.b16 %v1028
        %v4680 = vunpack.c.l.b16 %v1029
        %v4681 = vunpack.c.l.b16 %v1030
        %v4682 = vunpack.c.l.b16 %v1031
        %v4683 = vunpack.c.l.b16 %v1032
        %v4684 = vunpack.c.l.b16 %v1033
        %v4685 = vunpack.c.l.b16 %v1034
        %v4686 = vunpack.c.l.b16 %v1035
        %v4687 = vunpack.c.l.b16 %v1036
        %v4688 = vunpack.c.l.b16 %v1037
        %v4689 = vunpack.c.l.b16 %v1038
        %v4690 = vunpack.c.l.b16 %v1039
        %v4691 = vunpack.c.l.b16 %v1040
        %v4692 = vunpack.c.l.b16 %v1041
        %v4693 = vunpack.c.l.b16 %v1042
        %v4694 = vpack.c.b16 %v4679, %v4678
        %v4695 = vpack.c.b16 %v4681, %v4680
        %v4696 = vpack.c.b16 %v4683, %v4682
        %v4697 = vpack.c.b16 %v4685, %v4684
        %v4698 = vpack.c.b16 %v4687, %v4686
        %v4699 = vpack.c.b16 %v4689, %v4688
        %v4700 = vpack.c.b16 %v4691, %v4690
        %v4701 = vpack.c.b16 %v4693, %v4692
        %4710 = vmatprep.subr.bf16.mxu0 0
        %4711 = vmatpush1.bf16.msra.mxu0 %v4694
        %4712 = vmatprep.subr.bf16.mxu0 0
        %4713 = vmatpush1.bf16.msra.mxu0 %v4695
        %4714 = vmatprep.subr.bf16.mxu0 0
        %4715 = vmatpush1.bf16.msra.mxu0 %v4696
        %4716 = vmatprep.subr.bf16.mxu0 0
        %4717 = vmatpush1.bf16.msra.mxu0 %v4697
        %4718 = vmatprep.subr.bf16.mxu0 0
        %4719 = vmatpush1.bf16.msra.mxu0 %v4698
        %4720 = vmatprep.subr.bf16.mxu0 0
        %4721 = vmatpush1.bf16.msra.mxu0 %v4699
        %4722 = vmatprep.subr.bf16.mxu0 0
        %4723 = vmatpush1.bf16.msra.mxu0 %v4700
        %4724 = vmatprep.subr.bf16.mxu0 0
        %4725 = vmatpush1.bf16.msra.mxu0 %v4701
        %4726 = vmatprep.subr.bf16.mxu0 0
        %4727 = vmatpush1.bf16.msra.mxu0 0
        %4728 = vmatprep.subr.bf16.mxu0 0
        %4729 = vmatpush1.bf16.msra.mxu0 0
        %4730 = vmatprep.subr.bf16.mxu0 0
        %4731 = vmatpush1.bf16.msra.mxu0 0
        %4732 = vmatprep.subr.bf16.mxu0 0
        %4733 = vmatpush1.bf16.msra.mxu0 0
        %4734 = vmatprep.subr.bf16.mxu0 0
        %4735 = vmatpush1.bf16.msra.mxu0 0
        %4736 = vmatprep.subr.bf16.mxu0 0
        %4737 = vmatpush1.bf16.msra.mxu0 0
        %4738 = vmatprep.subr.bf16.mxu0 0
        %4739 = vmatpush1.bf16.msra.mxu0 0
        %4740 = vmatprep.subr.bf16.mxu0 0
        %4741 = vmatpush1.bf16.msra.mxu0 0
        %4742 = vmatprep.mubr.bf16.mxu0 0
        %4743 = vmatmul.mubr.bf16.gmra.mrb[0].mxu0 %v4654
        %v4744 = vpop.f32.mrb[0].mxu0
        %v4745 = vadd.f32 0.0, %v4744
        %v4746 = vpop.f32.mrb[0].mxu0
        %v4747 = vpop.f32.mrb[0].mxu0
        %v4748 = vadd.f32 0.0, %v4747
        %v4749 = vpop.f32.mrb[0].mxu0
        %4750 = vmatprep.mubr.bf16.mxu0 0
        %4751 = vmatmul.mubr.bf16.gmra.mrb[0].mxu0 %v4655
        %v4752 = vpop.f32.mrb[0].mxu0
        %v4753 = vadd.f32 0.0, %v4752
        %v4754 = vpop.f32.mrb[0].mxu0
        %v4755 = vpop.f32.mrb[0].mxu0
        %v4756 = vadd.f32 0.0, %v4755
        %v4757 = vpop.f32.mrb[0].mxu0
        %4758 = vmatprep.mubr.bf16.mxu0 0
        %4759 = vmatmul.mubr.bf16.gmra.mrb[0].mxu0 %v4656
        %v4760 = vpop.f32.mrb[0].mxu0
        %v4761 = vadd.f32 0.0, %v4760
        %v4762 = vpop.f32.mrb[0].mxu0
        %v4763 = vpop.f32.mrb[0].mxu0
        %v4764 = vadd.f32 0.0, %v4763
        %v4765 = vpop.f32.mrb[0].mxu0
        %4766 = vmatprep.mubr.bf16.mxu0 0
        %4767 = vmatmul.mubr.bf16.gmra.mrb[0].mxu0 %v4657
        %v4768 = vpop.f32.mrb[0].mxu0
        %v4769 = vadd.f32 0.0, %v4768
        %v4770 = vpop.f32.mrb[0].mxu0
        %v4771 = vpop.f32.mrb[0].mxu0
        %v4772 = vadd.f32 0.0, %v4771
        %v4773 = vpop.f32.mrb[0].mxu0
        %4774 = vmatprep.mubr.bf16.mxu0 0
        %4775 = vmatmul.mubr.bf16.gmra.mrb[0].mxu0 %v4658
        %v4776 = vpop.f32.mrb[0].mxu0
        %v4777 = vadd.f32 0.0, %v4776
        %v4778 = vpop.f32.mrb[0].mxu0
        %v4779 = vpop.f32.mrb[0].mxu0
        %v4780 = vadd.f32 0.0, %v4779
        %v4781 = vpop.f32.mrb[0].mxu0
        %4782 = vmatprep.mubr.bf16.mxu0 0
        %4783 = vmatmul.mubr.bf16.gmra.mrb[0].mxu0 %v4659
        %v4784 = vpop.f32.mrb[0].mxu0
        %v4785 = vadd.f32 0.0, %v4784
        %v4786 = vpop.f32.mrb[0].mxu0
        %v4787 = vpop.f32.mrb[0].mxu0
        %v4788 = vadd.f32 0.0, %v4787
        %v4789 = vpop.f32.mrb[0].mxu0
        %4790 = vmatprep.mubr.bf16.mxu0 0
        %4791 = vmatmul.mubr.bf16.gmra.mrb[0].mxu0 %v4660
        %v4792 = vpop.f32.mrb[0].mxu0
        %v4793 = vadd.f32 0.0, %v4792
        %v4794 = vpop.f32.mrb[0].mxu0
        %v4795 = vpop.f32.mrb[0].mxu0
        %v4796 = vadd.f32 0.0, %v4795
        %v4797 = vpop.f32.mrb[0].mxu0
        %4798 = vmatprep.mubr.bf16.mxu0 0
        %4799 = vmatmul.mubr.bf16.gmra.mrb[0].mxu0 %v4661
        %v4800 = vpop.f32.mrb[0].mxu0
        %v4801 = vadd.f32 0.0, %v4800
        %v4802 = vpop.f32.mrb[0].mxu0
        %v4803 = vpop.f32.mrb[0].mxu0
        %v4804 = vadd.f32 0.0, %v4803
        %v4805 = vpop.f32.mrb[0].mxu0
        %4806 = vdwg.mxu0
        %v4807 = vadd.f32 %v4252, %v4745
        %v4808 = vadd.f32 %v4253, %v4748
        %v4809 = vadd.f32 %v4254, %v4753
        %v4810 = vadd.f32 %v4255, %v4756
        %v4811 = vadd.f32 %v4256, %v4761
        %v4812 = vadd.f32 %v4257, %v4764
        %v4813 = vadd.f32 %v4258, %v4769
        %v4814 = vadd.f32 %v4259, %v4772
        %v4815 = vadd.f32 %v4260, %v4777
        %v4816 = vadd.f32 %v4261, %v4780
        %v4817 = vadd.f32 %v4262, %v4785
        %v4818 = vadd.f32 %v4263, %v4788
        %v4819 = vadd.f32 %v4264, %v4793
        %v4820 = vadd.f32 %v4265, %v4796
        %v4821 = vadd.f32 %v4266, %v4801
        %v4822 = vadd.f32 %v4267, %v4804
        %4823 = vst [vmem:[%s772] sm:$0xff] %v4807
        %4824 = vst [vmem:[%s772 + $0x8] sm:$0xff] %v4808
        %4825 = vst [vmem:[%s772 + $0x10] sm:$0xff] %v4809
        %4826 = vst [vmem:[%s772 + $0x18] sm:$0xff] %v4810
        %4827 = vst [vmem:[%s772 + $0x20] sm:$0xff] %v4811
        %4828 = vst [vmem:[%s772 + $0x28] sm:$0xff] %v4812
        %4829 = vst [vmem:[%s772 + $0x30] sm:$0xff] %v4813
        %4830 = vst [vmem:[%s772 + $0x38] sm:$0xff] %v4814
        %4831 = vst [vmem:[%s772 + $0x40] sm:$0xff] %v4815
        %4832 = vst [vmem:[%s772 + $0x48] sm:$0xff] %v4816
        %4833 = vst [vmem:[%s772 + $0x50] sm:$0xff] %v4817
        %4834 = vst [vmem:[%s772 + $0x58] sm:$0xff] %v4818
        %4835 = vst [vmem:[%s772 + $0x60] sm:$0xff] %v4819
        %4836 = vst [vmem:[%s772 + $0x68] sm:$0xff] %v4820
        %4837 = vst [vmem:[%s772 + $0x70] sm:$0xff] %v4821
        %4838 = vst [vmem:[%s772 + $0x78] sm:$0xff] %v4822
        %v4839 = vld [vmem:[%s772] sm:$0xff]
        %v4840 = vld [vmem:[%s772 + $0x8] sm:$0xff]
        %v4841 = vld [vmem:[%s772 + $0x10] sm:$0xff]
        %v4842 = vld [vmem:[%s772 + $0x18] sm:$0xff]
        %v4843 = vld [vmem:[%s772 + $0x20] sm:$0xff]
        %v4844 = vld [vmem:[%s772 + $0x28] sm:$0xff]
        %v4845 = vld [vmem:[%s772 + $0x30] sm:$0xff]
        %v4846 = vld [vmem:[%s772 + $0x38] sm:$0xff]
        %v4847 = vld [vmem:[%s772 + $0x40] sm:$0xff]
        %v4848 = vld [vmem:[%s772 + $0x48] sm:$0xff]
        %v4849 = vld [vmem:[%s772 + $0x50] sm:$0xff]
        %v4850 = vld [vmem:[%s772 + $0x58] sm:$0xff]
        %v4851 = vld [vmem:[%s772 + $0x60] sm:$0xff]
        %v4852 = vld [vmem:[%s772 + $0x68] sm:$0xff]
        %v4853 = vld [vmem:[%s772 + $0x70] sm:$0xff]
        %v4854 = vld [vmem:[%s772 + $0x78] sm:$0xff]
        %4855 = vadd.xlane.f32.xlu0 %v4839
        %v4856 = vpop.xlane.xlu0 %4855
        %4857 = vadd.xlane.f32.xlu0 %v4840
        %v4858 = vpop.xlane.xlu0 %4857
        %4859 = vadd.xlane.f32.xlu0 %v4841
        %v4860 = vpop.xlane.xlu0 %4859
        %4861 = vadd.xlane.f32.xlu0 %v4842
        %v4862 = vpop.xlane.xlu0 %4861
        %4863 = vadd.xlane.f32.xlu0 %v4843
        %v4864 = vpop.xlane.xlu0 %4863
        %4865 = vadd.xlane.f32.xlu0 %v4844
        %v4866 = vpop.xlane.xlu0 %4865
        %4867 = vadd.xlane.f32.xlu0 %v4845
        %v4868 = vpop.xlane.xlu0 %4867
        %4869 = vadd.xlane.f32.xlu0 %v4846
        %v4870 = vpop.xlane.xlu0 %4869
        %4871 = vadd.xlane.f32.xlu0 %v4847
        %v4872 = vpop.xlane.xlu0 %4871
        %4873 = vadd.xlane.f32.xlu0 %v4848
        %v4874 = vpop.xlane.xlu0 %4873
        %4875 = vadd.xlane.f32.xlu0 %v4849
        %v4876 = vpop.xlane.xlu0 %4875
        %4877 = vadd.xlane.f32.xlu0 %v4850
        %v4878 = vpop.xlane.xlu0 %4877
        %4879 = vadd.xlane.f32.xlu0 %v4851
        %v4880 = vpop.xlane.xlu0 %4879
        %4881 = vadd.xlane.f32.xlu0 %v4852
        %v4882 = vpop.xlane.xlu0 %4881
        %4883 = vadd.xlane.f32.xlu0 %v4853
        %v4884 = vpop.xlane.xlu0 %4883
        %4885 = vadd.xlane.f32.xlu0 %v4854
        %v4886 = vpop.xlane.xlu0 %4885
        %v4887 = vmul.f32 %v4856, 0.03125
        %v4888 = vmul.f32 %v4858, 0.03125
        %v4889 = vmul.f32 %v4860, 0.03125
        %v4890 = vmul.f32 %v4862, 0.03125
        %v4891 = vmul.f32 %v4864, 0.03125
        %v4892 = vmul.f32 %v4866, 0.03125
        %v4893 = vmul.f32 %v4868, 0.03125
        %v4894 = vmul.f32 %v4870, 0.03125
        %v4895 = vmul.f32 %v4872, 0.03125
        %v4896 = vmul.f32 %v4874, 0.03125
        %v4897 = vmul.f32 %v4876, 0.03125
        %v4898 = vmul.f32 %v4878, 0.03125
        %v4899 = vmul.f32 %v4880, 0.03125
        %v4900 = vmul.f32 %v4882, 0.03125
        %v4901 = vmul.f32 %v4884, 0.03125
        %v4902 = vmul.f32 %v4886, 0.03125
        %v4903 = vmul.f32 %v4839, %v4839
        %v4904 = vmul.f32 %v4840, %v4840
        %v4905 = vmul.f32 %v4841, %v4841
        %v4906 = vmul.f32 %v4842, %v4842
        %v4907 = vmul.f32 %v4843, %v4843
        %v4908 = vmul.f32 %v4844, %v4844
        %v4909 = vmul.f32 %v4845, %v4845
        %v4910 = vmul.f32 %v4846, %v4846
        %v4911 = vmul.f32 %v4847, %v4847
        %v4912 = vmul.f32 %v4848, %v4848
        %v4913 = vmul.f32 %v4849, %v4849
        %v4914 = vmul.f32 %v4850, %v4850
        %v4915 = vmul.f32 %v4851, %v4851
        %v4916 = vmul.f32 %v4852, %v4852
        %v4917 = vmul.f32 %v4853, %v4853
        %v4918 = vmul.f32 %v4854, %v4854
        %4919 = vadd.xlane.f32.xlu0 %v4903
        %v4920 = vpop.xlane.xlu0 %4919
        %4921 = vadd.xlane.f32.xlu0 %v4904
        %v4922 = vpop.xlane.xlu0 %4921
        %4923 = vadd.xlane.f32.xlu0 %v4905
        %v4924 = vpop.xlane.xlu0 %4923
        %4925 = vadd.xlane.f32.xlu0 %v4906
        %v4926 = vpop.xlane.xlu0 %4925
        %4927 = vadd.xlane.f32.xlu0 %v4907
        %v4928 = vpop.xlane.xlu0 %4927
        %4929 = vadd.xlane.f32.xlu0 %v4908
        %v4930 = vpop.xlane.xlu0 %4929
        %4931 = vadd.xlane.f32.xlu0 %v4909
        %v4932 = vpop.xlane.xlu0 %4931
        %4933 = vadd.xlane.f32.xlu0 %v4910
        %v4934 = vpop.xlane.xlu0 %4933
        %4935 = vadd.xlane.f32.xlu0 %v4911
        %v4936 = vpop.xlane.xlu0 %4935
        %4937 = vadd.xlane.f32.xlu0 %v4912
        %v4938 = vpop.xlane.xlu0 %4937
        %4939 = vadd.xlane.f32.xlu0 %v4913
        %v4940 = vpop.xlane.xlu0 %4939
        %4941 = vadd.xlane.f32.xlu0 %v4914
        %v4942 = vpop.xlane.xlu0 %4941
        %4943 = vadd.xlane.f32.xlu0 %v4915
        %v4944 = vpop.xlane.xlu0 %4943
        %4945 = vadd.xlane.f32.xlu0 %v4916
        %v4946 = vpop.xlane.xlu0 %4945
        %4947 = vadd.xlane.f32.xlu0 %v4917
        %v4948 = vpop.xlane.xlu0 %4947
        %4949 = vadd.xlane.f32.xlu0 %v4918
        %v4950 = vpop.xlane.xlu0 %4949
        %v4951 = vmul.f32 %v4920, 0.03125
        %v4952 = vmul.f32 %v4922, 0.03125
        %v4953 = vmul.f32 %v4924, 0.03125
        %v4954 = vmul.f32 %v4926, 0.03125
        %v4955 = vmul.f32 %v4928, 0.03125
        %v4956 = vmul.f32 %v4930, 0.03125
        %v4957 = vmul.f32 %v4932, 0.03125
        %v4958 = vmul.f32 %v4934, 0.03125
        %v4959 = vmul.f32 %v4936, 0.03125
        %v4960 = vmul.f32 %v4938, 0.03125
        %v4961 = vmul.f32 %v4940, 0.03125
        %v4962 = vmul.f32 %v4942, 0.03125
        %v4963 = vmul.f32 %v4944, 0.03125
        %v4964 = vmul.f32 %v4946, 0.03125
        %v4965 = vmul.f32 %v4948, 0.03125
        %v4966 = vmul.f32 %v4950, 0.03125
        %v4967 = vsub.f32 %v4839, %v4887
        %v4968 = vsub.f32 %v4840, %v4888
        %v4969 = vsub.f32 %v4841, %v4889
        %v4970 = vsub.f32 %v4842, %v4890
        %v4971 = vsub.f32 %v4843, %v4891
        %v4972 = vsub.f32 %v4844, %v4892
        %v4973 = vsub.f32 %v4845, %v4893
        %v4974 = vsub.f32 %v4846, %v4894
        %v4975 = vsub.f32 %v4847, %v4895
        %v4976 = vsub.f32 %v4848, %v4896
        %v4977 = vsub.f32 %v4849, %v4897
        %v4978 = vsub.f32 %v4850, %v4898
        %v4979 = vsub.f32 %v4851, %v4899
        %v4980 = vsub.f32 %v4852, %v4900
        %v4981 = vsub.f32 %v4853, %v4901
        %v4982 = vsub.f32 %v4854, %v4902
        %v4983 = vmul.f32 %v4887, %v4887
        %v4984 = vmul.f32 %v4888, %v4888
        %v4985 = vmul.f32 %v4889, %v4889
        %v4986 = vmul.f32 %v4890, %v4890
        %v4987 = vmul.f32 %v4891, %v4891
        %v4988 = vmul.f32 %v4892, %v4892
        %v4989 = vmul.f32 %v4893, %v4893
        %v4990 = vmul.f32 %v4894, %v4894
        %v4991 = vmul.f32 %v4895, %v4895
        %v4992 = vmul.f32 %v4896, %v4896
        %v4993 = vmul.f32 %v4897, %v4897
        %v4994 = vmul.f32 %v4898, %v4898
        %v4995 = vmul.f32 %v4899, %v4899
        %v4996 = vmul.f32 %v4900, %v4900
        %v4997 = vmul.f32 %v4901, %v4901
        %v4998 = vmul.f32 %v4902, %v4902
        %v4999 = vsub.f32 %v4951, %v4983
        %v5000 = vsub.f32 %v4952, %v4984
        %v5001 = vsub.f32 %v4953, %v4985
        %v5002 = vsub.f32 %v4954, %v4986
        %v5003 = vsub.f32 %v4955, %v4987
        %v5004 = vsub.f32 %v4956, %v4988
        %v5005 = vsub.f32 %v4957, %v4989
        %v5006 = vsub.f32 %v4958, %v4990
        %v5007 = vsub.f32 %v4959, %v4991
        %v5008 = vsub.f32 %v4960, %v4992
        %v5009 = vsub.f32 %v4961, %v4993
        %v5010 = vsub.f32 %v4962, %v4994
        %v5011 = vsub.f32 %v4963, %v4995
        %v5012 = vsub.f32 %v4964, %v4996
        %v5013 = vsub.f32 %v4965, %v4997
        %v5014 = vsub.f32 %v4966, %v4998
        %v5015 = vadd.f32 %v4999, 1e-05
        %v5016 = vadd.f32 %v5000, 1e-05
        %v5017 = vadd.f32 %v5001, 1e-05
        %v5018 = vadd.f32 %v5002, 1e-05
        %v5019 = vadd.f32 %v5003, 1e-05
        %v5020 = vadd.f32 %v5004, 1e-05
        %v5021 = vadd.f32 %v5005, 1e-05
        %v5022 = vadd.f32 %v5006, 1e-05
        %v5023 = vadd.f32 %v5007, 1e-05
        %v5024 = vadd.f32 %v5008, 1e-05
        %v5025 = vadd.f32 %v5009, 1e-05
        %v5026 = vadd.f32 %v5010, 1e-05
        %v5027 = vadd.f32 %v5011, 1e-05
        %v5028 = vadd.f32 %v5012, 1e-05
        %v5029 = vadd.f32 %v5013, 1e-05
        %v5030 = vadd.f32 %v5014, 1e-05
        %v5031 = vrsqrt.pop %v5015
        %v5032 = vrsqrt.pop %v5016
        %v5033 = vrsqrt.pop %v5017
        %v5034 = vrsqrt.pop %v5018
        %v5035 = vrsqrt.pop %v5019
        %v5036 = vrsqrt.pop %v5020
        %v5037 = vrsqrt.pop %v5021
        %v5038 = vrsqrt.pop %v5022
        %v5039 = vrsqrt.pop %v5023
        %v5040 = vrsqrt.pop %v5024
        %v5041 = vrsqrt.pop %v5025
        %v5042 = vrsqrt.pop %v5026
        %v5043 = vrsqrt.pop %v5027
        %v5044 = vrsqrt.pop %v5028
        %v5045 = vrsqrt.pop %v5029
        %v5046 = vrsqrt.pop %v5030
        %v5047 = vmul.f32 %v4967, %v5031
        %v5048 = vmul.f32 %v4968, %v5032
        %v5049 = vmul.f32 %v4969, %v5033
        %v5050 = vmul.f32 %v4970, %v5034
        %v5051 = vmul.f32 %v4971, %v5035
        %v5052 = vmul.f32 %v4972, %v5036
        %v5053 = vmul.f32 %v4973, %v5037
        %v5054 = vmul.f32 %v4974, %v5038
        %v5055 = vmul.f32 %v4975, %v5039
        %v5056 = vmul.f32 %v4976, %v5040
        %v5057 = vmul.f32 %v4977, %v5041
        %v5058 = vmul.f32 %v4978, %v5042
        %v5059 = vmul.f32 %v4979, %v5043
        %v5060 = vmul.f32 %v4980, %v5044
        %v5061 = vmul.f32 %v4981, %v5045
        %v5062 = vmul.f32 %v4982, %v5046
        %v5064 = vlaneseq
        %v5065 = vshrl.u32 %v5064, 7
        %v5066 = vsub.s32 0, %v5065
        %v5067 = vrot.slane %v1044, %v5066
        %v5069 = vmul.f32 %v5047, %v5067
        %v5070 = vmul.f32 %v5048, %v5067
        %v5071 = vmul.f32 %v5049, %v5067
        %v5072 = vmul.f32 %v5050, %v5067
        %v5073 = vmul.f32 %v5051, %v5067
        %v5074 = vmul.f32 %v5052, %v5067
        %v5075 = vmul.f32 %v5053, %v5067
        %v5076 = vmul.f32 %v5054, %v5067
        %v5077 = vmul.f32 %v5055, %v5067
        %v5078 = vmul.f32 %v5056, %v5067
        %v5079 = vmul.f32 %v5057, %v5067
        %v5080 = vmul.f32 %v5058, %v5067
        %v5081 = vmul.f32 %v5059, %v5067
        %v5082 = vmul.f32 %v5060, %v5067
        %v5083 = vmul.f32 %v5061, %v5067
        %v5084 = vmul.f32 %v5062, %v5067
        %v5086 = vlaneseq
        %v5087 = vshrl.u32 %v5086, 7
        %v5088 = vsub.s32 0, %v5087
        %v5089 = vrot.slane %v1045, %v5088
        %v5091 = vadd.f32 %v5069, %v5089
        %v5092 = vadd.f32 %v5070, %v5089
        %v5093 = vadd.f32 %v5071, %v5089
        %v5094 = vadd.f32 %v5072, %v5089
        %v5095 = vadd.f32 %v5073, %v5089
        %v5096 = vadd.f32 %v5074, %v5089
        %v5097 = vadd.f32 %v5075, %v5089
        %v5098 = vadd.f32 %v5076, %v5089
        %v5099 = vadd.f32 %v5077, %v5089
        %v5100 = vadd.f32 %v5078, %v5089
        %v5101 = vadd.f32 %v5079, %v5089
        %v5102 = vadd.f32 %v5080, %v5089
        %v5103 = vadd.f32 %v5081, %v5089
        %v5104 = vadd.f32 %v5082, %v5089
        %v5105 = vadd.f32 %v5083, %v5089
        %v5106 = vadd.f32 %v5084, %v5089
        %v5107 = vpack.c.bf16 %v5092, %v5091
        %v5108 = vpack.c.bf16 %v5094, %v5093
        %v5109 = vpack.c.bf16 %v5096, %v5095
        %v5110 = vpack.c.bf16 %v5098, %v5097
        %v5111 = vpack.c.bf16 %v5100, %v5099
        %v5112 = vpack.c.bf16 %v5102, %v5101
        %v5113 = vpack.c.bf16 %v5104, %v5103
        %v5114 = vpack.c.bf16 %v5106, %v5105
        %v5116 = vlaneseq
        %v5117 = vshrl.u32 %v5116, 7
        %v5118 = vsub.s32 0, %v5117
        %v5119 = vrot.slane %v1062, %v5118
        %v5137 = vunpack.c.l.b16 %v1046
        %v5138 = vunpack.c.l.b16 %v1047
        %v5139 = vunpack.c.l.b16 %v1048
        %v5140 = vunpack.c.l.b16 %v1049
        %v5141 = vunpack.c.l.b16 %v1050
        %v5142 = vunpack.c.l.b16 %v1051
        %v5143 = vunpack.c.l.b16 %v1052
        %v5144 = vunpack.c.l.b16 %v1053
        %v5145 = vunpack.c.l.b16 %v1054
        %v5146 = vunpack.c.l.b16 %v1055
        %v5147 = vunpack.c.l.b16 %v1056
        %v5148 = vunpack.c.l.b16 %v1057
        %v5149 = vunpack.c.l.b16 %v1058
        %v5150 = vunpack.c.l.b16 %v1059
        %v5151 = vunpack.c.l.b16 %v1060
        %v5152 = vunpack.c.l.b16 %v1061
        %v5153 = vpack.c.b16 %v5138, %v5137
        %v5154 = vpack.c.b16 %v5140, %v5139
        %v5155 = vpack.c.b16 %v5142, %v5141
        %v5156 = vpack.c.b16 %v5144, %v5143
        %v5157 = vpack.c.b16 %v5146, %v5145
        %v5158 = vpack.c.b16 %v5148, %v5147
        %v5159 = vpack.c.b16 %v5150, %v5149
        %v5160 = vpack.c.b16 %v5152, %v5151
        %5169 = vmatprep.subr.bf16.mxu0 0
        %5170 = vmatpush1.bf16.msra.mxu0 %v5153
        %5171 = vmatprep.subr.bf16.mxu0 0
        %5172 = vmatpush1.bf16.msra.mxu0 %v5154
        %5173 = vmatprep.subr.bf16.mxu0 0
        %5174 = vmatpush1.bf16.msra.mxu0 %v5155
        %5175 = vmatprep.subr.bf16.mxu0 0
        %5176 = vmatpush1.bf16.msra.mxu0 %v5156
        %5177 = vmatprep.subr.bf16.mxu0 0
        %5178 = vmatpush1.bf16.msra.mxu0 %v5157
        %5179 = vmatprep.subr.bf16.mxu0 0
        %5180 = vmatpush1.bf16.msra.mxu0 %v5158
        %5181 = vmatprep.subr.bf16.mxu0 0
        %5182 = vmatpush1.bf16.msra.mxu0 %v5159
        %5183 = vmatprep.subr.bf16.mxu0 0
        %5184 = vmatpush1.bf16.msra.mxu0 %v5160
        %5185 = vmatprep.subr.bf16.mxu0 0
        %5186 = vmatpush1.bf16.msra.mxu0 0
        %5187 = vmatprep.subr.bf16.mxu0 0
        %5188 = vmatpush1.bf16.msra.mxu0 0
        %5189 = vmatprep.subr.bf16.mxu0 0
        %5190 = vmatpush1.bf16.msra.mxu0 0
        %5191 = vmatprep.subr.bf16.mxu0 0
        %5192 = vmatpush1.bf16.msra.mxu0 0
        %5193 = vmatprep.subr.bf16.mxu0 0
        %5194 = vmatpush1.bf16.msra.mxu0 0
        %5195 = vmatprep.subr.bf16.mxu0 0
        %5196 = vmatpush1.bf16.msra.mxu0 0
        %5197 = vmatprep.subr.bf16.mxu0 0
        %5198 = vmatpush1.bf16.msra.mxu0 0
        %5199 = vmatprep.subr.bf16.mxu0 0
        %5200 = vmatpush1.bf16.msra.mxu0 0
        %5201 = vmatprep.mubr.bf16.mxu0 0
        %5202 = vmatmul.mubr.bf16.gmra.mrb[0].mxu0 %v5107
        %v5203 = vpop.f32.mrb[0].mxu0
        %v5204 = vadd.f32 %v5119, %v5203
        %v5205 = vpop.f32.mrb[0].mxu0
        %v5206 = vpop.f32.mrb[0].mxu0
        %v5207 = vadd.f32 %v5119, %v5206
        %v5208 = vpop.f32.mrb[0].mxu0
        %5209 = vmatprep.mubr.bf16.mxu0 0
        %5210 = vmatmul.mubr.bf16.gmra.mrb[0].mxu0 %v5108
        %v5211 = vpop.f32.mrb[0].mxu0
        %v5212 = vadd.f32 %v5119, %v5211
        %v5213 = vpop.f32.mrb[0].mxu0
        %v5214 = vpop.f32.mrb[0].mxu0
        %v5215 = vadd.f32 %v5119, %v5214
        %v5216 = vpop.f32.mrb[0].mxu0
        %5217 = vmatprep.mubr.bf16.mxu0 0
        %5218 = vmatmul.mubr.bf16.gmra.mrb[0].mxu0 %v5109
        %v5219 = vpop.f32.mrb[0].mxu0
        %v5220 = vadd.f32 %v5119, %v5219
        %v5221 = vpop.f32.mrb[0].mxu0
        %v5222 = vpop.f32.mrb[0].mxu0
        %v5223 = vadd.f32 %v5119, %v5222
        %v5224 = vpop.f32.mrb[0].mxu0
        %5225 = vmatprep.mubr.bf16.mxu0 0
        %5226 = vmatmul.mubr.bf16.gmra.mrb[0].mxu0 %v5110
        %v5227 = vpop.f32.mrb[0].mxu0
        %v5228 = vadd.f32 %v5119, %v5227
        %v5229 = vpop.f32.mrb[0].mxu0
        %v5230 = vpop.f32.mrb[0].mxu0
        %v5231 = vadd.f32 %v5119, %v5230
        %v5232 = vpop.f32.mrb[0].mxu0
        %5233 = vmatprep.mubr.bf16.mxu0 0
        %5234 = vmatmul.mubr.bf16.gmra.mrb[0].mxu0 %v5111
        %v5235 = vpop.f32.mrb[0].mxu0
        %v5236 = vadd.f32 %v5119, %v5235
        %v5237 = vpop.f32.mrb[0].mxu0
        %v5238 = vpop.f32.mrb[0].mxu0
        %v5239 = vadd.f32 %v5119, %v5238
        %v5240 = vpop.f32.mrb[0].mxu0
        %5241 = vmatprep.mubr.bf16.mxu0 0
        %5242 = vmatmul.mubr.bf16.gmra.mrb[0].mxu0 %v5112
        %v5243 = vpop.f32.mrb[0].mxu0
        %v5244 = vadd.f32 %v5119, %v5243
        %v5245 = vpop.f32.mrb[0].mxu0
        %v5246 = vpop.f32.mrb[0].mxu0
        %v5247 = vadd.f32 %v5119, %v5246
        %v5248 = vpop.f32.mrb[0].mxu0
        %5249 = vmatprep.mubr.bf16.mxu0 0
        %5250 = vmatmul.mubr.bf16.gmra.mrb[0].mxu0 %v5113
        %v5251 = vpop.f32.mrb[0].mxu0
        %v5252 = vadd.f32 %v5119, %v5251
        %v5253 = vpop.f32.mrb[0].mxu0
        %v5254 = vpop.f32.mrb[0].mxu0
        %v5255 = vadd.f32 %v5119, %v5254
        %v5256 = vpop.f32.mrb[0].mxu0
        %5257 = vmatprep.mubr.bf16.mxu0 0
        %5258 = vmatmul.mubr.bf16.gmra.mrb[0].mxu0 %v5114
        %v5259 = vpop.f32.mrb[0].mxu0
        %v5260 = vadd.f32 %v5119, %v5259
        %v5261 = vpop.f32.mrb[0].mxu0
        %v5262 = vpop.f32.mrb[0].mxu0
        %v5263 = vadd.f32 %v5119, %v5262
        %v5264 = vpop.f32.mrb[0].mxu0
        %5265 = vdwg.mxu0
        %v5266 = vmax.f32 %v5204, 0.0
        %v5267 = vmax.f32 %v5207, 0.0
        %v5268 = vmax.f32 %v5212, 0.0
        %v5269 = vmax.f32 %v5215, 0.0
        %v5270 = vmax.f32 %v5220, 0.0
        %v5271 = vmax.f32 %v5223, 0.0
        %v5272 = vmax.f32 %v5228, 0.0
        %v5273 = vmax.f32 %v5231, 0.0
        %v5274 = vmax.f32 %v5236, 0.0
        %v5275 = vmax.f32 %v5239, 0.0
        %v5276 = vmax.f32 %v5244, 0.0
        %v5277 = vmax.f32 %v5247, 0.0
        %v5278 = vmax.f32 %v5252, 0.0
        %v5279 = vmax.f32 %v5255, 0.0
        %v5280 = vmax.f32 %v5260, 0.0
        %v5281 = vmax.f32 %v5263, 0.0
        %v5282 = vpack.c.bf16 %v5267, %v5266
        %v5283 = vpack.c.bf16 %v5269, %v5268
        %v5284 = vpack.c.bf16 %v5271, %v5270
        %v5285 = vpack.c.bf16 %v5273, %v5272
        %v5286 = vpack.c.bf16 %v5275, %v5274
        %v5287 = vpack.c.bf16 %v5277, %v5276
        %v5288 = vpack.c.bf16 %v5279, %v5278
        %v5289 = vpack.c.bf16 %v5281, %v5280
        %v5306 = vunpack.c.l.b16 %v1063
        %v5307 = vunpack.c.l.b16 %v1064
        %v5308 = vunpack.c.l.b16 %v1065
        %v5309 = vunpack.c.l.b16 %v1066
        %v5310 = vunpack.c.l.b16 %v1067
        %v5311 = vunpack.c.l.b16 %v1068
        %v5312 = vunpack.c.l.b16 %v1069
        %v5313 = vunpack.c.l.b16 %v1070
        %v5314 = vunpack.c.l.b16 %v1071
        %v5315 = vunpack.c.l.b16 %v1072
        %v5316 = vunpack.c.l.b16 %v1073
        %v5317 = vunpack.c.l.b16 %v1074
        %v5318 = vunpack.c.l.b16 %v1075
        %v5319 = vunpack.c.l.b16 %v1076
        %v5320 = vunpack.c.l.b16 %v1077
        %v5321 = vunpack.c.l.b16 %v1078
        %v5322 = vpack.c.b16 %v5307, %v5306
        %v5323 = vpack.c.b16 %v5309, %v5308
        %v5324 = vpack.c.b16 %v5311, %v5310
        %v5325 = vpack.c.b16 %v5313, %v5312
        %v5326 = vpack.c.b16 %v5315, %v5314
        %v5327 = vpack.c.b16 %v5317, %v5316
        %v5328 = vpack.c.b16 %v5319, %v5318
        %v5329 = vpack.c.b16 %v5321, %v5320
        %5338 = vmatprep.subr.bf16.mxu0 0
        %5339 = vmatpush1.bf16.msra.mxu0 %v5322
        %5340 = vmatprep.subr.bf16.mxu0 0
        %5341 = vmatpush1.bf16.msra.mxu0 %v5323
        %5342 = vmatprep.subr.bf16.mxu0 0
        %5343 = vmatpush1.bf16.msra.mxu0 %v5324
        %5344 = vmatprep.subr.bf16.mxu0 0
        %5345 = vmatpush1.bf16.msra.mxu0 %v5325
        %5346 = vmatprep.subr.bf16.mxu0 0
        %5347 = vmatpush1.bf16.msra.mxu0 %v5326
        %5348 = vmatprep.subr.bf16.mxu0 0
        %5349 = vmatpush1.bf16.msra.mxu0 %v5327
        %5350 = vmatprep.subr.bf16.mxu0 0
        %5351 = vmatpush1.bf16.msra.mxu0 %v5328
        %5352 = vmatprep.subr.bf16.mxu0 0
        %5353 = vmatpush1.bf16.msra.mxu0 %v5329
        %5354 = vmatprep.subr.bf16.mxu0 0
        %5355 = vmatpush1.bf16.msra.mxu0 0
        %5356 = vmatprep.subr.bf16.mxu0 0
        %5357 = vmatpush1.bf16.msra.mxu0 0
        %5358 = vmatprep.subr.bf16.mxu0 0
        %5359 = vmatpush1.bf16.msra.mxu0 0
        %5360 = vmatprep.subr.bf16.mxu0 0
        %5361 = vmatpush1.bf16.msra.mxu0 0
        %5362 = vmatprep.subr.bf16.mxu0 0
        %5363 = vmatpush1.bf16.msra.mxu0 0
        %5364 = vmatprep.subr.bf16.mxu0 0
        %5365 = vmatpush1.bf16.msra.mxu0 0
        %5366 = vmatprep.subr.bf16.mxu0 0
        %5367 = vmatpush1.bf16.msra.mxu0 0
        %5368 = vmatprep.subr.bf16.mxu0 0
        %5369 = vmatpush1.bf16.msra.mxu0 0
        %5370 = vmatprep.mubr.bf16.mxu0 0
        %5371 = vmatmul.mubr.bf16.gmra.mrb[0].mxu0 %v5282
        %v5372 = vpop.f32.mrb[0].mxu0
        %v5373 = vadd.f32 0.0, %v5372
        %v5374 = vpop.f32.mrb[0].mxu0
        %v5375 = vpop.f32.mrb[0].mxu0
        %v5376 = vadd.f32 0.0, %v5375
        %v5377 = vpop.f32.mrb[0].mxu0
        %5378 = vmatprep.mubr.bf16.mxu0 0
        %5379 = vmatmul.mubr.bf16.gmra.mrb[0].mxu0 %v5283
        %v5380 = vpop.f32.mrb[0].mxu0
        %v5381 = vadd.f32 0.0, %v5380
        %v5382 = vpop.f32.mrb[0].mxu0
        %v5383 = vpop.f32.mrb[0].mxu0
        %v5384 = vadd.f32 0.0, %v5383
        %v5385 = vpop.f32.mrb[0].mxu0
        %5386 = vmatprep.mubr.bf16.mxu0 0
        %5387 = vmatmul.mubr.bf16.gmra.mrb[0].mxu0 %v5284
        %v5388 = vpop.f32.mrb[0].mxu0
        %v5389 = vadd.f32 0.0, %v5388
        %v5390 = vpop.f32.mrb[0].mxu0
        %v5391 = vpop.f32.mrb[0].mxu0
        %v5392 = vadd.f32 0.0, %v5391
        %v5393 = vpop.f32.mrb[0].mxu0
        %5394 = vmatprep.mubr.bf16.mxu0 0
        %5395 = vmatmul.mubr.bf16.gmra.mrb[0].mxu0 %v5285
        %v5396 = vpop.f32.mrb[0].mxu0
        %v5397 = vadd.f32 0.0, %v5396
        %v5398 = vpop.f32.mrb[0].mxu0
        %v5399 = vpop.f32.mrb[0].mxu0
        %v5400 = vadd.f32 0.0, %v5399
        %v5401 = vpop.f32.mrb[0].mxu0
        %5402 = vmatprep.mubr.bf16.mxu0 0
        %5403 = vmatmul.mubr.bf16.gmra.mrb[0].mxu0 %v5286
        %v5404 = vpop.f32.mrb[0].mxu0
        %v5405 = vadd.f32 0.0, %v5404
        %v5406 = vpop.f32.mrb[0].mxu0
        %v5407 = vpop.f32.mrb[0].mxu0
        %v5408 = vadd.f32 0.0, %v5407
        %v5409 = vpop.f32.mrb[0].mxu0
        %5410 = vmatprep.mubr.bf16.mxu0 0
        %5411 = vmatmul.mubr.bf16.gmra.mrb[0].mxu0 %v5287
        %v5412 = vpop.f32.mrb[0].mxu0
        %v5413 = vadd.f32 0.0, %v5412
        %v5414 = vpop.f32.mrb[0].mxu0
        %v5415 = vpop.f32.mrb[0].mxu0
        %v5416 = vadd.f32 0.0, %v5415
        %v5417 = vpop.f32.mrb[0].mxu0
        %5418 = vmatprep.mubr.bf16.mxu0 0
        %5419 = vmatmul.mubr.bf16.gmra.mrb[0].mxu0 %v5288
        %v5420 = vpop.f32.mrb[0].mxu0
        %v5421 = vadd.f32 0.0, %v5420
        %v5422 = vpop.f32.mrb[0].mxu0
        %v5423 = vpop.f32.mrb[0].mxu0
        %v5424 = vadd.f32 0.0, %v5423
        %v5425 = vpop.f32.mrb[0].mxu0
        %5426 = vmatprep.mubr.bf16.mxu0 0
        %5427 = vmatmul.mubr.bf16.gmra.mrb[0].mxu0 %v5289
        %v5428 = vpop.f32.mrb[0].mxu0
        %v5429 = vadd.f32 0.0, %v5428
        %v5430 = vpop.f32.mrb[0].mxu0
        %v5431 = vpop.f32.mrb[0].mxu0
        %v5432 = vadd.f32 0.0, %v5431
        %v5433 = vpop.f32.mrb[0].mxu0
        %5434 = vdwg.mxu0
        %v5435 = vadd.f32 %v4839, %v5373
        %v5436 = vadd.f32 %v4840, %v5376
        %v5437 = vadd.f32 %v4841, %v5381
        %v5438 = vadd.f32 %v4842, %v5384
        %v5439 = vadd.f32 %v4843, %v5389
        %v5440 = vadd.f32 %v4844, %v5392
        %v5441 = vadd.f32 %v4845, %v5397
        %v5442 = vadd.f32 %v4846, %v5400
        %v5443 = vadd.f32 %v4847, %v5405
        %v5444 = vadd.f32 %v4848, %v5408
        %v5445 = vadd.f32 %v4849, %v5413
        %v5446 = vadd.f32 %v4850, %v5416
        %v5447 = vadd.f32 %v4851, %v5421
        %v5448 = vadd.f32 %v4852, %v5424
        %v5449 = vadd.f32 %v4853, %v5429
        %v5450 = vadd.f32 %v4854, %v5432
        %v5452 = vlaneseq
        %v5453 = vshrl.u32 %v5452, 7
        %v5454 = vsub.s32 0, %v5453
        %v5455 = vrot.slane %v1079, %v5454
        %v5457 = vadd.f32 %v5435, %v5455
        %v5458 = vadd.f32 %v5436, %v5455
        %v5459 = vadd.f32 %v5437, %v5455
        %v5460 = vadd.f32 %v5438, %v5455
        %v5461 = vadd.f32 %v5439, %v5455
        %v5462 = vadd.f32 %v5440, %v5455
        %v5463 = vadd.f32 %v5441, %v5455
        %v5464 = vadd.f32 %v5442, %v5455
        %v5465 = vadd.f32 %v5443, %v5455
        %v5466 = vadd.f32 %v5444, %v5455
        %v5467 = vadd.f32 %v5445, %v5455
        %v5468 = vadd.f32 %v5446, %v5455
        %v5469 = vadd.f32 %v5447, %v5455
        %v5470 = vadd.f32 %v5448, %v5455
        %v5471 = vadd.f32 %v5449, %v5455
        %v5472 = vadd.f32 %v5450, %v5455
        %5473 = vst [vmem:[%s772] sm:$0xff] %v5457
        %5474 = vst [vmem:[%s772 + $0x8] sm:$0xff] %v5458
        %5475 = vst [vmem:[%s772 + $0x10] sm:$0xff] %v5459
        %5476 = vst [vmem:[%s772 + $0x18] sm:$0xff] %v5460
        %5477 = vst [vmem:[%s772 + $0x20] sm:$0xff] %v5461
        %5478 = vst [vmem:[%s772 + $0x28] sm:$0xff] %v5462
        %5479 = vst [vmem:[%s772 + $0x30] sm:$0xff] %v5463
        %5480 = vst [vmem:[%s772 + $0x38] sm:$0xff] %v5464
        %5481 = vst [vmem:[%s772 + $0x40] sm:$0xff] %v5465
        %5482 = vst [vmem:[%s772 + $0x48] sm:$0xff] %v5466
        %5483 = vst [vmem:[%s772 + $0x50] sm:$0xff] %v5467
        %5484 = vst [vmem:[%s772 + $0x58] sm:$0xff] %v5468
        %5485 = vst [vmem:[%s772 + $0x60] sm:$0xff] %v5469
        %5486 = vst [vmem:[%s772 + $0x68] sm:$0xff] %v5470
        %5487 = vst [vmem:[%s772 + $0x70] sm:$0xff] %v5471
        %5488 = vst [vmem:[%s772 + $0x78] sm:$0xff] %v5472
        %s5489 = sand.u32 %s411, 1
        %s5490 = scalar_lea.sflag [#allocation4], %s5489
        %s5491 = sand.u32 %s411, 1
        %s5492 = smul.addr %s5491, 128
        %s5493 = scalar_lea.vmem [#allocation12], %s5492
        // Predicated region
        $region109: #{tpu_custom_call.1} parent=75 // pred_check
          %p5494 = pneg %p421
        $region110: #{tpu_custom_call.1} parent=75 // pred_check_branch
          %5496 = sbr.rel (%p5494) target = $region112
        $region111: #{tpu_custom_call.1} parent=75 // pred_region
          %s5498 = ssub.s32 2048, 2048
          %5499 = vsyncadd %s5490, %s5498
          %s5500 = smul.addr %s36, 16
          %s5501 = smul.addr %s5500, 128
          %s5502 = scalar_lea.hbm %s14, %s5501
          %s5503 = sshll.u32 %s5493, 4
          %s5504 = int_to_ptr.vmem [resolvable:$true] %s5503
          %5509 = dma.vmem_to_hbm [thread:$0]  %s5504, 2048, %s5502, %s5490, 128, 128, 8
        $region112: #{tpu_custom_call.1} parent=75 // pred_fallthru
          _
      $region76: #{tpu_custom_call.1} parent=5 // pred_fallthru
        _
      %p5510 = scmp.le.s32.totalorder 2, %s27
      // Predicated region
      $region113: #{tpu_custom_call.1} parent=5 // pred_check
        %p5511 = pneg %p5510
      $region114: #{tpu_custom_call.1} parent=5 // pred_check_branch
        %5513 = sbr.rel (%p5511) target = $region116
      $region115: #{tpu_custom_call.1} parent=5 // pred_region
        %s5514 = ssub.s32 %s27, 2
        // Predicated region
        $region117: #{tpu_custom_call.1} parent=115 // pred_check
          %p5515 = pneg %p427
        $region118: #{tpu_custom_call.1} parent=115 // pred_check_branch
          %5517 = sbr.rel (%p5515) target = $region120
        $region119: #{tpu_custom_call.1} parent=115 // pred_region
          %s5518 = sand.u32 %s412, 1
          %s5519 = scalar_lea.sflag [#allocation4], %s5518
          %s5520 = sand.u32 %s412, 1
          %s5521 = smul.addr %s5520, 128
          %s5522 = scalar_lea.vmem [#allocation12], %s5521
          %5523 = dma.done %s5519, 2048
        $region120: #{tpu_custom_call.1} parent=115 // pred_fallthru
          _
      $region116: #{tpu_custom_call.1} parent=5 // pred_fallthru
        _
    $region6: #{tpu_custom_call.1} parent=1 // loop_footer
      %s31 = sadd.s32 1, %s27
    $region7: #{tpu_custom_call.1} parent=1 // loop_footer_branch
      %26 = sbr.rel target = $region3
    $region8: #{tpu_custom_call.1} parent=1 // loop_exit
      _
    %5524 = vsyncpa [#allocation3], 1
    %s5525 = scalar_lea.sflag [#allocation3], 1
    %5526 = vsyncpa %s5525, 1
    %5527 = vsyncpa [#allocation6], 1
    %5528 = vsyncpa [#allocation4], 1
    %s5529 = scalar_lea.sflag [#allocation4], 1
    %5530 = vsyncpa %s5529, 1

</llo_original>
